<compile_context>
chip_gen: v5e
topology: v5e:2x2
jax: 0.10.0
libtpu: 0.0.40
codegen_flags: <defaults>
</compile_context>

<pallas_src>
import math

import jax
import jax.numpy as jnp
from jax.experimental import pallas as pl
from jax.experimental.pallas import tpu as pltpu

# ---------------- model hyper-params (small, consistent with the module's structure) -------------
BATCH = 2
SEQ = 16          # code_length
HIDDEN = 128      # stands in for 768
NUM_HEADS = 2
HEAD_DIM = HIDDEN // NUM_HEADS
HEAD_PAD = 128    # per-head lane-padded width (real cols 0:HEAD_DIM, rest zero)
FFN = 256
NUM_LAYERS = 2
VOCAB = 1000
TYPE_VOCAB = 2

MXU_DTYPE = jnp.bfloat16   # matmul operand dtype (accumulation stays f32)

_K_OFF = NUM_HEADS * HEAD_PAD        # column offset of the K head blocks in the packed QKV
_V_OFF = 2 * NUM_HEADS * HEAD_PAD    # column offset of the V head blocks


# --------------------------------- fused Pallas kernel -------------------------------------------
def _ln(h, g, b):
    """LayerNorm over last dim, f32 math, eps=1e-12 (matches the reference)."""
    mu = jnp.mean(h, axis=-1, keepdims=True)
    var = jnp.mean((h - mu) ** 2, axis=-1, keepdims=True)
    return (h - mu) * jax.lax.rsqrt(var + 1e-12) * g + b


def _mm(a, w):
    """bf16 x bf16 matmul with f32 accumulation on the MXU."""
    return jnp.dot(a.astype(MXU_DTYPE), w.astype(MXU_DTYPE),
                   preferred_element_type=jnp.float32)


def _bertqua_fused_kernel(
        x_ref, bias_ref, eg_ref, eb_ref,
        wqkv_ref, bqkv_ref, wo_ref, bo_ref, ln1g_ref, ln1b_ref,
        w1_ref, b1_ref, w2_ref, b2_ref, ln2g_ref, ln2b_ref,
        headw_ref, headb_ref, o_ref):
    """One grid step processes one batch element (S rows)."""
    S, NH, HP = SEQ, NUM_HEADS, HEAD_PAD

    # Embedding LayerNorm (non-residual path).
    x = _ln(x_ref[...].astype(jnp.float32), eg_ref[...], eb_ref[...])          # (S, H)
    # Precomputed additive bias: key mask + block-diagonal head mask, loaded ONCE.
    bias = bias_ref[...]                                                        # (NH*S, NH*S)

    for l in range(NUM_LAYERS):                      # static unroll over layers
        # Fused QKV projection; per-head 128-lane blocks, 1/sqrt(dh) folded into Q.
        qkv = _mm(x, wqkv_ref[l]) + bqkv_ref[l]                                 # (S, 3*NH*HP)

        # Block-diagonal attention over all heads of this batch: lane-aligned 128-wide slices,
        # row-stacked (sublane concat) -> (NH*S, HP).
        q_bd = jnp.concatenate(
            [qkv[:, h * HP:(h + 1) * HP] for h in range(NH)], axis=0).astype(MXU_DTYPE)
        k_bd = jnp.concatenate(
            [qkv[:, _K_OFF + h * HP:_K_OFF + (h + 1) * HP] for h in range(NH)],
            axis=0).astype(MXU_DTYPE)
        v_bd = jnp.concatenate(
            [qkv[:, _V_OFF + h * HP:_V_OFF + (h + 1) * HP] for h in range(NH)],
            axis=0).astype(MXU_DTYPE)

        # One scores matmul + one PV matmul per layer.
        s = jax.lax.dot_general(q_bd, k_bd, (((1,), (1,)), ((), ())),
                                preferred_element_type=jnp.float32) + bias      # (NH*S, NH*S)
        m = jnp.max(s, axis=-1, keepdims=True)
        p = jnp.exp(s - m)
        p = p * pl.reciprocal(jnp.sum(p, axis=-1, keepdims=True), approx=True)
        ctx_bd = jnp.dot(p.astype(MXU_DTYPE), v_bd,
                         preferred_element_type=jnp.float32)                    # (NH*S, HP)

        # Un-stack heads back to (S, NH*HP); the head merge itself is folded into wo
        # (zero rows on the pad lanes), so no sub-128-lane extraction is ever needed.
        ctx = jnp.concatenate([ctx_bd[h * S:(h + 1) * S, :] for h in range(NH)], axis=1)

        attn_out = _mm(ctx, wo_ref[l]) + bo_ref[l]                              # (S, H)
        x = _ln(attn_out + x, ln1g_ref[l], ln1b_ref[l])

        # Feed forward.
        hdn = jax.nn.gelu(_mm(x, w1_ref[l]) + b1_ref[l], approximate=True)
        ffn_out = _mm(hdn, w2_ref[l]) + b2_ref[l]
        x = _ln(ffn_out + x, ln2g_ref[l], ln2b_ref[l])

    # Span heads: packed (H, 128) matmul -> lane-dense output (cols 0/1 = start/end logits).
    logits = _mm(x, headw_ref[...]) + headb_ref[...]                            # (S, 128)
    o_ref[...] = logits.astype(o_ref.dtype)


def bertqua_encoder(x, attn_bias, packed):
    """x: (B*S, H) f32 embedding sum; attn_bias: (B*NH*S, NH*S) f32 additive bias.
    Returns (B*S, 128) f32 packed logits."""
    M = x.shape[0]
    operands = (
        x, attn_bias,
        packed["emb_ln_g"], packed["emb_ln_b"],
        packed["wqkv"], packed["bqkv"],
        packed["wo"], packed["bo"],
        packed["ln1_g"], packed["ln1_b"],
        packed["w1"], packed["b1"],
        packed["w2"], packed["b2"],
        packed["ln2_g"], packed["ln2_b"],
        packed["head_w"], packed["head_b"],
    )

    def per_batch_spec(shape):
        rows = shape[0] // BATCH
        return pl.BlockSpec((rows, shape[1]), lambda b: (b, 0))

    def const_spec(shape):
        nd = len(shape)
        return pl.BlockSpec(shape, lambda b, _nd=nd: (0,) * _nd)

    in_specs = [per_batch_spec(x.shape), per_batch_spec(attn_bias.shape)]
    in_specs += [const_spec(a.shape) for a in operands[2:]]

    cost = pl.CostEstimate(flops=28_000_000, transcendentals=25_000,
                           bytes_accessed=1_000_000)

    return pl.pallas_call(
        _bertqua_fused_kernel,
        out_shape=jax.ShapeDtypeStruct((M, 128), jnp.float32),
        grid=(BATCH,),
        in_specs=in_specs,
        out_specs=pl.BlockSpec((SEQ, 128), lambda b: (b, 0)),
        compiler_params=pltpu.CompilerParams(dimension_semantics=("parallel",)),
        cost_estimate=cost,
    )(*operands)


# --------------------------------- parameter init / packing --------------------------------------
def init_params(key):
    ks = iter(jax.random.split(key, 64))
    n = lambda shape: 0.02 * jax.random.normal(next(ks), shape, jnp.float32)
    params = {
        "tok_emb": n((VOCAB, HIDDEN)),
        "seg_emb": n((TYPE_VOCAB, HIDDEN)),
        "pos_emb": n((SEQ, HIDDEN)),
        "emb_ln_g": jnp.ones((HIDDEN,), jnp.float32),
        "emb_ln_b": jnp.zeros((HIDDEN,), jnp.float32),
        "w_start": n((HIDDEN, 1)),   # nn.Linear(768, 1) analog
        "b_start": jnp.zeros((1,), jnp.float32),
        "w_end": n((HIDDEN, 1)),     # nn.Linear(768, 1) analog
        "b_end": jnp.zeros((1,), jnp.float32),
        "layers": [],
    }
    for _ in range(NUM_LAYERS):
        params["layers"].append({
            "wq": n((HIDDEN, HIDDEN)), "bq": jnp.zeros((HIDDEN,), jnp.float32),
            "wk": n((HIDDEN, HIDDEN)), "bk": jnp.zeros((HIDDEN,), jnp.float32),
            "wv": n((HIDDEN, HIDDEN)), "bv": jnp.zeros((HIDDEN,), jnp.float32),
            "wo": n((HIDDEN, HIDDEN)), "bo": jnp.zeros((HIDDEN,), jnp.float32),
            "ln1_g": jnp.ones((HIDDEN,), jnp.float32), "ln1_b": jnp.zeros((HIDDEN,), jnp.float32),
            "w1": n((HIDDEN, FFN)), "b1": jnp.zeros((FFN,), jnp.float32),
            "w2": n((FFN, HIDDEN)), "b2": jnp.zeros((HIDDEN,), jnp.float32),
            "ln2_g": jnp.ones((HIDDEN,), jnp.float32), "ln2_b": jnp.zeros((HIDDEN,), jnp.float32),
        })
    return params


def pack_params(params):
    """One-time packing (outside jit): head-padded fused QKV (scale folded into Q), head-padded
    output projection (head merge folded in), stacked per-layer weights, bf16 matmul weights,
    and the lane-dense (H, 128) span head."""
    scale = 1.0 / math.sqrt(HEAD_DIM)
    NH, HP = NUM_HEADS, HEAD_PAD

    def pad_head_cols(w, col_scale=1.0):
        # (H, H) -> (H, NH*HP): head h's 64 real columns land in lanes [h*HP, h*HP+64), rest zero.
        blocks = []
        for h in range(NH):
            blk = jnp.zeros((HIDDEN, HP), jnp.float32)
            blk = blk.at[:, :HEAD_DIM].set(col_scale * w[:, h * HEAD_DIM:(h + 1) * HEAD_DIM])
            blocks.append(blk)
        return jnp.concatenate(blocks, axis=1)

    def pad_head_bias(b, b_scale=1.0):
        blocks = []
        for h in range(NH):
            blk = jnp.zeros((HP,), jnp.float32)
            blk = blk.at[:HEAD_DIM].set(b_scale * b[h * HEAD_DIM:(h + 1) * HEAD_DIM])
            blocks.append(blk)
        return jnp.concatenate(blocks)[None, :]          # (1, NH*HP)

    def pad_wo(wo):
        # (H, H) -> (NH*HP, H): zero rows on the pad lanes absorb the context padding.
        out = jnp.zeros((NH * HP, HIDDEN), jnp.float32)
        for h in range(NH):
            out = out.at[h * HP:h * HP + HEAD_DIM, :].set(
                wo[h * HEAD_DIM:(h + 1) * HEAD_DIM, :])
        return out

    cols = {k: [] for k in ("wqkv", "bqkv", "wo", "bo", "ln1_g", "ln1_b",
                            "w1", "b1", "w2", "b2", "ln2_g", "ln2_b")}
    for lyr in params["layers"]:
        cols["wqkv"].append(jnp.concatenate(
            [pad_head_cols(lyr["wq"], scale), pad_head_cols(lyr["wk"]),
             pad_head_cols(lyr["wv"])], axis=1))                                # (H, 3*NH*HP)
        cols["bqkv"].append(jnp.concatenate(
            [pad_head_bias(lyr["bq"], scale), pad_head_bias(lyr["bk"]),
             pad_head_bias(lyr["bv"])], axis=1))                                # (1, 3*NH*HP)
        cols["wo"].append(pad_wo(lyr["wo"]));        cols["bo"].append(lyr["bo"][None, :])
        cols["ln1_g"].append(lyr["ln1_g"][None, :]); cols["ln1_b"].append(lyr["ln1_b"][None, :])
        cols["w1"].append(lyr["w1"]);                cols["b1"].append(lyr["b1"][None, :])
        cols["w2"].append(lyr["w2"]);                cols["b2"].append(lyr["b2"][None, :])
        cols["ln2_g"].append(lyr["ln2_g"][None, :]); cols["ln2_b"].append(lyr["ln2_b"][None, :])

    head_w = jnp.zeros((HIDDEN, 128), jnp.float32)
    head_w = head_w.at[:, 0].set(params["w_start"][:, 0]).at[:, 1].set(params["w_end"][:, 0])
    head_b = jnp.zeros((1, 128), jnp.float32)
    head_b = head_b.at[0, 0].set(params["b_start"][0]).at[0, 1].set(params["b_end"][0])

    stk = lambda xs: jnp.stack(xs, axis=0)
    bf16_keys = ("wqkv", "wo", "w1", "w2")
    packed = {k: (stk(v).astype(MXU_DTYPE) if k in bf16_keys else stk(v))
              for k, v in cols.items()}
    packed.update({
        "tok_emb": params["tok_emb"],
        "seg_emb": params["seg_emb"],
        "pos_emb": params["pos_emb"],
        "emb_ln_g": params["emb_ln_g"][None, :],
        "emb_ln_b": params["emb_ln_b"][None, :],
        "head_w": head_w.astype(MXU_DTYPE),
        "head_b": head_b,
    })
    return packed


# --------------------------------- BERTQuA forward -----------------------------------------------
def _build_attn_bias(masks_f32):
    """(B, S) key mask -> (B*NH*S, NH*S) additive bias: key mask on diagonal head blocks,
    -1e9 on off-diagonal head blocks (so the block-diagonal attention matches per-head attn)."""
    key_bias = (1.0 - masks_f32) * jnp.float32(-1e9)                       # (B, S)
    eye = jnp.eye(NUM_HEADS, dtype=jnp.float32)
    bias5 = jnp.where(eye[None, :, None, :, None] > 0.5,
                      key_bias[:, None, None, None, :],
                      jnp.float32(-1e9))                                    # (B, NH, 1, NH, S)
    bias = jnp.broadcast_to(bias5, (BATCH, NUM_HEADS, SEQ, NUM_HEADS, SEQ))
    return bias.reshape(BATCH * NUM_HEADS * SEQ, NUM_HEADS * SEQ)


def bertqua_forward(packed, inputs):
    """inputs: (B, 3, S) int32 -> (logits_start (B,S,1), logits_end (B,S,1))."""
    tokens = inputs[:, 0]
    segments = inputs[:, 1]
    masks = inputs[:, 2].astype(jnp.float32)
    B, S = tokens.shape

    # Embedding table gathers + bias build are glue, done once in plain JAX.
    emb = (packed["tok_emb"][tokens]
           + packed["seg_emb"][segments]
           + packed["pos_emb"][None, :S])
    x = emb.reshape(B * S, HIDDEN)
    attn_bias = _build_attn_bias(masks)                    # hoisted out of the layer loop

    logits = bertqua_encoder(x, attn_bias, packed)         # single fused pallas_call, grid=(B,)
    logits_start = logits[:, 0].reshape(B, S, 1)
    logits_end = logits[:, 1].reshape(B, S, 1)
    return logits_start, logits_end


# TODO(synk): prediction()/train()/tokenizer string handling are host-side control flow with no
# Pallas equivalent; only the forward pass (encoder + output heads) is implemented here.

if __name__ == "__main__":
    key = jax.random.PRNGKey(0)
    pkey, tkey, skey = jax.random.split(key, 3)
    params = init_params(pkey)
    packed = pack_params(params)      # packed once, outside jit (no per-call weight setup)

    tokens = jax.random.randint(tkey, (BATCH, SEQ), 0, VOCAB, dtype=jnp.int32)
    segments = jax.random.randint(skey, (BATCH, SEQ), 0, TYPE_VOCAB, dtype=jnp.int32)
    masks = jnp.concatenate(
        [jnp.ones((BATCH, SEQ - 4), jnp.int32), jnp.zeros((BATCH, 4), jnp.int32)], axis=1)
    inputs = jnp.stack([tokens, segments, masks], axis=1)           # (B, 3, S)

    fwd = jax.jit(bertqua_forward)
    logits_start, logits_end = fwd(packed, inputs)
    jax.block_until_ready((logits_start, logits_end))

    assert logits_start.shape == (BATCH, SEQ, 1)
    assert logits_end.shape == (BATCH, SEQ, 1)
    assert bool(jnp.all(jnp.isfinite(logits_start))) and bool(jnp.all(jnp.isfinite(logits_end)))
    print("KERNEL_OK")
</pallas_src>

<mosaic_0001>
module attributes {stable_mosaic.version = 11 : i64} {
  func.func @_bertqua_fused_kernel(%arg0: i32, %arg1: memref<16x128xf32, #tpu.memory_space<vmem>>, %arg2: memref<32x32xf32, #tpu.memory_space<vmem>>, %arg3: memref<1x128xf32, #tpu.memory_space<vmem>>, %arg4: memref<1x128xf32, #tpu.memory_space<vmem>>, %arg5: memref<2x128x768xbf16, #tpu.memory_space<vmem>>, %arg6: memref<2x1x768xf32, #tpu.memory_space<vmem>>, %arg7: memref<2x256x128xbf16, #tpu.memory_space<vmem>>, %arg8: memref<2x1x128xf32, #tpu.memory_space<vmem>>, %arg9: memref<2x1x128xf32, #tpu.memory_space<vmem>>, %arg10: memref<2x1x128xf32, #tpu.memory_space<vmem>>, %arg11: memref<2x128x256xbf16, #tpu.memory_space<vmem>>, %arg12: memref<2x1x256xf32, #tpu.memory_space<vmem>>, %arg13: memref<2x256x128xbf16, #tpu.memory_space<vmem>>, %arg14: memref<2x1x128xf32, #tpu.memory_space<vmem>>, %arg15: memref<2x1x128xf32, #tpu.memory_space<vmem>>, %arg16: memref<2x1x128xf32, #tpu.memory_space<vmem>>, %arg17: memref<128x128xbf16, #tpu.memory_space<vmem>>, %arg18: memref<1x128xf32, #tpu.memory_space<vmem>>, %arg19: memref<16x128xf32, #tpu.memory_space<vmem>>) attributes {dimension_semantics = [#tpu.dimension_semantics<parallel>], iteration_bounds = array<i64: 2>, scalar_prefetch = 0 : i64, scratch_operands = 0 : i64, tpu.core_type = #tpu.core_type<tc>, window_params = [{transform_indices = @transform_0, window_bounds = array<i64: 16, 128>}, {transform_indices = @transform_1, window_bounds = array<i64: 32, 32>}, {pipeline_mode = #tpu.pipeline_mode<synchronous>, transform_indices = @transform_2, window_bounds = array<i64: 1, 128>}, {pipeline_mode = #tpu.pipeline_mode<synchronous>, transform_indices = @transform_3, window_bounds = array<i64: 1, 128>}, {pipeline_mode = #tpu.pipeline_mode<synchronous>, transform_indices = @transform_4, window_bounds = array<i64: 2, 128, 768>}, {pipeline_mode = #tpu.pipeline_mode<synchronous>, transform_indices = @transform_5, window_bounds = array<i64: 2, 1, 768>}, {pipeline_mode = #tpu.pipeline_mode<synchronous>, transform_indices = @transform_6, window_bounds = array<i64: 2, 256, 128>}, {pipeline_mode = #tpu.pipeline_mode<synchronous>, transform_indices = @transform_7, window_bounds = array<i64: 2, 1, 128>}, {pipeline_mode = #tpu.pipeline_mode<synchronous>, transform_indices = @transform_8, window_bounds = array<i64: 2, 1, 128>}, {pipeline_mode = #tpu.pipeline_mode<synchronous>, transform_indices = @transform_9, window_bounds = array<i64: 2, 1, 128>}, {pipeline_mode = #tpu.pipeline_mode<synchronous>, transform_indices = @transform_10, window_bounds = array<i64: 2, 128, 256>}, {pipeline_mode = #tpu.pipeline_mode<synchronous>, transform_indices = @transform_11, window_bounds = array<i64: 2, 1, 256>}, {pipeline_mode = #tpu.pipeline_mode<synchronous>, transform_indices = @transform_12, window_bounds = array<i64: 2, 256, 128>}, {pipeline_mode = #tpu.pipeline_mode<synchronous>, transform_indices = @transform_13, window_bounds = array<i64: 2, 1, 128>}, {pipeline_mode = #tpu.pipeline_mode<synchronous>, transform_indices = @transform_14, window_bounds = array<i64: 2, 1, 128>}, {pipeline_mode = #tpu.pipeline_mode<synchronous>, transform_indices = @transform_15, window_bounds = array<i64: 2, 1, 128>}, {pipeline_mode = #tpu.pipeline_mode<synchronous>, transform_indices = @transform_16, window_bounds = array<i64: 128, 128>}, {pipeline_mode = #tpu.pipeline_mode<synchronous>, transform_indices = @transform_17, window_bounds = array<i64: 1, 128>}, {transform_indices = @transform_18, window_bounds = array<i64: 16, 128>}]} {
    %c0 = arith.constant 0 : index
    %c0_0 = arith.constant 0 : index
    %0 = vector.load %arg1[%c0, %c0_0] : memref<16x128xf32, #tpu.memory_space<vmem>>, vector<16x128xf32>
    %c0_1 = arith.constant 0 : index
    %c0_2 = arith.constant 0 : index
    %1 = vector.load %arg3[%c0_1, %c0_2] : memref<1x128xf32, #tpu.memory_space<vmem>>, vector<1x128xf32>
    %c0_3 = arith.constant 0 : index
    %c0_4 = arith.constant 0 : index
    %2 = vector.load %arg4[%c0_3, %c0_4] : memref<1x128xf32, #tpu.memory_space<vmem>>, vector<1x128xf32>
    %cst = arith.constant dense<0.000000e+00> : vector<16xf32>
    %3 = vector.multi_reduction <add>, %0, %cst [1] : vector<16x128xf32> to vector<16xf32>
    %4 = vector.shape_cast %3 : vector<16xf32> to vector<16x1xf32>
    %cst_5 = arith.constant 1.280000e+02 : f32
    %5 = vector.broadcast %cst_5 : f32 to vector<16x1xf32>
    %6 = arith.divf %4, %5 : vector<16x1xf32>
    %7 = vector.broadcast %6 : vector<16x1xf32> to vector<16x128xf32>
    %8 = arith.subf %0, %7 : vector<16x128xf32>
    %9 = arith.mulf %8, %8 : vector<16x128xf32>
    %cst_6 = arith.constant dense<0.000000e+00> : vector<16xf32>
    %10 = vector.multi_reduction <add>, %9, %cst_6 [1] : vector<16x128xf32> to vector<16xf32>
    %11 = vector.shape_cast %10 : vector<16xf32> to vector<16x1xf32>
    %cst_7 = arith.constant 1.280000e+02 : f32
    %12 = vector.broadcast %cst_7 : f32 to vector<16x1xf32>
    %13 = arith.divf %11, %12 : vector<16x1xf32>
    %14 = vector.broadcast %6 : vector<16x1xf32> to vector<16x128xf32>
    %15 = arith.subf %0, %14 : vector<16x128xf32>
    %cst_8 = arith.constant 9.99999996E-13 : f32
    %16 = vector.broadcast %cst_8 : f32 to vector<16x1xf32>
    %17 = arith.addf %13, %16 : vector<16x1xf32>
    %18 = math.rsqrt %17 : vector<16x1xf32>
    %19 = vector.broadcast %18 : vector<16x1xf32> to vector<16x128xf32>
    %20 = arith.mulf %15, %19 : vector<16x128xf32>
    %21 = vector.broadcast %1 : vector<1x128xf32> to vector<16x128xf32>
    %22 = arith.mulf %20, %21 : vector<16x128xf32>
    %23 = vector.broadcast %2 : vector<1x128xf32> to vector<16x128xf32>
    %24 = arith.addf %22, %23 : vector<16x128xf32>
    %c0_9 = arith.constant 0 : index
    %c0_10 = arith.constant 0 : index
    %25 = vector.load %arg2[%c0_9, %c0_10] : memref<32x32xf32, #tpu.memory_space<vmem>>, vector<32x32xf32>
    %c0_11 = arith.constant 0 : index
    %c0_12 = arith.constant 0 : index
    %c0_13 = arith.constant 0 : index
    %26 = vector.load %arg5[%c0_11, %c0_12, %c0_13] : memref<2x128x768xbf16, #tpu.memory_space<vmem>>, vector<1x128x768xbf16>
    %27 = vector.shape_cast %26 : vector<1x128x768xbf16> to vector<128x768xbf16>
    %28 = arith.truncf %24 : vector<16x128xf32> to vector<16x128xbf16>
    %cst_14 = arith.constant dense<0.000000e+00> : vector<16x768xf32>
    %29 = tpu.matmul %28, %27, %cst_14 {dimension_numbers = #tpu.dot_dimension_numbers<[1], [0], [0], [1], [0, 0, 1, 1], [], []>} : vector<16x128xbf16>, vector<128x768xbf16>, vector<16x768xf32> -> vector<16x768xf32>
    %c0_15 = arith.constant 0 : index
    %c0_16 = arith.constant 0 : index
    %c0_17 = arith.constant 0 : index
    %30 = vector.load %arg6[%c0_15, %c0_16, %c0_17] : memref<2x1x768xf32, #tpu.memory_space<vmem>>, vector<1x1x768xf32>
    %31 = vector.shape_cast %30 : vector<1x1x768xf32> to vector<1x768xf32>
    %32 = vector.broadcast %31 : vector<1x768xf32> to vector<16x768xf32>
    %33 = arith.addf %29, %32 : vector<16x768xf32>
    %34 = vector.extract_strided_slice %33 {offsets = [0, 0], sizes = [16, 128], strides = [1, 1]} : vector<16x768xf32> to vector<16x128xf32>
    %35 = vector.extract_strided_slice %33 {offsets = [0, 128], sizes = [16, 128], strides = [1, 1]} : vector<16x768xf32> to vector<16x128xf32>
    %36 = tpu.concatenate %34, %35 in 0 : vector<16x128xf32>, vector<16x128xf32> -> vector<32x128xf32>
    %37 = arith.truncf %36 : vector<32x128xf32> to vector<32x128xbf16>
    %38 = vector.extract_strided_slice %33 {offsets = [0, 256], sizes = [16, 128], strides = [1, 1]} : vector<16x768xf32> to vector<16x128xf32>
    %39 = vector.extract_strided_slice %33 {offsets = [0, 384], sizes = [16, 128], strides = [1, 1]} : vector<16x768xf32> to vector<16x128xf32>
    %40 = tpu.concatenate %38, %39 in 0 : vector<16x128xf32>, vector<16x128xf32> -> vector<32x128xf32>
    %41 = arith.truncf %40 : vector<32x128xf32> to vector<32x128xbf16>
    %42 = vector.extract_strided_slice %33 {offsets = [0, 512], sizes = [16, 128], strides = [1, 1]} : vector<16x768xf32> to vector<16x128xf32>
    %43 = vector.extract_strided_slice %33 {offsets = [0, 640], sizes = [16, 128], strides = [1, 1]} : vector<16x768xf32> to vector<16x128xf32>
    %44 = tpu.concatenate %42, %43 in 0 : vector<16x128xf32>, vector<16x128xf32> -> vector<32x128xf32>
    %45 = arith.truncf %44 : vector<32x128xf32> to vector<32x128xbf16>
    %cst_18 = arith.constant dense<0.000000e+00> : vector<32x32xf32>
    %46 = tpu.matmul %37, %41, %cst_18 {dimension_numbers = #tpu.dot_dimension_numbers<[1], [1], [0], [0], [0, 0, 1, 0], [], []>} : vector<32x128xbf16>, vector<32x128xbf16>, vector<32x32xf32> -> vector<32x32xf32>
    %47 = arith.addf %46, %25 : vector<32x32xf32>
    %cst_19 = arith.constant dense<0xFF800000> : vector<32xf32>
    %48 = vector.multi_reduction <maximumf>, %47, %cst_19 [1] : vector<32x32xf32> to vector<32xf32>
    %49 = vector.shape_cast %48 : vector<32xf32> to vector<32x1xf32>
    %50 = vector.broadcast %49 : vector<32x1xf32> to vector<32x32xf32>
    %51 = arith.subf %47, %50 : vector<32x32xf32>
    %52 = math.exp %51 : vector<32x32xf32>
    %cst_20 = arith.constant dense<0.000000e+00> : vector<32xf32>
    %53 = vector.multi_reduction <add>, %52, %cst_20 [1] : vector<32x32xf32> to vector<32xf32>
    %54 = vector.shape_cast %53 : vector<32xf32> to vector<32x1xf32>
    %55 = tpu.reciprocal %54 {approx = true} : vector<32x1xf32> -> vector<32x1xf32>
    %56 = vector.broadcast %55 : vector<32x1xf32> to vector<32x32xf32>
    %57 = arith.mulf %52, %56 : vector<32x32xf32>
    %58 = arith.truncf %57 : vector<32x32xf32> to vector<32x32xbf16>
    %cst_21 = arith.constant dense<0.000000e+00> : vector<32x128xf32>
    %59 = tpu.matmul %58, %45, %cst_21 {dimension_numbers = #tpu.dot_dimension_numbers<[1], [0], [0], [1], [0, 0, 1, 1], [], []>} : vector<32x32xbf16>, vector<32x128xbf16>, vector<32x128xf32> -> vector<32x128xf32>
    %60 = vector.extract_strided_slice %59 {offsets = [0, 0], sizes = [16, 128], strides = [1, 1]} : vector<32x128xf32> to vector<16x128xf32>
    %61 = vector.extract_strided_slice %59 {offsets = [16, 0], sizes = [16, 128], strides = [1, 1]} : vector<32x128xf32> to vector<16x128xf32>
    %62 = tpu.concatenate %60, %61 in 1 : vector<16x128xf32>, vector<16x128xf32> -> vector<16x256xf32>
    %c0_22 = arith.constant 0 : index
    %c0_23 = arith.constant 0 : index
    %c0_24 = arith.constant 0 : index
    %63 = vector.load %arg7[%c0_22, %c0_23, %c0_24] : memref<2x256x128xbf16, #tpu.memory_space<vmem>>, vector<1x256x128xbf16>
    %64 = vector.shape_cast %63 : vector<1x256x128xbf16> to vector<256x128xbf16>
    %65 = arith.truncf %62 : vector<16x256xf32> to vector<16x256xbf16>
    %cst_25 = arith.constant dense<0.000000e+00> : vector<16x128xf32>
    %66 = tpu.matmul %65, %64, %cst_25 {dimension_numbers = #tpu.dot_dimension_numbers<[1], [0], [0], [1], [0, 0, 1, 1], [], []>} : vector<16x256xbf16>, vector<256x128xbf16>, vector<16x128xf32> -> vector<16x128xf32>
    %c0_26 = arith.constant 0 : index
    %c0_27 = arith.constant 0 : index
    %c0_28 = arith.constant 0 : index
    %67 = vector.load %arg8[%c0_26, %c0_27, %c0_28] : memref<2x1x128xf32, #tpu.memory_space<vmem>>, vector<1x1x128xf32>
    %68 = vector.shape_cast %67 : vector<1x1x128xf32> to vector<1x128xf32>
    %69 = vector.broadcast %68 : vector<1x128xf32> to vector<16x128xf32>
    %70 = arith.addf %66, %69 : vector<16x128xf32>
    %71 = arith.addf %70, %24 : vector<16x128xf32>
    %c0_29 = arith.constant 0 : index
    %c0_30 = arith.constant 0 : index
    %c0_31 = arith.constant 0 : index
    %72 = vector.load %arg9[%c0_29, %c0_30, %c0_31] : memref<2x1x128xf32, #tpu.memory_space<vmem>>, vector<1x1x128xf32>
    %73 = vector.shape_cast %72 : vector<1x1x128xf32> to vector<1x128xf32>
    %c0_32 = arith.constant 0 : index
    %c0_33 = arith.constant 0 : index
    %c0_34 = arith.constant 0 : index
    %74 = vector.load %arg10[%c0_32, %c0_33, %c0_34] : memref<2x1x128xf32, #tpu.memory_space<vmem>>, vector<1x1x128xf32>
    %75 = vector.shape_cast %74 : vector<1x1x128xf32> to vector<1x128xf32>
    %cst_35 = arith.constant dense<0.000000e+00> : vector<16xf32>
    %76 = vector.multi_reduction <add>, %71, %cst_35 [1] : vector<16x128xf32> to vector<16xf32>
    %77 = vector.shape_cast %76 : vector<16xf32> to vector<16x1xf32>
    %cst_36 = arith.constant 1.280000e+02 : f32
    %78 = vector.broadcast %cst_36 : f32 to vector<16x1xf32>
    %79 = arith.divf %77, %78 : vector<16x1xf32>
    %80 = vector.broadcast %79 : vector<16x1xf32> to vector<16x128xf32>
    %81 = arith.subf %71, %80 : vector<16x128xf32>
    %82 = arith.mulf %81, %81 : vector<16x128xf32>
    %cst_37 = arith.constant dense<0.000000e+00> : vector<16xf32>
    %83 = vector.multi_reduction <add>, %82, %cst_37 [1] : vector<16x128xf32> to vector<16xf32>
    %84 = vector.shape_cast %83 : vector<16xf32> to vector<16x1xf32>
    %cst_38 = arith.constant 1.280000e+02 : f32
    %85 = vector.broadcast %cst_38 : f32 to vector<16x1xf32>
    %86 = arith.divf %84, %85 : vector<16x1xf32>
    %87 = vector.broadcast %79 : vector<16x1xf32> to vector<16x128xf32>
    %88 = arith.subf %71, %87 : vector<16x128xf32>
    %cst_39 = arith.constant 9.99999996E-13 : f32
    %89 = vector.broadcast %cst_39 : f32 to vector<16x1xf32>
    %90 = arith.addf %86, %89 : vector<16x1xf32>
    %91 = math.rsqrt %90 : vector<16x1xf32>
    %92 = vector.broadcast %91 : vector<16x1xf32> to vector<16x128xf32>
    %93 = arith.mulf %88, %92 : vector<16x128xf32>
    %94 = vector.broadcast %73 : vector<1x128xf32> to vector<16x128xf32>
    %95 = arith.mulf %93, %94 : vector<16x128xf32>
    %96 = vector.broadcast %75 : vector<1x128xf32> to vector<16x128xf32>
    %97 = arith.addf %95, %96 : vector<16x128xf32>
    %c0_40 = arith.constant 0 : index
    %c0_41 = arith.constant 0 : index
    %c0_42 = arith.constant 0 : index
    %98 = vector.load %arg11[%c0_40, %c0_41, %c0_42] : memref<2x128x256xbf16, #tpu.memory_space<vmem>>, vector<1x128x256xbf16>
    %99 = vector.shape_cast %98 : vector<1x128x256xbf16> to vector<128x256xbf16>
    %100 = arith.truncf %97 : vector<16x128xf32> to vector<16x128xbf16>
    %cst_43 = arith.constant dense<0.000000e+00> : vector<16x256xf32>
    %101 = tpu.matmul %100, %99, %cst_43 {dimension_numbers = #tpu.dot_dimension_numbers<[1], [0], [0], [1], [0, 0, 1, 1], [], []>} : vector<16x128xbf16>, vector<128x256xbf16>, vector<16x256xf32> -> vector<16x256xf32>
    %c0_44 = arith.constant 0 : index
    %c0_45 = arith.constant 0 : index
    %c0_46 = arith.constant 0 : index
    %102 = vector.load %arg12[%c0_44, %c0_45, %c0_46] : memref<2x1x256xf32, #tpu.memory_space<vmem>>, vector<1x1x256xf32>
    %103 = vector.shape_cast %102 : vector<1x1x256xf32> to vector<1x256xf32>
    %104 = vector.broadcast %103 : vector<1x256xf32> to vector<16x256xf32>
    %105 = arith.addf %101, %104 : vector<16x256xf32>
    %106 = arith.mulf %105, %105 : vector<16x256xf32>
    %107 = arith.mulf %105, %106 : vector<16x256xf32>
    %cst_47 = arith.constant 4.471500e-02 : f32
    %108 = vector.broadcast %cst_47 : f32 to vector<16x256xf32>
    %109 = arith.mulf %108, %107 : vector<16x256xf32>
    %110 = arith.addf %105, %109 : vector<16x256xf32>
    %cst_48 = arith.constant 0.797884583 : f32
    %111 = vector.broadcast %cst_48 : f32 to vector<16x256xf32>
    %112 = arith.mulf %111, %110 : vector<16x256xf32>
    %113 = math.tanh %112 : vector<16x256xf32>
    %cst_49 = arith.constant 1.000000e+00 : f32
    %114 = vector.broadcast %cst_49 : f32 to vector<16x256xf32>
    %115 = arith.addf %114, %113 : vector<16x256xf32>
    %cst_50 = arith.constant 5.000000e-01 : f32
    %116 = vector.broadcast %cst_50 : f32 to vector<16x256xf32>
    %117 = arith.mulf %116, %115 : vector<16x256xf32>
    %118 = arith.mulf %105, %117 : vector<16x256xf32>
    %c0_51 = arith.constant 0 : index
    %c0_52 = arith.constant 0 : index
    %c0_53 = arith.constant 0 : index
    %119 = vector.load %arg13[%c0_51, %c0_52, %c0_53] : memref<2x256x128xbf16, #tpu.memory_space<vmem>>, vector<1x256x128xbf16>
    %120 = vector.shape_cast %119 : vector<1x256x128xbf16> to vector<256x128xbf16>
    %121 = arith.truncf %118 : vector<16x256xf32> to vector<16x256xbf16>
    %cst_54 = arith.constant dense<0.000000e+00> : vector<16x128xf32>
    %122 = tpu.matmul %121, %120, %cst_54 {dimension_numbers = #tpu.dot_dimension_numbers<[1], [0], [0], [1], [0, 0, 1, 1], [], []>} : vector<16x256xbf16>, vector<256x128xbf16>, vector<16x128xf32> -> vector<16x128xf32>
    %c0_55 = arith.constant 0 : index
    %c0_56 = arith.constant 0 : index
    %c0_57 = arith.constant 0 : index
    %123 = vector.load %arg14[%c0_55, %c0_56, %c0_57] : memref<2x1x128xf32, #tpu.memory_space<vmem>>, vector<1x1x128xf32>
    %124 = vector.shape_cast %123 : vector<1x1x128xf32> to vector<1x128xf32>
    %125 = vector.broadcast %124 : vector<1x128xf32> to vector<16x128xf32>
    %126 = arith.addf %122, %125 : vector<16x128xf32>
    %127 = arith.addf %126, %97 : vector<16x128xf32>
    %c0_58 = arith.constant 0 : index
    %c0_59 = arith.constant 0 : index
    %c0_60 = arith.constant 0 : index
    %128 = vector.load %arg15[%c0_58, %c0_59, %c0_60] : memref<2x1x128xf32, #tpu.memory_space<vmem>>, vector<1x1x128xf32>
    %129 = vector.shape_cast %128 : vector<1x1x128xf32> to vector<1x128xf32>
    %c0_61 = arith.constant 0 : index
    %c0_62 = arith.constant 0 : index
    %c0_63 = arith.constant 0 : index
    %130 = vector.load %arg16[%c0_61, %c0_62, %c0_63] : memref<2x1x128xf32, #tpu.memory_space<vmem>>, vector<1x1x128xf32>
    %131 = vector.shape_cast %130 : vector<1x1x128xf32> to vector<1x128xf32>
    %cst_64 = arith.constant dense<0.000000e+00> : vector<16xf32>
    %132 = vector.multi_reduction <add>, %127, %cst_64 [1] : vector<16x128xf32> to vector<16xf32>
    %133 = vector.shape_cast %132 : vector<16xf32> to vector<16x1xf32>
    %cst_65 = arith.constant 1.280000e+02 : f32
    %134 = vector.broadcast %cst_65 : f32 to vector<16x1xf32>
    %135 = arith.divf %133, %134 : vector<16x1xf32>
    %136 = vector.broadcast %135 : vector<16x1xf32> to vector<16x128xf32>
    %137 = arith.subf %127, %136 : vector<16x128xf32>
    %138 = arith.mulf %137, %137 : vector<16x128xf32>
    %cst_66 = arith.constant dense<0.000000e+00> : vector<16xf32>
    %139 = vector.multi_reduction <add>, %138, %cst_66 [1] : vector<16x128xf32> to vector<16xf32>
    %140 = vector.shape_cast %139 : vector<16xf32> to vector<16x1xf32>
    %cst_67 = arith.constant 1.280000e+02 : f32
    %141 = vector.broadcast %cst_67 : f32 to vector<16x1xf32>
    %142 = arith.divf %140, %141 : vector<16x1xf32>
    %143 = vector.broadcast %135 : vector<16x1xf32> to vector<16x128xf32>
    %144 = arith.subf %127, %143 : vector<16x128xf32>
    %cst_68 = arith.constant 9.99999996E-13 : f32
    %145 = vector.broadcast %cst_68 : f32 to vector<16x1xf32>
    %146 = arith.addf %142, %145 : vector<16x1xf32>
    %147 = math.rsqrt %146 : vector<16x1xf32>
    %148 = vector.broadcast %147 : vector<16x1xf32> to vector<16x128xf32>
    %149 = arith.mulf %144, %148 : vector<16x128xf32>
    %150 = vector.broadcast %129 : vector<1x128xf32> to vector<16x128xf32>
    %151 = arith.mulf %149, %150 : vector<16x128xf32>
    %152 = vector.broadcast %131 : vector<1x128xf32> to vector<16x128xf32>
    %153 = arith.addf %151, %152 : vector<16x128xf32>
    %c1 = arith.constant 1 : index
    %c0_69 = arith.constant 0 : index
    %c0_70 = arith.constant 0 : index
    %154 = vector.load %arg5[%c1, %c0_69, %c0_70] : memref<2x128x768xbf16, #tpu.memory_space<vmem>>, vector<1x128x768xbf16>
    %155 = vector.shape_cast %154 : vector<1x128x768xbf16> to vector<128x768xbf16>
    %156 = arith.truncf %153 : vector<16x128xf32> to vector<16x128xbf16>
    %cst_71 = arith.constant dense<0.000000e+00> : vector<16x768xf32>
    %157 = tpu.matmul %156, %155, %cst_71 {dimension_numbers = #tpu.dot_dimension_numbers<[1], [0], [0], [1], [0, 0, 1, 1], [], []>} : vector<16x128xbf16>, vector<128x768xbf16>, vector<16x768xf32> -> vector<16x768xf32>
    %c1_72 = arith.constant 1 : index
    %c0_73 = arith.constant 0 : index
    %c0_74 = arith.constant 0 : index
    %158 = vector.load %arg6[%c1_72, %c0_73, %c0_74] : memref<2x1x768xf32, #tpu.memory_space<vmem>>, vector<1x1x768xf32>
    %159 = vector.shape_cast %158 : vector<1x1x768xf32> to vector<1x768xf32>
    %160 = vector.broadcast %159 : vector<1x768xf32> to vector<16x768xf32>
    %161 = arith.addf %157, %160 : vector<16x768xf32>
    %162 = vector.extract_strided_slice %161 {offsets = [0, 0], sizes = [16, 128], strides = [1, 1]} : vector<16x768xf32> to vector<16x128xf32>
    %163 = vector.extract_strided_slice %161 {offsets = [0, 128], sizes = [16, 128], strides = [1, 1]} : vector<16x768xf32> to vector<16x128xf32>
    %164 = tpu.concatenate %162, %163 in 0 : vector<16x128xf32>, vector<16x128xf32> -> vector<32x128xf32>
    %165 = arith.truncf %164 : vector<32x128xf32> to vector<32x128xbf16>
    %166 = vector.extract_strided_slice %161 {offsets = [0, 256], sizes = [16, 128], strides = [1, 1]} : vector<16x768xf32> to vector<16x128xf32>
    %167 = vector.extract_strided_slice %161 {offsets = [0, 384], sizes = [16, 128], strides = [1, 1]} : vector<16x768xf32> to vector<16x128xf32>
    %168 = tpu.concatenate %166, %167 in 0 : vector<16x128xf32>, vector<16x128xf32> -> vector<32x128xf32>
    %169 = arith.truncf %168 : vector<32x128xf32> to vector<32x128xbf16>
    %170 = vector.extract_strided_slice %161 {offsets = [0, 512], sizes = [16, 128], strides = [1, 1]} : vector<16x768xf32> to vector<16x128xf32>
    %171 = vector.extract_strided_slice %161 {offsets = [0, 640], sizes = [16, 128], strides = [1, 1]} : vector<16x768xf32> to vector<16x128xf32>
    %172 = tpu.concatenate %170, %171 in 0 : vector<16x128xf32>, vector<16x128xf32> -> vector<32x128xf32>
    %173 = arith.truncf %172 : vector<32x128xf32> to vector<32x128xbf16>
    %cst_75 = arith.constant dense<0.000000e+00> : vector<32x32xf32>
    %174 = tpu.matmul %165, %169, %cst_75 {dimension_numbers = #tpu.dot_dimension_numbers<[1], [1], [0], [0], [0, 0, 1, 0], [], []>} : vector<32x128xbf16>, vector<32x128xbf16>, vector<32x32xf32> -> vector<32x32xf32>
    %175 = arith.addf %174, %25 : vector<32x32xf32>
    %cst_76 = arith.constant dense<0xFF800000> : vector<32xf32>
    %176 = vector.multi_reduction <maximumf>, %175, %cst_76 [1] : vector<32x32xf32> to vector<32xf32>
    %177 = vector.shape_cast %176 : vector<32xf32> to vector<32x1xf32>
    %178 = vector.broadcast %177 : vector<32x1xf32> to vector<32x32xf32>
    %179 = arith.subf %175, %178 : vector<32x32xf32>
    %180 = math.exp %179 : vector<32x32xf32>
    %cst_77 = arith.constant dense<0.000000e+00> : vector<32xf32>
    %181 = vector.multi_reduction <add>, %180, %cst_77 [1] : vector<32x32xf32> to vector<32xf32>
    %182 = vector.shape_cast %181 : vector<32xf32> to vector<32x1xf32>
    %183 = tpu.reciprocal %182 {approx = true} : vector<32x1xf32> -> vector<32x1xf32>
    %184 = vector.broadcast %183 : vector<32x1xf32> to vector<32x32xf32>
    %185 = arith.mulf %180, %184 : vector<32x32xf32>
    %186 = arith.truncf %185 : vector<32x32xf32> to vector<32x32xbf16>
    %cst_78 = arith.constant dense<0.000000e+00> : vector<32x128xf32>
    %187 = tpu.matmul %186, %173, %cst_78 {dimension_numbers = #tpu.dot_dimension_numbers<[1], [0], [0], [1], [0, 0, 1, 1], [], []>} : vector<32x32xbf16>, vector<32x128xbf16>, vector<32x128xf32> -> vector<32x128xf32>
    %188 = vector.extract_strided_slice %187 {offsets = [0, 0], sizes = [16, 128], strides = [1, 1]} : vector<32x128xf32> to vector<16x128xf32>
    %189 = vector.extract_strided_slice %187 {offsets = [16, 0], sizes = [16, 128], strides = [1, 1]} : vector<32x128xf32> to vector<16x128xf32>
    %190 = tpu.concatenate %188, %189 in 1 : vector<16x128xf32>, vector<16x128xf32> -> vector<16x256xf32>
    %c1_79 = arith.constant 1 : index
    %c0_80 = arith.constant 0 : index
    %c0_81 = arith.constant 0 : index
    %191 = vector.load %arg7[%c1_79, %c0_80, %c0_81] : memref<2x256x128xbf16, #tpu.memory_space<vmem>>, vector<1x256x128xbf16>
    %192 = vector.shape_cast %191 : vector<1x256x128xbf16> to vector<256x128xbf16>
    %193 = arith.truncf %190 : vector<16x256xf32> to vector<16x256xbf16>
    %cst_82 = arith.constant dense<0.000000e+00> : vector<16x128xf32>
    %194 = tpu.matmul %193, %192, %cst_82 {dimension_numbers = #tpu.dot_dimension_numbers<[1], [0], [0], [1], [0, 0, 1, 1], [], []>} : vector<16x256xbf16>, vector<256x128xbf16>, vector<16x128xf32> -> vector<16x128xf32>
    %c1_83 = arith.constant 1 : index
    %c0_84 = arith.constant 0 : index
    %c0_85 = arith.constant 0 : index
    %195 = vector.load %arg8[%c1_83, %c0_84, %c0_85] : memref<2x1x128xf32, #tpu.memory_space<vmem>>, vector<1x1x128xf32>
    %196 = vector.shape_cast %195 : vector<1x1x128xf32> to vector<1x128xf32>
    %197 = vector.broadcast %196 : vector<1x128xf32> to vector<16x128xf32>
    %198 = arith.addf %194, %197 : vector<16x128xf32>
    %199 = arith.addf %198, %153 : vector<16x128xf32>
    %c1_86 = arith.constant 1 : index
    %c0_87 = arith.constant 0 : index
    %c0_88 = arith.constant 0 : index
    %200 = vector.load %arg9[%c1_86, %c0_87, %c0_88] : memref<2x1x128xf32, #tpu.memory_space<vmem>>, vector<1x1x128xf32>
    %201 = vector.shape_cast %200 : vector<1x1x128xf32> to vector<1x128xf32>
    %c1_89 = arith.constant 1 : index
    %c0_90 = arith.constant 0 : index
    %c0_91 = arith.constant 0 : index
    %202 = vector.load %arg10[%c1_89, %c0_90, %c0_91] : memref<2x1x128xf32, #tpu.memory_space<vmem>>, vector<1x1x128xf32>
    %203 = vector.shape_cast %202 : vector<1x1x128xf32> to vector<1x128xf32>
    %cst_92 = arith.constant dense<0.000000e+00> : vector<16xf32>
    %204 = vector.multi_reduction <add>, %199, %cst_92 [1] : vector<16x128xf32> to vector<16xf32>
    %205 = vector.shape_cast %204 : vector<16xf32> to vector<16x1xf32>
    %cst_93 = arith.constant 1.280000e+02 : f32
    %206 = vector.broadcast %cst_93 : f32 to vector<16x1xf32>
    %207 = arith.divf %205, %206 : vector<16x1xf32>
    %208 = vector.broadcast %207 : vector<16x1xf32> to vector<16x128xf32>
    %209 = arith.subf %199, %208 : vector<16x128xf32>
    %210 = arith.mulf %209, %209 : vector<16x128xf32>
    %cst_94 = arith.constant dense<0.000000e+00> : vector<16xf32>
    %211 = vector.multi_reduction <add>, %210, %cst_94 [1] : vector<16x128xf32> to vector<16xf32>
    %212 = vector.shape_cast %211 : vector<16xf32> to vector<16x1xf32>
    %cst_95 = arith.constant 1.280000e+02 : f32
    %213 = vector.broadcast %cst_95 : f32 to vector<16x1xf32>
    %214 = arith.divf %212, %213 : vector<16x1xf32>
    %215 = vector.broadcast %207 : vector<16x1xf32> to vector<16x128xf32>
    %216 = arith.subf %199, %215 : vector<16x128xf32>
    %cst_96 = arith.constant 9.99999996E-13 : f32
    %217 = vector.broadcast %cst_96 : f32 to vector<16x1xf32>
    %218 = arith.addf %214, %217 : vector<16x1xf32>
    %219 = math.rsqrt %218 : vector<16x1xf32>
    %220 = vector.broadcast %219 : vector<16x1xf32> to vector<16x128xf32>
    %221 = arith.mulf %216, %220 : vector<16x128xf32>
    %222 = vector.broadcast %201 : vector<1x128xf32> to vector<16x128xf32>
    %223 = arith.mulf %221, %222 : vector<16x128xf32>
    %224 = vector.broadcast %203 : vector<1x128xf32> to vector<16x128xf32>
    %225 = arith.addf %223, %224 : vector<16x128xf32>
    %c1_97 = arith.constant 1 : index
    %c0_98 = arith.constant 0 : index
    %c0_99 = arith.constant 0 : index
    %226 = vector.load %arg11[%c1_97, %c0_98, %c0_99] : memref<2x128x256xbf16, #tpu.memory_space<vmem>>, vector<1x128x256xbf16>
    %227 = vector.shape_cast %226 : vector<1x128x256xbf16> to vector<128x256xbf16>
    %228 = arith.truncf %225 : vector<16x128xf32> to vector<16x128xbf16>
    %cst_100 = arith.constant dense<0.000000e+00> : vector<16x256xf32>
    %229 = tpu.matmul %228, %227, %cst_100 {dimension_numbers = #tpu.dot_dimension_numbers<[1], [0], [0], [1], [0, 0, 1, 1], [], []>} : vector<16x128xbf16>, vector<128x256xbf16>, vector<16x256xf32> -> vector<16x256xf32>
    %c1_101 = arith.constant 1 : index
    %c0_102 = arith.constant 0 : index
    %c0_103 = arith.constant 0 : index
    %230 = vector.load %arg12[%c1_101, %c0_102, %c0_103] : memref<2x1x256xf32, #tpu.memory_space<vmem>>, vector<1x1x256xf32>
    %231 = vector.shape_cast %230 : vector<1x1x256xf32> to vector<1x256xf32>
    %232 = vector.broadcast %231 : vector<1x256xf32> to vector<16x256xf32>
    %233 = arith.addf %229, %232 : vector<16x256xf32>
    %234 = arith.mulf %233, %233 : vector<16x256xf32>
    %235 = arith.mulf %233, %234 : vector<16x256xf32>
    %cst_104 = arith.constant 4.471500e-02 : f32
    %236 = vector.broadcast %cst_104 : f32 to vector<16x256xf32>
    %237 = arith.mulf %236, %235 : vector<16x256xf32>
    %238 = arith.addf %233, %237 : vector<16x256xf32>
    %cst_105 = arith.constant 0.797884583 : f32
    %239 = vector.broadcast %cst_105 : f32 to vector<16x256xf32>
    %240 = arith.mulf %239, %238 : vector<16x256xf32>
    %241 = math.tanh %240 : vector<16x256xf32>
    %cst_106 = arith.constant 1.000000e+00 : f32
    %242 = vector.broadcast %cst_106 : f32 to vector<16x256xf32>
    %243 = arith.addf %242, %241 : vector<16x256xf32>
    %cst_107 = arith.constant 5.000000e-01 : f32
    %244 = vector.broadcast %cst_107 : f32 to vector<16x256xf32>
    %245 = arith.mulf %244, %243 : vector<16x256xf32>
    %246 = arith.mulf %233, %245 : vector<16x256xf32>
    %c1_108 = arith.constant 1 : index
    %c0_109 = arith.constant 0 : index
    %c0_110 = arith.constant 0 : index
    %247 = vector.load %arg13[%c1_108, %c0_109, %c0_110] : memref<2x256x128xbf16, #tpu.memory_space<vmem>>, vector<1x256x128xbf16>
    %248 = vector.shape_cast %247 : vector<1x256x128xbf16> to vector<256x128xbf16>
    %249 = arith.truncf %246 : vector<16x256xf32> to vector<16x256xbf16>
    %cst_111 = arith.constant dense<0.000000e+00> : vector<16x128xf32>
    %250 = tpu.matmul %249, %248, %cst_111 {dimension_numbers = #tpu.dot_dimension_numbers<[1], [0], [0], [1], [0, 0, 1, 1], [], []>} : vector<16x256xbf16>, vector<256x128xbf16>, vector<16x128xf32> -> vector<16x128xf32>
    %c1_112 = arith.constant 1 : index
    %c0_113 = arith.constant 0 : index
    %c0_114 = arith.constant 0 : index
    %251 = vector.load %arg14[%c1_112, %c0_113, %c0_114] : memref<2x1x128xf32, #tpu.memory_space<vmem>>, vector<1x1x128xf32>
    %252 = vector.shape_cast %251 : vector<1x1x128xf32> to vector<1x128xf32>
    %253 = vector.broadcast %252 : vector<1x128xf32> to vector<16x128xf32>
    %254 = arith.addf %250, %253 : vector<16x128xf32>
    %255 = arith.addf %254, %225 : vector<16x128xf32>
    %c1_115 = arith.constant 1 : index
    %c0_116 = arith.constant 0 : index
    %c0_117 = arith.constant 0 : index
    %256 = vector.load %arg15[%c1_115, %c0_116, %c0_117] : memref<2x1x128xf32, #tpu.memory_space<vmem>>, vector<1x1x128xf32>
    %257 = vector.shape_cast %256 : vector<1x1x128xf32> to vector<1x128xf32>
    %c1_118 = arith.constant 1 : index
    %c0_119 = arith.constant 0 : index
    %c0_120 = arith.constant 0 : index
    %258 = vector.load %arg16[%c1_118, %c0_119, %c0_120] : memref<2x1x128xf32, #tpu.memory_space<vmem>>, vector<1x1x128xf32>
    %259 = vector.shape_cast %258 : vector<1x1x128xf32> to vector<1x128xf32>
    %cst_121 = arith.constant dense<0.000000e+00> : vector<16xf32>
    %260 = vector.multi_reduction <add>, %255, %cst_121 [1] : vector<16x128xf32> to vector<16xf32>
    %261 = vector.shape_cast %260 : vector<16xf32> to vector<16x1xf32>
    %cst_122 = arith.constant 1.280000e+02 : f32
    %262 = vector.broadcast %cst_122 : f32 to vector<16x1xf32>
    %263 = arith.divf %261, %262 : vector<16x1xf32>
    %264 = vector.broadcast %263 : vector<16x1xf32> to vector<16x128xf32>
    %265 = arith.subf %255, %264 : vector<16x128xf32>
    %266 = arith.mulf %265, %265 : vector<16x128xf32>
    %cst_123 = arith.constant dense<0.000000e+00> : vector<16xf32>
    %267 = vector.multi_reduction <add>, %266, %cst_123 [1] : vector<16x128xf32> to vector<16xf32>
    %268 = vector.shape_cast %267 : vector<16xf32> to vector<16x1xf32>
    %cst_124 = arith.constant 1.280000e+02 : f32
    %269 = vector.broadcast %cst_124 : f32 to vector<16x1xf32>
    %270 = arith.divf %268, %269 : vector<16x1xf32>
    %271 = vector.broadcast %263 : vector<16x1xf32> to vector<16x128xf32>
    %272 = arith.subf %255, %271 : vector<16x128xf32>
    %cst_125 = arith.constant 9.99999996E-13 : f32
    %273 = vector.broadcast %cst_125 : f32 to vector<16x1xf32>
    %274 = arith.addf %270, %273 : vector<16x1xf32>
    %275 = math.rsqrt %274 : vector<16x1xf32>
    %276 = vector.broadcast %275 : vector<16x1xf32> to vector<16x128xf32>
    %277 = arith.mulf %272, %276 : vector<16x128xf32>
    %278 = vector.broadcast %257 : vector<1x128xf32> to vector<16x128xf32>
    %279 = arith.mulf %277, %278 : vector<16x128xf32>
    %280 = vector.broadcast %259 : vector<1x128xf32> to vector<16x128xf32>
    %281 = arith.addf %279, %280 : vector<16x128xf32>
    %c0_126 = arith.constant 0 : index
    %c0_127 = arith.constant 0 : index
    %282 = vector.load %arg17[%c0_126, %c0_127] : memref<128x128xbf16, #tpu.memory_space<vmem>>, vector<128x128xbf16>
    %283 = arith.truncf %281 : vector<16x128xf32> to vector<16x128xbf16>
    %cst_128 = arith.constant dense<0.000000e+00> : vector<16x128xf32>
    %284 = tpu.matmul %283, %282, %cst_128 {dimension_numbers = #tpu.dot_dimension_numbers<[1], [0], [0], [1], [0, 0, 1, 1], [], []>} : vector<16x128xbf16>, vector<128x128xbf16>, vector<16x128xf32> -> vector<16x128xf32>
    %c0_129 = arith.constant 0 : index
    %c0_130 = arith.constant 0 : index
    %285 = vector.load %arg18[%c0_129, %c0_130] : memref<1x128xf32, #tpu.memory_space<vmem>>, vector<1x128xf32>
    %286 = vector.broadcast %285 : vector<1x128xf32> to vector<16x128xf32>
    %287 = arith.addf %284, %286 : vector<16x128xf32>
    %c0_131 = arith.constant 0 : index
    %c0_132 = arith.constant 0 : index
    %288 = vector.load %arg19[%c0_131, %c0_132] : memref<16x128xf32, #tpu.memory_space<vmem>>, vector<16x128xf32>
    tpu.vector_store %arg19[%c0_131, %c0_132], %287 {strides = array<i32>} : memref<16x128xf32, #tpu.memory_space<vmem>>, vector<16x128xf32>,
    return
  }
  func.func @transform_0(%arg0: i32) -> (i32, i32) {
    %c0_i32 = arith.constant 0 : i32
    %c0_i32_0 = arith.constant 0 : i32
    return %arg0, %c0_i32 : i32, i32
  }
  func.func @transform_1(%arg0: i32) -> (i32, i32) {
    %c0_i32 = arith.constant 0 : i32
    %c0_i32_0 = arith.constant 0 : i32
    return %arg0, %c0_i32 : i32, i32
  }
  func.func @transform_2(%arg0: i32) -> (i32, i32) {
    %c0_i32 = arith.constant 0 : i32
    %c0_i32_0 = arith.constant 0 : i32
    %c0_i32_1 = arith.constant 0 : i32
    return %c0_i32, %c0_i32_0 : i32, i32
  }
  func.func @transform_3(%arg0: i32) -> (i32, i32) {
    %c0_i32 = arith.constant 0 : i32
    %c0_i32_0 = arith.constant 0 : i32
    %c0_i32_1 = arith.constant 0 : i32
    return %c0_i32, %c0_i32_0 : i32, i32
  }
  func.func @transform_4(%arg0: i32) -> (i32, i32, i32) {
    %c0_i32 = arith.constant 0 : i32
    %c0_i32_0 = arith.constant 0 : i32
    %c0_i32_1 = arith.constant 0 : i32
    %c0_i32_2 = arith.constant 0 : i32
    return %c0_i32, %c0_i32_0, %c0_i32_1 : i32, i32, i32
  }
  func.func @transform_5(%arg0: i32) -> (i32, i32, i32) {
    %c0_i32 = arith.constant 0 : i32
    %c0_i32_0 = arith.constant 0 : i32
    %c0_i32_1 = arith.constant 0 : i32
    %c0_i32_2 = arith.constant 0 : i32
    return %c0_i32, %c0_i32_0, %c0_i32_1 : i32, i32, i32
  }
  func.func @transform_6(%arg0: i32) -> (i32, i32, i32) {
    %c0_i32 = arith.constant 0 : i32
    %c0_i32_0 = arith.constant 0 : i32
    %c0_i32_1 = arith.constant 0 : i32
    %c0_i32_2 = arith.constant 0 : i32
    return %c0_i32, %c0_i32_0, %c0_i32_1 : i32, i32, i32
  }
  func.func @transform_7(%arg0: i32) -> (i32, i32, i32) {
    %c0_i32 = arith.constant 0 : i32
    %c0_i32_0 = arith.constant 0 : i32
    %c0_i32_1 = arith.constant 0 : i32
    %c0_i32_2 = arith.constant 0 : i32
    return %c0_i32, %c0_i32_0, %c0_i32_1 : i32, i32, i32
  }
  func.func @transform_8(%arg0: i32) -> (i32, i32, i32) {
    %c0_i32 = arith.constant 0 : i32
    %c0_i32_0 = arith.constant 0 : i32
    %c0_i32_1 = arith.constant 0 : i32
    %c0_i32_2 = arith.constant 0 : i32
    return %c0_i32, %c0_i32_0, %c0_i32_1 : i32, i32, i32
  }
  func.func @transform_9(%arg0: i32) -> (i32, i32, i32) {
    %c0_i32 = arith.constant 0 : i32
    %c0_i32_0 = arith.constant 0 : i32
    %c0_i32_1 = arith.constant 0 : i32
    %c0_i32_2 = arith.constant 0 : i32
    return %c0_i32, %c0_i32_0, %c0_i32_1 : i32, i32, i32
  }
  func.func @transform_10(%arg0: i32) -> (i32, i32, i32) {
    %c0_i32 = arith.constant 0 : i32
    %c0_i32_0 = arith.constant 0 : i32
    %c0_i32_1 = arith.constant 0 : i32
    %c0_i32_2 = arith.constant 0 : i32
    return %c0_i32, %c0_i32_0, %c0_i32_1 : i32, i32, i32
  }
  func.func @transform_11(%arg0: i32) -> (i32, i32, i32) {
    %c0_i32 = arith.constant 0 : i32
    %c0_i32_0 = arith.constant 0 : i32
    %c0_i32_1 = arith.constant 0 : i32
    %c0_i32_2 = arith.constant 0 : i32
    return %c0_i32, %c0_i32_0, %c0_i32_1 : i32, i32, i32
  }
  func.func @transform_12(%arg0: i32) -> (i32, i32, i32) {
    %c0_i32 = arith.constant 0 : i32
    %c0_i32_0 = arith.constant 0 : i32
    %c0_i32_1 = arith.constant 0 : i32
    %c0_i32_2 = arith.constant 0 : i32
    return %c0_i32, %c0_i32_0, %c0_i32_1 : i32, i32, i32
  }
  func.func @transform_13(%arg0: i32) -> (i32, i32, i32) {
    %c0_i32 = arith.constant 0 : i32
    %c0_i32_0 = arith.constant 0 : i32
    %c0_i32_1 = arith.constant 0 : i32
    %c0_i32_2 = arith.constant 0 : i32
    return %c0_i32, %c0_i32_0, %c0_i32_1 : i32, i32, i32
  }
  func.func @transform_14(%arg0: i32) -> (i32, i32, i32) {
    %c0_i32 = arith.constant 0 : i32
    %c0_i32_0 = arith.constant 0 : i32
    %c0_i32_1 = arith.constant 0 : i32
    %c0_i32_2 = arith.constant 0 : i32
    return %c0_i32, %c0_i32_0, %c0_i32_1 : i32, i32, i32
  }
  func.func @transform_15(%arg0: i32) -> (i32, i32, i32) {
    %c0_i32 = arith.constant 0 : i32
    %c0_i32_0 = arith.constant 0 : i32
    %c0_i32_1 = arith.constant 0 : i32
    %c0_i32_2 = arith.constant 0 : i32
    return %c0_i32, %c0_i32_0, %c0_i32_1 : i32, i32, i32
  }
  func.func @transform_16(%arg0: i32) -> (i32, i32) {
    %c0_i32 = arith.constant 0 : i32
    %c0_i32_0 = arith.constant 0 : i32
    %c0_i32_1 = arith.constant 0 : i32
    return %c0_i32, %c0_i32_0 : i32, i32
  }
  func.func @transform_17(%arg0: i32) -> (i32, i32) {
    %c0_i32 = arith.constant 0 : i32
    %c0_i32_0 = arith.constant 0 : i32
    %c0_i32_1 = arith.constant 0 : i32
    return %c0_i32, %c0_i32_0 : i32, i32
  }
  func.func @transform_18(%arg0: i32) -> (i32, i32) {
    %c0_i32 = arith.constant 0 : i32
    %c0_i32_0 = arith.constant 0 : i32
    return %arg0, %c0_i32 : i32, i32
  }
}

</mosaic_0001>

<llo_original>
// kernel: squeeze.9
$region0: #{squeeze.9}
  %s0 = inlined_call_operand.vmem [shape: f32[32], index: 0, kind: input, shape index: {}]
  %s1 = inlined_call_operand.hbm [shape: f32[2,16,1], index: 1, kind: output, shape index: {}]
  $region1: #{squeeze.9} parent=0
    #allocation0 [shape = 'u8[1024]{0}', space=vmem, size = 0x400, scoped, tag = 'operand span for operand 1']
    #allocation1 [shape = 's32[1]{0}', space=sflag, size = 0x4, scoped, tag = 'scoped memory for squeeze.9']
    #allocation2 [shape = 'u8[4096]{0}', space=vmem, size = 0x1000, scoped, tag = 'scoped mem for output reshape']
    #allocation3 [shape = 'u8[4096]{0}', space=vmem, size = 0x1000, scoped, tag = 'scoped mem for input reshape']
    %2 = vsyncpa [#allocation1], 0
    %s4 = ssub.s32 2, 1
    %v5 = vld [vmem:[%s0] sm:%s4]
    %6 = vst [vmem:[#allocation3] sm:%s4] %v5
    %v7 = vld [vmem:[#allocation3] sm:$0x1]
    %vm8 = vcmask 130048
    %9 = vst.msk [vmem:[#allocation2] sm:$0x1] %vm8, %v7
    %v10 = vld [vmem:[#allocation3] sm:$0x1]
    %11 = vrot.lane.b32.xlu0 %v10, 112
    %v12 = vpop.permute.xlu0 %11
    %vm13 = vcmask 130048
    %s14 = scalar_lea.vmem [#allocation2], 1
    %15 = vst.msk [vmem:[%s14] sm:$0x1] %vm13, %v12
    %s17 = ssub.s32 4, 1
    %v18 = vld [vmem:[#allocation2] sm:%s17]
    %s20 = ssub.s32 4, 1
    %21 = vst [vmem:[#allocation0] sm:%s20] %v18
    %23 = vsyncadd [#allocation1], 0
    %s25 = sshll.u32 [#allocation0], 4
    %s26 = int_to_ptr.vmem [resolvable:$true] %s25
    %s27 = sshll.u32 %s1, 4
    %s28 = int_to_ptr.hbm [resolvable:$true] %s27
    %30 = dma.vmem_to_hbm [thread:$0]  %s26, 32, %s28, [#allocation1]
    %32 = dma.done [#allocation1], 32
    %33 = vsyncpa [#allocation1], 1

// kernel: bertqua_forward.1
$region0: #{bertqua_forward.1}
  #allocation0 [shape = 'u32[]', space=smem, size = 0x4, offset = 0x4, fixed_abs, tag = 'smem constant byte address 0x4 - core index']
  #allocation1 [shape = 'u32[72,128]{1,0:T(1,128)}', space=vmem, size = 0x9000, scoped, tag = 'internal scratch']
  %s0 = inlined_call_operand.vmem [shape: f32[32,128], index: 0, kind: input, shape index: {}]
  %s1 = inlined_call_operand.vmem [shape: f32[64,32], index: 1, kind: input, shape index: {}]
  %s2 = inlined_call_operand.vmem [shape: f32[1,128], index: 2, kind: input, shape index: {}]
  %s3 = inlined_call_operand.vmem [shape: f32[1,128], index: 3, kind: input, shape index: {}]
  %s4 = inlined_call_operand.vmem [shape: bf16[2,128,768], index: 4, kind: input, shape index: {}]
  %s5 = inlined_call_operand.vmem [shape: f32[2,1,768], index: 5, kind: input, shape index: {}]
  %s6 = inlined_call_operand.vmem [shape: bf16[2,256,128], index: 6, kind: input, shape index: {}]
  %s7 = inlined_call_operand.vmem [shape: f32[2,1,128], index: 7, kind: input, shape index: {}]
  %s8 = inlined_call_operand.vmem [shape: f32[2,1,128], index: 8, kind: input, shape index: {}]
  %s9 = inlined_call_operand.vmem [shape: f32[2,1,128], index: 9, kind: input, shape index: {}]
  %s10 = inlined_call_operand.vmem [shape: bf16[2,128,256], index: 10, kind: input, shape index: {}]
  %s11 = inlined_call_operand.vmem [shape: f32[2,1,256], index: 11, kind: input, shape index: {}]
  %s12 = inlined_call_operand.hbm [shape: bf16[2,256,128], index: 12, kind: input, shape index: {}]
  %s13 = inlined_call_operand.vmem [shape: f32[2,1,128], index: 13, kind: input, shape index: {}]
  %s14 = inlined_call_operand.vmem [shape: f32[2,1,128], index: 14, kind: input, shape index: {}]
  %s15 = inlined_call_operand.vmem [shape: f32[2,1,128], index: 15, kind: input, shape index: {}]
  %s16 = inlined_call_operand.hbm [shape: bf16[128,128], index: 16, kind: input, shape index: {}]
  %s17 = inlined_call_operand.vmem [shape: f32[1,128], index: 17, kind: input, shape index: {}]
  %s18 = inlined_call_operand.vmem [shape: f32[32,128], index: 18, kind: output, shape index: {}]
  %s19 = sld [smem:[#allocation0]]
  $region113: #{bertqua_forward.1} parent=0
    _
  %s21 = ssub.s32 1, %s19
  %s22 = scalar_select 0, %s21, %s19
  $region1: #{bertqua_forward.1} parent=0
    #allocation2 [shape = 'u8[131072]{0}', space=vmem, size = 0x20000, scoped, tag = 'input window, operand 12, single buffered']
    #allocation3 [shape = 's32[2]{0}', space=sflag, size = 0x8, scoped, tag = 'scoped memory for bertqua_forward.1']
    #allocation4 [shape = 'u8[32768]{0}', space=vmem, size = 0x8000, scoped, tag = 'input window, operand 16, single buffered']
    #allocation5 [shape = 's32[1]{0}', space=sflag, size = 0x4, scoped, tag = 'scoped memory for bertqua_forward.1']
    %23 = vsyncpa [#allocation3], 0
    %24 = vsyncpa [#allocation5], 0
    loop: start=0, step=1, limit=4
    $region2: #{bertqua_forward.1} parent=1 // loop_pre_header
      _
    $region3: #{bertqua_forward.1} parent=1 // loop_header
      %s26 = sphi 0, %s30
      %p27 = scmp.ge.s32.totalorder %s26, 4
      %s36 = sphi 0, %s38
      %s39 = sphi 0, %s36
      %s40 = sphi 0, %s39
      %s56 = sphi 0, %s40
      %s62 = sphi 0, %s64
      %s65 = sphi 0, %s62
      %s66 = sphi 0, %s65
      %s82 = sphi 0, %s66
      %s86 = sphi 0, %s86
      %s88 = sphi 0, %s86
      %s89 = sphi 0, %s88
      %s103 = sphi 0, %s89
      %s107 = sphi 0, %s107
      %s109 = sphi 0, %s107
      %s110 = sphi 0, %s109
      %s124 = sphi 0, %s110
      %s128 = sphi 0, %s128
      %s130 = sphi 0, %s128
      %s131 = sphi 0, %s130
      %s145 = sphi 0, %s131
      %s149 = sphi 0, %s149
      %s151 = sphi 0, %s149
      %s152 = sphi 0, %s151
      %s166 = sphi 0, %s152
      %s170 = sphi 0, %s170
      %s172 = sphi 0, %s170
      %s173 = sphi 0, %s172
      %s187 = sphi 0, %s173
      %s191 = sphi 0, %s191
      %s193 = sphi 0, %s191
      %s194 = sphi 0, %s193
      %s208 = sphi 0, %s194
      %s212 = sphi 0, %s212
      %s214 = sphi 0, %s212
      %s215 = sphi 0, %s214
      %s229 = sphi 0, %s215
      %s233 = sphi 0, %s233
      %s235 = sphi 0, %s233
      %s236 = sphi 0, %s235
      %s250 = sphi 0, %s236
      %s254 = sphi 0, %s254
      %s256 = sphi 0, %s254
      %s257 = sphi 0, %s256
      %s271 = sphi 0, %s257
      %s275 = sphi 0, %s275
      %s277 = sphi 0, %s275
      %s278 = sphi 0, %s277
      %s292 = sphi 0, %s278
      %s296 = sphi 0, %s296
      %s298 = sphi 0, %s296
      %s299 = sphi 0, %s298
      %s313 = sphi 0, %s299
      %s317 = sphi 0, %s317
      %s319 = sphi 0, %s317
      %s320 = sphi 0, %s319
      %s334 = sphi 0, %s320
      %s338 = sphi 0, %s338
      %s340 = sphi 0, %s338
      %s341 = sphi 0, %s340
      %s355 = sphi 0, %s341
      %s359 = sphi 0, %s359
      %s361 = sphi 0, %s359
      %s362 = sphi 0, %s361
      %s376 = sphi 0, %s362
      %s380 = sphi 0, %s380
      %s382 = sphi 0, %s380
      %s383 = sphi 0, %s382
      %s397 = sphi 0, %s383
      %s401 = sphi 0, %s401
      %s403 = sphi 0, %s401
      %s404 = sphi 0, %s403
      %s418 = sphi 0, %s404
      %s424 = sphi 0, %s426
      %s427 = sphi 0, %s424
      %s428 = sphi 0, %s427
      %s444 = sphi 0, %s428
    $region4: #{bertqua_forward.1} parent=1 // loop_header_branch
      %29 = sbr.rel (%p27) target = $region8
    $region5: #{bertqua_forward.1} parent=1 // loop_body
      %s31 = ssub.s32 %s26, 1
      %s32 = ssub.s32 %s26, 2
      %s33 = sadd.s32 %s26, 1
      %s34 = ssub.s32 %s26, %s33
      %p35 = scmp.eq.s32.totalorder %s34, 0
      %s37 = sadd.s32 %s36, 1
      %s38 = scalar_select %p35, %s36, %s37
      %p41 = pneg %p35
      %p42 = scmp.eq.s32.totalorder %s26, 1
      %p43 = por %p41, %p42
      %p44 = scmp.ne.s32.totalorder %s36, %s39
      %p45 = scmp.eq.s32.totalorder %s26, 0
      %p46 = por %p44, %p45
      %p47 = scmp.ne.s32.totalorder %s36, %s39
      %p48 = scmp.eq.s32.totalorder %s31, 1
      %p49 = por %p47, %p48
      %p50 = scmp.ne.s32.totalorder %s39, %s40
      %p51 = scmp.eq.s32.totalorder %s31, 0
      %p52 = por %p50, %p51
      %p53 = scmp.ne.s32.totalorder %s39, %s40
      %p54 = scmp.eq.s32.totalorder %s32, 1
      %p55 = por %p53, %p54
      %p57 = scmp.ne.s32.totalorder %s40, %s56
      %p58 = scmp.eq.s32.totalorder %s32, 0
      %p59 = por %p57, %p58
      %s60 = ssub.s32 %s26, %s33
      %p61 = scmp.eq.s32.totalorder %s60, 0
      %s63 = sadd.s32 %s62, 1
      %s64 = scalar_select %p61, %s62, %s63
      %p67 = pneg %p61
      %p68 = scmp.eq.s32.totalorder %s26, 1
      %p69 = por %p67, %p68
      %p70 = scmp.ne.s32.totalorder %s62, %s65
      %p71 = scmp.eq.s32.totalorder %s26, 0
      %p72 = por %p70, %p71
      %p73 = scmp.ne.s32.totalorder %s62, %s65
      %p74 = scmp.eq.s32.totalorder %s31, 1
      %p75 = por %p73, %p74
      %p76 = scmp.ne.s32.totalorder %s65, %s66
      %p77 = scmp.eq.s32.totalorder %s31, 0
      %p78 = por %p76, %p77
      %p79 = scmp.ne.s32.totalorder %s65, %s66
      %p80 = scmp.eq.s32.totalorder %s32, 1
      %p81 = por %p79, %p80
      %p83 = scmp.ne.s32.totalorder %s66, %s82
      %p84 = scmp.eq.s32.totalorder %s32, 0
      %p85 = por %p83, %p84
      %s87 = sadd.s32 %s86, 1
      %p90 = scmp.eq.s32.totalorder %s26, 1
      %p91 = scmp.ne.s32.totalorder %s86, %s88
      %p92 = scmp.eq.s32.totalorder %s26, 0
      %p93 = por %p91, %p92
      %p94 = scmp.ne.s32.totalorder %s86, %s88
      %p95 = scmp.eq.s32.totalorder %s31, 1
      %p96 = por %p94, %p95
      %p97 = scmp.ne.s32.totalorder %s88, %s89
      %p98 = scmp.eq.s32.totalorder %s31, 0
      %p99 = por %p97, %p98
      %p100 = scmp.ne.s32.totalorder %s88, %s89
      %p101 = scmp.eq.s32.totalorder %s32, 1
      %p102 = por %p100, %p101
      %p104 = scmp.ne.s32.totalorder %s89, %s103
      %p105 = scmp.eq.s32.totalorder %s32, 0
      %p106 = por %p104, %p105
      %s108 = sadd.s32 %s107, 1
      %p111 = scmp.eq.s32.totalorder %s26, 1
      %p112 = scmp.ne.s32.totalorder %s107, %s109
      %p113 = scmp.eq.s32.totalorder %s26, 0
      %p114 = por %p112, %p113
      %p115 = scmp.ne.s32.totalorder %s107, %s109
      %p116 = scmp.eq.s32.totalorder %s31, 1
      %p117 = por %p115, %p116
      %p118 = scmp.ne.s32.totalorder %s109, %s110
      %p119 = scmp.eq.s32.totalorder %s31, 0
      %p120 = por %p118, %p119
      %p121 = scmp.ne.s32.totalorder %s109, %s110
      %p122 = scmp.eq.s32.totalorder %s32, 1
      %p123 = por %p121, %p122
      %p125 = scmp.ne.s32.totalorder %s110, %s124
      %p126 = scmp.eq.s32.totalorder %s32, 0
      %p127 = por %p125, %p126
      %s129 = sadd.s32 %s128, 1
      %p132 = scmp.eq.s32.totalorder %s26, 1
      %p133 = scmp.ne.s32.totalorder %s128, %s130
      %p134 = scmp.eq.s32.totalorder %s26, 0
      %p135 = por %p133, %p134
      %p136 = scmp.ne.s32.totalorder %s128, %s130
      %p137 = scmp.eq.s32.totalorder %s31, 1
      %p138 = por %p136, %p137
      %p139 = scmp.ne.s32.totalorder %s130, %s131
      %p140 = scmp.eq.s32.totalorder %s31, 0
      %p141 = por %p139, %p140
      %p142 = scmp.ne.s32.totalorder %s130, %s131
      %p143 = scmp.eq.s32.totalorder %s32, 1
      %p144 = por %p142, %p143
      %p146 = scmp.ne.s32.totalorder %s131, %s145
      %p147 = scmp.eq.s32.totalorder %s32, 0
      %p148 = por %p146, %p147
      %s150 = sadd.s32 %s149, 1
      %p153 = scmp.eq.s32.totalorder %s26, 1
      %p154 = scmp.ne.s32.totalorder %s149, %s151
      %p155 = scmp.eq.s32.totalorder %s26, 0
      %p156 = por %p154, %p155
      %p157 = scmp.ne.s32.totalorder %s149, %s151
      %p158 = scmp.eq.s32.totalorder %s31, 1
      %p159 = por %p157, %p158
      %p160 = scmp.ne.s32.totalorder %s151, %s152
      %p161 = scmp.eq.s32.totalorder %s31, 0
      %p162 = por %p160, %p161
      %p163 = scmp.ne.s32.totalorder %s151, %s152
      %p164 = scmp.eq.s32.totalorder %s32, 1
      %p165 = por %p163, %p164
      %p167 = scmp.ne.s32.totalorder %s152, %s166
      %p168 = scmp.eq.s32.totalorder %s32, 0
      %p169 = por %p167, %p168
      %s171 = sadd.s32 %s170, 1
      %p174 = scmp.eq.s32.totalorder %s26, 1
      %p175 = scmp.ne.s32.totalorder %s170, %s172
      %p176 = scmp.eq.s32.totalorder %s26, 0
      %p177 = por %p175, %p176
      %p178 = scmp.ne.s32.totalorder %s170, %s172
      %p179 = scmp.eq.s32.totalorder %s31, 1
      %p180 = por %p178, %p179
      %p181 = scmp.ne.s32.totalorder %s172, %s173
      %p182 = scmp.eq.s32.totalorder %s31, 0
      %p183 = por %p181, %p182
      %p184 = scmp.ne.s32.totalorder %s172, %s173
      %p185 = scmp.eq.s32.totalorder %s32, 1
      %p186 = por %p184, %p185
      %p188 = scmp.ne.s32.totalorder %s173, %s187
      %p189 = scmp.eq.s32.totalorder %s32, 0
      %p190 = por %p188, %p189
      %s192 = sadd.s32 %s191, 1
      %p195 = scmp.eq.s32.totalorder %s26, 1
      %p196 = scmp.ne.s32.totalorder %s191, %s193
      %p197 = scmp.eq.s32.totalorder %s26, 0
      %p198 = por %p196, %p197
      %p199 = scmp.ne.s32.totalorder %s191, %s193
      %p200 = scmp.eq.s32.totalorder %s31, 1
      %p201 = por %p199, %p200
      %p202 = scmp.ne.s32.totalorder %s193, %s194
      %p203 = scmp.eq.s32.totalorder %s31, 0
      %p204 = por %p202, %p203
      %p205 = scmp.ne.s32.totalorder %s193, %s194
      %p206 = scmp.eq.s32.totalorder %s32, 1
      %p207 = por %p205, %p206
      %p209 = scmp.ne.s32.totalorder %s194, %s208
      %p210 = scmp.eq.s32.totalorder %s32, 0
      %p211 = por %p209, %p210
      %s213 = sadd.s32 %s212, 1
      %p216 = scmp.eq.s32.totalorder %s26, 1
      %p217 = scmp.ne.s32.totalorder %s212, %s214
      %p218 = scmp.eq.s32.totalorder %s26, 0
      %p219 = por %p217, %p218
      %p220 = scmp.ne.s32.totalorder %s212, %s214
      %p221 = scmp.eq.s32.totalorder %s31, 1
      %p222 = por %p220, %p221
      %p223 = scmp.ne.s32.totalorder %s214, %s215
      %p224 = scmp.eq.s32.totalorder %s31, 0
      %p225 = por %p223, %p224
      %p226 = scmp.ne.s32.totalorder %s214, %s215
      %p227 = scmp.eq.s32.totalorder %s32, 1
      %p228 = por %p226, %p227
      %p230 = scmp.ne.s32.totalorder %s215, %s229
      %p231 = scmp.eq.s32.totalorder %s32, 0
      %p232 = por %p230, %p231
      %s234 = sadd.s32 %s233, 1
      %p237 = scmp.eq.s32.totalorder %s26, 1
      %p238 = scmp.ne.s32.totalorder %s233, %s235
      %p239 = scmp.eq.s32.totalorder %s26, 0
      %p240 = por %p238, %p239
      %p241 = scmp.ne.s32.totalorder %s233, %s235
      %p242 = scmp.eq.s32.totalorder %s31, 1
      %p243 = por %p241, %p242
      %p244 = scmp.ne.s32.totalorder %s235, %s236
      %p245 = scmp.eq.s32.totalorder %s31, 0
      %p246 = por %p244, %p245
      %p247 = scmp.ne.s32.totalorder %s235, %s236
      %p248 = scmp.eq.s32.totalorder %s32, 1
      %p249 = por %p247, %p248
      %p251 = scmp.ne.s32.totalorder %s236, %s250
      %p252 = scmp.eq.s32.totalorder %s32, 0
      %p253 = por %p251, %p252
      %s255 = sadd.s32 %s254, 1
      %p258 = scmp.eq.s32.totalorder %s26, 1
      %p259 = scmp.ne.s32.totalorder %s254, %s256
      %p260 = scmp.eq.s32.totalorder %s26, 0
      %p261 = por %p259, %p260
      %p262 = scmp.ne.s32.totalorder %s254, %s256
      %p263 = scmp.eq.s32.totalorder %s31, 1
      %p264 = por %p262, %p263
      %p265 = scmp.ne.s32.totalorder %s256, %s257
      %p266 = scmp.eq.s32.totalorder %s31, 0
      %p267 = por %p265, %p266
      %p268 = scmp.ne.s32.totalorder %s256, %s257
      %p269 = scmp.eq.s32.totalorder %s32, 1
      %p270 = por %p268, %p269
      %p272 = scmp.ne.s32.totalorder %s257, %s271
      %p273 = scmp.eq.s32.totalorder %s32, 0
      %p274 = por %p272, %p273
      %s276 = sadd.s32 %s275, 1
      %p279 = scmp.eq.s32.totalorder %s26, 1
      %p280 = scmp.ne.s32.totalorder %s275, %s277
      %p281 = scmp.eq.s32.totalorder %s26, 0
      %p282 = por %p280, %p281
      %p283 = scmp.ne.s32.totalorder %s275, %s277
      %p284 = scmp.eq.s32.totalorder %s31, 1
      %p285 = por %p283, %p284
      %p286 = scmp.ne.s32.totalorder %s277, %s278
      %p287 = scmp.eq.s32.totalorder %s31, 0
      %p288 = por %p286, %p287
      %p289 = scmp.ne.s32.totalorder %s277, %s278
      %p290 = scmp.eq.s32.totalorder %s32, 1
      %p291 = por %p289, %p290
      %p293 = scmp.ne.s32.totalorder %s278, %s292
      %p294 = scmp.eq.s32.totalorder %s32, 0
      %p295 = por %p293, %p294
      %s297 = sadd.s32 %s296, 1
      %p300 = scmp.eq.s32.totalorder %s26, 1
      %p301 = scmp.ne.s32.totalorder %s296, %s298
      %p302 = scmp.eq.s32.totalorder %s26, 0
      %p303 = por %p301, %p302
      %p304 = scmp.ne.s32.totalorder %s296, %s298
      %p305 = scmp.eq.s32.totalorder %s31, 1
      %p306 = por %p304, %p305
      %p307 = scmp.ne.s32.totalorder %s298, %s299
      %p308 = scmp.eq.s32.totalorder %s31, 0
      %p309 = por %p307, %p308
      %p310 = scmp.ne.s32.totalorder %s298, %s299
      %p311 = scmp.eq.s32.totalorder %s32, 1
      %p312 = por %p310, %p311
      %p314 = scmp.ne.s32.totalorder %s299, %s313
      %p315 = scmp.eq.s32.totalorder %s32, 0
      %p316 = por %p314, %p315
      %s318 = sadd.s32 %s317, 1
      %p321 = scmp.eq.s32.totalorder %s26, 1
      %p322 = scmp.ne.s32.totalorder %s317, %s319
      %p323 = scmp.eq.s32.totalorder %s26, 0
      %p324 = por %p322, %p323
      %p325 = scmp.ne.s32.totalorder %s317, %s319
      %p326 = scmp.eq.s32.totalorder %s31, 1
      %p327 = por %p325, %p326
      %p328 = scmp.ne.s32.totalorder %s319, %s320
      %p329 = scmp.eq.s32.totalorder %s31, 0
      %p330 = por %p328, %p329
      %p331 = scmp.ne.s32.totalorder %s319, %s320
      %p332 = scmp.eq.s32.totalorder %s32, 1
      %p333 = por %p331, %p332
      %p335 = scmp.ne.s32.totalorder %s320, %s334
      %p336 = scmp.eq.s32.totalorder %s32, 0
      %p337 = por %p335, %p336
      %s339 = sadd.s32 %s338, 1
      %p342 = scmp.eq.s32.totalorder %s26, 1
      %p343 = scmp.ne.s32.totalorder %s338, %s340
      %p344 = scmp.eq.s32.totalorder %s26, 0
      %p345 = por %p343, %p344
      %p346 = scmp.ne.s32.totalorder %s338, %s340
      %p347 = scmp.eq.s32.totalorder %s31, 1
      %p348 = por %p346, %p347
      %p349 = scmp.ne.s32.totalorder %s340, %s341
      %p350 = scmp.eq.s32.totalorder %s31, 0
      %p351 = por %p349, %p350
      %p352 = scmp.ne.s32.totalorder %s340, %s341
      %p353 = scmp.eq.s32.totalorder %s32, 1
      %p354 = por %p352, %p353
      %p356 = scmp.ne.s32.totalorder %s341, %s355
      %p357 = scmp.eq.s32.totalorder %s32, 0
      %p358 = por %p356, %p357
      %s360 = sadd.s32 %s359, 1
      %p363 = scmp.eq.s32.totalorder %s26, 1
      %p364 = scmp.ne.s32.totalorder %s359, %s361
      %p365 = scmp.eq.s32.totalorder %s26, 0
      %p366 = por %p364, %p365
      %p367 = scmp.ne.s32.totalorder %s359, %s361
      %p368 = scmp.eq.s32.totalorder %s31, 1
      %p369 = por %p367, %p368
      %p370 = scmp.ne.s32.totalorder %s361, %s362
      %p371 = scmp.eq.s32.totalorder %s31, 0
      %p372 = por %p370, %p371
      %p373 = scmp.ne.s32.totalorder %s361, %s362
      %p374 = scmp.eq.s32.totalorder %s32, 1
      %p375 = por %p373, %p374
      %p377 = scmp.ne.s32.totalorder %s362, %s376
      %p378 = scmp.eq.s32.totalorder %s32, 0
      %p379 = por %p377, %p378
      %s381 = sadd.s32 %s380, 1
      %p384 = scmp.eq.s32.totalorder %s26, 1
      %p385 = scmp.ne.s32.totalorder %s380, %s382
      %p386 = scmp.eq.s32.totalorder %s26, 0
      %p387 = por %p385, %p386
      %p388 = scmp.ne.s32.totalorder %s380, %s382
      %p389 = scmp.eq.s32.totalorder %s31, 1
      %p390 = por %p388, %p389
      %p391 = scmp.ne.s32.totalorder %s382, %s383
      %p392 = scmp.eq.s32.totalorder %s31, 0
      %p393 = por %p391, %p392
      %p394 = scmp.ne.s32.totalorder %s382, %s383
      %p395 = scmp.eq.s32.totalorder %s32, 1
      %p396 = por %p394, %p395
      %p398 = scmp.ne.s32.totalorder %s383, %s397
      %p399 = scmp.eq.s32.totalorder %s32, 0
      %p400 = por %p398, %p399
      %s402 = sadd.s32 %s401, 1
      %p405 = scmp.eq.s32.totalorder %s26, 1
      %p406 = scmp.ne.s32.totalorder %s401, %s403
      %p407 = scmp.eq.s32.totalorder %s26, 0
      %p408 = por %p406, %p407
      %p409 = scmp.ne.s32.totalorder %s401, %s403
      %p410 = scmp.eq.s32.totalorder %s31, 1
      %p411 = por %p409, %p410
      %p412 = scmp.ne.s32.totalorder %s403, %s404
      %p413 = scmp.eq.s32.totalorder %s31, 0
      %p414 = por %p412, %p413
      %p415 = scmp.ne.s32.totalorder %s403, %s404
      %p416 = scmp.eq.s32.totalorder %s32, 1
      %p417 = por %p415, %p416
      %p419 = scmp.ne.s32.totalorder %s404, %s418
      %p420 = scmp.eq.s32.totalorder %s32, 0
      %p421 = por %p419, %p420
      %s422 = ssub.s32 %s26, %s33
      %p423 = scmp.eq.s32.totalorder %s422, 0
      %s425 = sadd.s32 %s424, 1
      %s426 = scalar_select %p423, %s424, %s425
      %p429 = pneg %p423
      %p430 = scmp.eq.s32.totalorder %s26, 1
      %p431 = por %p429, %p430
      %p432 = scmp.ne.s32.totalorder %s424, %s427
      %p433 = scmp.eq.s32.totalorder %s26, 0
      %p434 = por %p432, %p433
      %p435 = scmp.ne.s32.totalorder %s424, %s427
      %p436 = scmp.eq.s32.totalorder %s31, 1
      %p437 = por %p435, %p436
      %p438 = scmp.ne.s32.totalorder %s427, %s428
      %p439 = scmp.eq.s32.totalorder %s31, 0
      %p440 = por %p438, %p439
      %p441 = scmp.ne.s32.totalorder %s427, %s428
      %p442 = scmp.eq.s32.totalorder %s32, 1
      %p443 = por %p441, %p442
      %p445 = scmp.ne.s32.totalorder %s428, %s444
      %p446 = scmp.eq.s32.totalorder %s32, 0
      %p447 = por %p445, %p446
      %p448 = scmp.le.s32.totalorder 1, %s26
      %p449 = scmp.lt.s32.totalorder %s26, 3
      %p450 = pnand %p448, %p449
      %p451 = pneg %p450
      // Predicated region
      $region9: #{bertqua_forward.1} parent=5 // pred_check
        _
      $region10: #{bertqua_forward.1} parent=5 // pred_check_branch
        %453 = sbr.rel (%p450) target = $region12
      $region11: #{bertqua_forward.1} parent=5 // pred_region
        %s454 = ssub.s32 %s26, 1
        // Predicated region
        $region13: #{bertqua_forward.1} parent=11 // pred_check
          %p455 = pneg %p99
        $region14: #{bertqua_forward.1} parent=11 // pred_check_branch
          %457 = sbr.rel (%p455) target = $region16
        $region15: #{bertqua_forward.1} parent=11 // pred_region
          _
        $region16: #{bertqua_forward.1} parent=11 // pred_fallthru
          _
        // Predicated region
        $region17: #{bertqua_forward.1} parent=11 // pred_check
          %p458 = pneg %p120
        $region18: #{bertqua_forward.1} parent=11 // pred_check_branch
          %460 = sbr.rel (%p458) target = $region20
        $region19: #{bertqua_forward.1} parent=11 // pred_region
          _
        $region20: #{bertqua_forward.1} parent=11 // pred_fallthru
          _
        // Predicated region
        $region21: #{bertqua_forward.1} parent=11 // pred_check
          %p461 = pneg %p141
        $region22: #{bertqua_forward.1} parent=11 // pred_check_branch
          %463 = sbr.rel (%p461) target = $region24
        $region23: #{bertqua_forward.1} parent=11 // pred_region
          _
        $region24: #{bertqua_forward.1} parent=11 // pred_fallthru
          _
        // Predicated region
        $region25: #{bertqua_forward.1} parent=11 // pred_check
          %p464 = pneg %p162
        $region26: #{bertqua_forward.1} parent=11 // pred_check_branch
          %466 = sbr.rel (%p464) target = $region28
        $region27: #{bertqua_forward.1} parent=11 // pred_region
          _
        $region28: #{bertqua_forward.1} parent=11 // pred_fallthru
          _
        // Predicated region
        $region29: #{bertqua_forward.1} parent=11 // pred_check
          %p467 = pneg %p183
        $region30: #{bertqua_forward.1} parent=11 // pred_check_branch
          %469 = sbr.rel (%p467) target = $region32
        $region31: #{bertqua_forward.1} parent=11 // pred_region
          _
        $region32: #{bertqua_forward.1} parent=11 // pred_fallthru
          _
        // Predicated region
        $region33: #{bertqua_forward.1} parent=11 // pred_check
          %p470 = pneg %p204
        $region34: #{bertqua_forward.1} parent=11 // pred_check_branch
          %472 = sbr.rel (%p470) target = $region36
        $region35: #{bertqua_forward.1} parent=11 // pred_region
          _
        $region36: #{bertqua_forward.1} parent=11 // pred_fallthru
          _
        // Predicated region
        $region37: #{bertqua_forward.1} parent=11 // pred_check
          %p473 = pneg %p225
        $region38: #{bertqua_forward.1} parent=11 // pred_check_branch
          %475 = sbr.rel (%p473) target = $region40
        $region39: #{bertqua_forward.1} parent=11 // pred_region
          _
        $region40: #{bertqua_forward.1} parent=11 // pred_fallthru
          _
        // Predicated region
        $region41: #{bertqua_forward.1} parent=11 // pred_check
          %p476 = pneg %p246
        $region42: #{bertqua_forward.1} parent=11 // pred_check_branch
          %478 = sbr.rel (%p476) target = $region44
        $region43: #{bertqua_forward.1} parent=11 // pred_region
          _
        $region44: #{bertqua_forward.1} parent=11 // pred_fallthru
          _
        // Predicated region
        $region45: #{bertqua_forward.1} parent=11 // pred_check
          %p479 = pneg %p267
        $region46: #{bertqua_forward.1} parent=11 // pred_check_branch
          %481 = sbr.rel (%p479) target = $region48
        $region47: #{bertqua_forward.1} parent=11 // pred_region
          _
        $region48: #{bertqua_forward.1} parent=11 // pred_fallthru
          _
        // Predicated region
        $region49: #{bertqua_forward.1} parent=11 // pred_check
          %p482 = pneg %p288
        $region50: #{bertqua_forward.1} parent=11 // pred_check_branch
          %484 = sbr.rel (%p482) target = $region52
        $region51: #{bertqua_forward.1} parent=11 // pred_region
          _
        $region52: #{bertqua_forward.1} parent=11 // pred_fallthru
          _
        // Predicated region
        $region53: #{bertqua_forward.1} parent=11 // pred_check
          %p485 = pneg %p309
        $region54: #{bertqua_forward.1} parent=11 // pred_check_branch
          %487 = sbr.rel (%p485) target = $region56
        $region55: #{bertqua_forward.1} parent=11 // pred_region
          %489 = vsyncadd [#allocation3], 0
          %s490 = sshll.u32 %s12, 4
          %s491 = int_to_ptr.hbm [resolvable:$true] %s490
          %s492 = sshll.u32 [#allocation2], 4
          %s493 = int_to_ptr.vmem [resolvable:$true] %s492
          %498 = dma.hbm_to_vmem [thread:$0]  %s491, 4096, %s493, [#allocation3], 64, 64, 4
        $region56: #{bertqua_forward.1} parent=11 // pred_fallthru
          _
        // Predicated region
        $region57: #{bertqua_forward.1} parent=11 // pred_check
          %p499 = pneg %p330
        $region58: #{bertqua_forward.1} parent=11 // pred_check_branch
          %501 = sbr.rel (%p499) target = $region60
        $region59: #{bertqua_forward.1} parent=11 // pred_region
          _
        $region60: #{bertqua_forward.1} parent=11 // pred_fallthru
          _
        // Predicated region
        $region61: #{bertqua_forward.1} parent=11 // pred_check
          %p502 = pneg %p351
        $region62: #{bertqua_forward.1} parent=11 // pred_check_branch
          %504 = sbr.rel (%p502) target = $region64
        $region63: #{bertqua_forward.1} parent=11 // pred_region
          _
        $region64: #{bertqua_forward.1} parent=11 // pred_fallthru
          _
        // Predicated region
        $region65: #{bertqua_forward.1} parent=11 // pred_check
          %p505 = pneg %p372
        $region66: #{bertqua_forward.1} parent=11 // pred_check_branch
          %507 = sbr.rel (%p505) target = $region68
        $region67: #{bertqua_forward.1} parent=11 // pred_region
          _
        $region68: #{bertqua_forward.1} parent=11 // pred_fallthru
          _
        // Predicated region
        $region69: #{bertqua_forward.1} parent=11 // pred_check
          %p508 = pneg %p393
        $region70: #{bertqua_forward.1} parent=11 // pred_check_branch
          %510 = sbr.rel (%p508) target = $region72
        $region71: #{bertqua_forward.1} parent=11 // pred_region
          %512 = vsyncadd [#allocation5], 0
          %s513 = sshll.u32 %s16, 4
          %s514 = int_to_ptr.hbm [resolvable:$true] %s513
          %s515 = sshll.u32 [#allocation4], 4
          %s516 = int_to_ptr.vmem [resolvable:$true] %s515
          %521 = dma.hbm_to_vmem [thread:$0]  %s514, 1024, %s516, [#allocation5], 64, 64, 4
        $region72: #{bertqua_forward.1} parent=11 // pred_fallthru
          _
        // Predicated region
        $region73: #{bertqua_forward.1} parent=11 // pred_check
          %p522 = pneg %p414
        $region74: #{bertqua_forward.1} parent=11 // pred_check_branch
          %524 = sbr.rel (%p522) target = $region76
        $region75: #{bertqua_forward.1} parent=11 // pred_region
          _
        $region76: #{bertqua_forward.1} parent=11 // pred_fallthru
          _
      $region12: #{bertqua_forward.1} parent=5 // pred_fallthru
        _
      %p525 = scmp.lt.s32.totalorder %s26, 2
      // Predicated region
      $region77: #{bertqua_forward.1} parent=5 // pred_check
        %p526 = pneg %p525
      $region78: #{bertqua_forward.1} parent=5 // pred_check_branch
        %528 = sbr.rel (%p526) target = $region80
      $region79: #{bertqua_forward.1} parent=5 // pred_region
        // Predicated region
        $region81: #{bertqua_forward.1} parent=79 // pred_check
          %p529 = pneg %p46
        $region82: #{bertqua_forward.1} parent=79 // pred_check_branch
          %531 = sbr.rel (%p529) target = $region84
        $region83: #{bertqua_forward.1} parent=79 // pred_region
          %s532 = smul.u32 2, %s26
          %p533 = scmp.lt.s32.totalorder %s532, 3
          %s534 = scalar_select %p533, %s532, 3
          %s535 = smul.addr %s534, 8
          %s536 = scalar_lea.vmem %s0, %s535
          %s537 = smul.u32 2, %s26
        $region84: #{bertqua_forward.1} parent=79 // pred_fallthru
          _
        // Predicated region
        $region85: #{bertqua_forward.1} parent=79 // pred_check
          %p538 = pneg %p72
        $region86: #{bertqua_forward.1} parent=79 // pred_check_branch
          %540 = sbr.rel (%p538) target = $region88
        $region87: #{bertqua_forward.1} parent=79 // pred_region
          %s541 = smul.u32 4, %s26
          %p542 = scmp.lt.s32.totalorder %s541, 7
          %s543 = scalar_select %p542, %s541, 7
          %s544 = smul.addr %s543, 8
          %s545 = scalar_lea.vmem %s1, %s544
          %s546 = smul.u32 4, %s26
        $region88: #{bertqua_forward.1} parent=79 // pred_fallthru
          _
      $region80: #{bertqua_forward.1} parent=5 // pred_fallthru
        _
      %p547 = scmp.le.s32.totalorder 1, %s26
      %p548 = scmp.lt.s32.totalorder %s26, 3
      %p549 = pnand %p547, %p548
      %p550 = pneg %p549
      // Predicated region
      $region89: #{bertqua_forward.1} parent=5 // pred_check
        _
      $region90: #{bertqua_forward.1} parent=5 // pred_check_branch
        %552 = sbr.rel (%p549) target = $region92
      $region91: #{bertqua_forward.1} parent=5 // pred_region
        %s553 = ssub.s32 %s26, 1
        // Predicated region
        $region93: #{bertqua_forward.1} parent=91 // pred_check
          %p554 = pneg %p309
        $region94: #{bertqua_forward.1} parent=91 // pred_check_branch
          %556 = sbr.rel (%p554) target = $region96
        $region95: #{bertqua_forward.1} parent=91 // pred_region
          %558 = dma.done [#allocation3], 4096
        $region96: #{bertqua_forward.1} parent=91 // pred_fallthru
          _
        // Predicated region
        $region97: #{bertqua_forward.1} parent=91 // pred_check
          %p559 = pneg %p393
        $region98: #{bertqua_forward.1} parent=91 // pred_check_branch
          %561 = sbr.rel (%p559) target = $region100
        $region99: #{bertqua_forward.1} parent=91 // pred_region
          %563 = dma.done [#allocation5], 1024
        $region100: #{bertqua_forward.1} parent=91 // pred_fallthru
          _
        %s564 = smul.u32 2, %s31
        %p565 = scmp.lt.s32.totalorder %s564, 3
        %s566 = scalar_select %p565, %s564, 3
        %s567 = smul.addr %s566, 8
        %s568 = scalar_lea.vmem %s0, %s567
        %p569 = pneg %p52
        %p570 = pneg %p49
        %s571 = smul.u32 4, %s31
        %p572 = scmp.lt.s32.totalorder %s571, 7
        %s573 = scalar_select %p572, %s571, 7
        %s574 = smul.addr %s573, 8
        %s575 = scalar_lea.vmem %s1, %s574
        %p576 = pneg %p78
        %p577 = pneg %p75
        %p578 = pneg %p99
        %p579 = pneg %p96
        %p580 = pneg %p120
        %p581 = pneg %p117
        %p582 = pneg %p141
        %p583 = pneg %p138
        %p584 = pneg %p162
        %p585 = pneg %p159
        %p586 = pneg %p183
        %p587 = pneg %p180
        %p588 = pneg %p204
        %p589 = pneg %p201
        %p590 = pneg %p225
        %p591 = pneg %p222
        %p592 = pneg %p246
        %p593 = pneg %p243
        %p594 = pneg %p267
        %p595 = pneg %p264
        %p596 = pneg %p288
        %p597 = pneg %p285
        %p598 = pneg %p309
        %p599 = pneg %p306
        %p600 = pneg %p330
        %p601 = pneg %p327
        %p602 = pneg %p351
        %p603 = pneg %p348
        %p604 = pneg %p372
        %p605 = pneg %p369
        %p606 = pneg %p393
        %p607 = pneg %p390
        %p608 = pneg %p414
        %p609 = pneg %p411
        %p610 = pneg %p440
        %p611 = pneg %p437
        %s612 = smul.u32 2, %s31
        %p613 = scmp.lt.s32.totalorder %s612, 3
        %s614 = scalar_select %p613, %s612, 3
        %s615 = smul.addr %s614, 8
        %s616 = scalar_lea.vmem %s18, %s615
        %s617 = smul.u32 2, %s31
        %p618 = scmp.lt.s32.totalorder %s617, 3
        %s619 = scalar_select %p618, %s617, 3
        %s620 = smul.addr %s619, 8
        %s621 = scalar_lea.vmem %s0, %s620
        %s622 = smul.u32 2, %s31
        %s623 = smul.u32 4, %s31
        %p624 = scmp.lt.s32.totalorder %s623, 7
        %s625 = scalar_select %p624, %s623, 7
        %s626 = smul.addr %s625, 8
        %s627 = scalar_lea.vmem %s1, %s626
        %s628 = smul.u32 4, %s31
        %s629 = smul.u32 2, %s31
        %p630 = scmp.lt.s32.totalorder %s629, 3
        %s631 = scalar_select %p630, %s629, 3
        %s632 = smul.addr %s631, 8
        %s633 = scalar_lea.vmem %s18, %s632
        %s634 = smul.u32 2, %s31
        %v636 = vld [vmem:[%s621] sm:$0xff]
        %v637 = vld [vmem:[%s621 + $0x8] sm:$0xff]
        %v638 = vld [vmem:[%s2] sm:$0x1]
        %v639 = vld [vmem:[%s3] sm:$0x1]
        %640 = vadd.xlane.f32.xlu0 %v636
        %v641 = vpop.xlane.xlu0 %640
        %642 = vadd.xlane.f32.xlu0 %v637
        %v643 = vpop.xlane.xlu0 %642
        %v644 = vrcp.pop 128.0
        %v645 = vmul.f32 128.0, %v644
        %v646 = vsub.f32 1.0, %v645
        %v647 = vmul.f32 %v644, %v646
        %v648 = vadd.f32 %v644, %v647
        %vm649 = vweird.f32 %v644
        %v650 = vsel %vm649, %v644, %v648
        %v651 = vmul.f32 %v641, %v650
        %v652 = vmul.f32 %v643, %v650
        %v653 = vsub.f32 %v636, %v651
        %v654 = vsub.f32 %v637, %v652
        %v655 = vmul.f32 %v653, %v653
        %v656 = vmul.f32 %v654, %v654
        %657 = vadd.xlane.f32.xlu0 %v655
        %v658 = vpop.xlane.xlu0 %657
        %659 = vadd.xlane.f32.xlu0 %v656
        %v660 = vpop.xlane.xlu0 %659
        %v661 = vmul.f32 %v658, %v650
        %v662 = vmul.f32 %v660, %v650
        %v663 = vadd.f32 %v661, 1e-12
        %v664 = vadd.f32 %v662, 1e-12
        %v665 = vrsqrt.pop %v663
        %v666 = vmul.f32 %v665, %v663
        %v667 = vmul.f32 %v666, %v665
        %v668 = vmul.f32 0.5, %v667
        %v669 = vsub.f32 1.5, %v668
        %v670 = vmul.f32 %v665, %v669
        %vm671 = vweird.f32 %v663
        %vm672 = vweird.f32 %v665
        %vm673 = vmor %vm671, %vm672
        %v674 = vsel %vm673, %v665, %v670
        %v675 = vrsqrt.pop %v664
        %v676 = vmul.f32 %v675, %v664
        %v677 = vmul.f32 %v676, %v675
        %v678 = vmul.f32 0.5, %v677
        %v679 = vsub.f32 1.5, %v678
        %v680 = vmul.f32 %v675, %v679
        %vm681 = vweird.f32 %v664
        %vm682 = vweird.f32 %v675
        %vm683 = vmor %vm681, %vm682
        %v684 = vsel %vm683, %v675, %v680
        %v685 = vmul.f32 %v653, %v674
        %v686 = vmul.f32 %v654, %v684
        %v688 = vperm.slane %v638, 0
        %v690 = vmul.f32 %v685, %v688
        %v691 = vmul.f32 %v686, %v688
        %v693 = vperm.slane %v639, 0
        %v695 = vadd.f32 %v690, %v693
        %v696 = vadd.f32 %v691, %v693
        %v697 = vld [vmem:[%s627] sm:$0xff]
        %v698 = vld [vmem:[%s627 + $0x8] sm:$0xff]
        %v699 = vld [vmem:[%s627 + $0x10] sm:$0xff]
        %v700 = vld [vmem:[%s627 + $0x18] sm:$0xff]
        %v701 = vld [vmem:[%s4] sm:$0xff]
        %v702 = vld [vmem:[%s4 + $0x8] sm:$0xff]
        %v703 = vld [vmem:[%s4 + $0x10] sm:$0xff]
        %v704 = vld [vmem:[%s4 + $0x18] sm:$0xff]
        %v705 = vld [vmem:[%s4 + $0x20] sm:$0xff]
        %v706 = vld [vmem:[%s4 + $0x28] sm:$0xff]
        %v707 = vld [vmem:[%s4 + $0x30] sm:$0xff]
        %v708 = vld [vmem:[%s4 + $0x38] sm:$0xff]
        %v709 = vld [vmem:[%s4 + $0x40] sm:$0xff]
        %v710 = vld [vmem:[%s4 + $0x48] sm:$0xff]
        %v711 = vld [vmem:[%s4 + $0x50] sm:$0xff]
        %v712 = vld [vmem:[%s4 + $0x58] sm:$0xff]
        %v713 = vld [vmem:[%s4 + $0x60] sm:$0xff]
        %v714 = vld [vmem:[%s4 + $0x68] sm:$0xff]
        %v715 = vld [vmem:[%s4 + $0x70] sm:$0xff]
        %v716 = vld [vmem:[%s4 + $0x78] sm:$0xff]
        %v717 = vld [vmem:[%s4 + $0x80] sm:$0xff]
        %v718 = vld [vmem:[%s4 + $0x88] sm:$0xff]
        %v719 = vld [vmem:[%s4 + $0x90] sm:$0xff]
        %v720 = vld [vmem:[%s4 + $0x98] sm:$0xff]
        %v721 = vld [vmem:[%s4 + $0xa0] sm:$0xff]
        %v722 = vld [vmem:[%s4 + $0xa8] sm:$0xff]
        %v723 = vld [vmem:[%s4 + $0xb0] sm:$0xff]
        %v724 = vld [vmem:[%s4 + $0xb8] sm:$0xff]
        %v725 = vld [vmem:[%s4 + $0xc0] sm:$0xff]
        %v726 = vld [vmem:[%s4 + $0xc8] sm:$0xff]
        %v727 = vld [vmem:[%s4 + $0xd0] sm:$0xff]
        %v728 = vld [vmem:[%s4 + $0xd8] sm:$0xff]
        %v729 = vld [vmem:[%s4 + $0xe0] sm:$0xff]
        %v730 = vld [vmem:[%s4 + $0xe8] sm:$0xff]
        %v731 = vld [vmem:[%s4 + $0xf0] sm:$0xff]
        %v732 = vld [vmem:[%s4 + $0xf8] sm:$0xff]
        %v733 = vld [vmem:[%s4 + $0x100] sm:$0xff]
        %v734 = vld [vmem:[%s4 + $0x108] sm:$0xff]
        %v735 = vld [vmem:[%s4 + $0x110] sm:$0xff]
        %v736 = vld [vmem:[%s4 + $0x118] sm:$0xff]
        %v737 = vld [vmem:[%s4 + $0x120] sm:$0xff]
        %v738 = vld [vmem:[%s4 + $0x128] sm:$0xff]
        %v739 = vld [vmem:[%s4 + $0x130] sm:$0xff]
        %v740 = vld [vmem:[%s4 + $0x138] sm:$0xff]
        %v741 = vld [vmem:[%s4 + $0x140] sm:$0xff]
        %v742 = vld [vmem:[%s4 + $0x148] sm:$0xff]
        %v743 = vld [vmem:[%s4 + $0x150] sm:$0xff]
        %v744 = vld [vmem:[%s4 + $0x158] sm:$0xff]
        %v745 = vld [vmem:[%s4 + $0x160] sm:$0xff]
        %v746 = vld [vmem:[%s4 + $0x168] sm:$0xff]
        %v747 = vld [vmem:[%s4 + $0x170] sm:$0xff]
        %v748 = vld [vmem:[%s4 + $0x178] sm:$0xff]
        %v749 = vpack.c.bf16 %v696, %v695
        %v750 = vld [vmem:[%s5] sm:$0x3f]
        %v752 = vperm.slane %v750, 0
        %v753 = vperm.slane %v750, 1
        %v754 = vperm.slane %v750, 2
        %v755 = vperm.slane %v750, 3
        %v756 = vperm.slane %v750, 4
        %v757 = vperm.slane %v750, 5
        %v812 = vunpack.c.l.b16 %v701
        %v813 = vunpack.c.h.b16 %v701
        %v814 = vunpack.c.l.b16 %v702
        %v815 = vunpack.c.h.b16 %v702
        %v816 = vunpack.c.l.b16 %v703
        %v817 = vunpack.c.h.b16 %v703
        %v818 = vunpack.c.l.b16 %v704
        %v819 = vunpack.c.h.b16 %v704
        %v820 = vunpack.c.l.b16 %v705
        %v821 = vunpack.c.h.b16 %v705
        %v822 = vunpack.c.l.b16 %v706
        %v823 = vunpack.c.h.b16 %v706
        %v824 = vunpack.c.l.b16 %v707
        %v825 = vunpack.c.h.b16 %v707
        %v826 = vunpack.c.l.b16 %v708
        %v827 = vunpack.c.h.b16 %v708
        %v828 = vunpack.c.l.b16 %v709
        %v829 = vunpack.c.h.b16 %v709
        %v830 = vunpack.c.l.b16 %v710
        %v831 = vunpack.c.h.b16 %v710
        %v832 = vunpack.c.l.b16 %v711
        %v833 = vunpack.c.h.b16 %v711
        %v834 = vunpack.c.l.b16 %v712
        %v835 = vunpack.c.h.b16 %v712
        %v836 = vunpack.c.l.b16 %v713
        %v837 = vunpack.c.h.b16 %v713
        %v838 = vunpack.c.l.b16 %v714
        %v839 = vunpack.c.h.b16 %v714
        %v840 = vunpack.c.l.b16 %v715
        %v841 = vunpack.c.h.b16 %v715
        %v842 = vunpack.c.l.b16 %v716
        %v843 = vunpack.c.h.b16 %v716
        %v844 = vunpack.c.l.b16 %v717
        %v845 = vunpack.c.h.b16 %v717
        %v846 = vunpack.c.l.b16 %v718
        %v847 = vunpack.c.h.b16 %v718
        %v848 = vunpack.c.l.b16 %v719
        %v849 = vunpack.c.h.b16 %v719
        %v850 = vunpack.c.l.b16 %v720
        %v851 = vunpack.c.h.b16 %v720
        %v852 = vunpack.c.l.b16 %v721
        %v853 = vunpack.c.h.b16 %v721
        %v854 = vunpack.c.l.b16 %v722
        %v855 = vunpack.c.h.b16 %v722
        %v856 = vunpack.c.l.b16 %v723
        %v857 = vunpack.c.h.b16 %v723
        %v858 = vunpack.c.l.b16 %v724
        %v859 = vunpack.c.h.b16 %v724
        %v860 = vunpack.c.l.b16 %v725
        %v861 = vunpack.c.h.b16 %v725
        %v862 = vunpack.c.l.b16 %v726
        %v863 = vunpack.c.h.b16 %v726
        %v864 = vunpack.c.l.b16 %v727
        %v865 = vunpack.c.h.b16 %v727
        %v866 = vunpack.c.l.b16 %v728
        %v867 = vunpack.c.h.b16 %v728
        %v868 = vunpack.c.l.b16 %v729
        %v869 = vunpack.c.h.b16 %v729
        %v870 = vunpack.c.l.b16 %v730
        %v871 = vunpack.c.h.b16 %v730
        %v872 = vunpack.c.l.b16 %v731
        %v873 = vunpack.c.h.b16 %v731
        %v874 = vunpack.c.l.b16 %v732
        %v875 = vunpack.c.h.b16 %v732
        %v876 = vunpack.c.l.b16 %v733
        %v877 = vunpack.c.h.b16 %v733
        %v878 = vunpack.c.l.b16 %v734
        %v879 = vunpack.c.h.b16 %v734
        %v880 = vunpack.c.l.b16 %v735
        %v881 = vunpack.c.h.b16 %v735
        %v882 = vunpack.c.l.b16 %v736
        %v883 = vunpack.c.h.b16 %v736
        %v884 = vunpack.c.l.b16 %v737
        %v885 = vunpack.c.h.b16 %v737
        %v886 = vunpack.c.l.b16 %v738
        %v887 = vunpack.c.h.b16 %v738
        %v888 = vunpack.c.l.b16 %v739
        %v889 = vunpack.c.h.b16 %v739
        %v890 = vunpack.c.l.b16 %v740
        %v891 = vunpack.c.h.b16 %v740
        %v892 = vunpack.c.l.b16 %v741
        %v893 = vunpack.c.h.b16 %v741
        %v894 = vunpack.c.l.b16 %v742
        %v895 = vunpack.c.h.b16 %v742
        %v896 = vunpack.c.l.b16 %v743
        %v897 = vunpack.c.h.b16 %v743
        %v898 = vunpack.c.l.b16 %v744
        %v899 = vunpack.c.h.b16 %v744
        %v900 = vunpack.c.l.b16 %v745
        %v901 = vunpack.c.h.b16 %v745
        %v902 = vunpack.c.l.b16 %v746
        %v903 = vunpack.c.h.b16 %v746
        %v904 = vunpack.c.l.b16 %v747
        %v905 = vunpack.c.h.b16 %v747
        %v906 = vunpack.c.l.b16 %v748
        %v907 = vunpack.c.h.b16 %v748
        %v908 = vpack.c.b16 %v818, %v812
        %v909 = vpack.c.b16 %v819, %v813
        %v910 = vpack.c.b16 %v820, %v814
        %v911 = vpack.c.b16 %v821, %v815
        %v912 = vpack.c.b16 %v822, %v816
        %v913 = vpack.c.b16 %v823, %v817
        %v914 = vpack.c.b16 %v830, %v824
        %v915 = vpack.c.b16 %v831, %v825
        %v916 = vpack.c.b16 %v832, %v826
        %v917 = vpack.c.b16 %v833, %v827
        %v918 = vpack.c.b16 %v834, %v828
        %v919 = vpack.c.b16 %v835, %v829
        %v920 = vpack.c.b16 %v842, %v836
        %v921 = vpack.c.b16 %v843, %v837
        %v922 = vpack.c.b16 %v844, %v838
        %v923 = vpack.c.b16 %v845, %v839
        %v924 = vpack.c.b16 %v846, %v840
        %v925 = vpack.c.b16 %v847, %v841
        %v926 = vpack.c.b16 %v854, %v848
        %v927 = vpack.c.b16 %v855, %v849
        %v928 = vpack.c.b16 %v856, %v850
        %v929 = vpack.c.b16 %v857, %v851
        %v930 = vpack.c.b16 %v858, %v852
        %v931 = vpack.c.b16 %v859, %v853
        %v932 = vpack.c.b16 %v866, %v860
        %v933 = vpack.c.b16 %v867, %v861
        %v934 = vpack.c.b16 %v868, %v862
        %v935 = vpack.c.b16 %v869, %v863
        %v936 = vpack.c.b16 %v870, %v864
        %v937 = vpack.c.b16 %v871, %v865
        %v938 = vpack.c.b16 %v878, %v872
        %v939 = vpack.c.b16 %v879, %v873
        %v940 = vpack.c.b16 %v880, %v874
        %v941 = vpack.c.b16 %v881, %v875
        %v942 = vpack.c.b16 %v882, %v876
        %v943 = vpack.c.b16 %v883, %v877
        %v944 = vpack.c.b16 %v890, %v884
        %v945 = vpack.c.b16 %v891, %v885
        %v946 = vpack.c.b16 %v892, %v886
        %v947 = vpack.c.b16 %v893, %v887
        %v948 = vpack.c.b16 %v894, %v888
        %v949 = vpack.c.b16 %v895, %v889
        %v950 = vpack.c.b16 %v902, %v896
        %v951 = vpack.c.b16 %v903, %v897
        %v952 = vpack.c.b16 %v904, %v898
        %v953 = vpack.c.b16 %v905, %v899
        %v954 = vpack.c.b16 %v906, %v900
        %v955 = vpack.c.b16 %v907, %v901
        %1004 = vmatpush.bf16.msra.mxu0 %v950
        %1005 = vmatpush.bf16.msra.mxu0 %v944
        %1006 = vmatpush.bf16.msra.mxu0 %v938
        %1007 = vmatpush.bf16.msra.mxu0 %v932
        %1008 = vmatpush.bf16.msra.mxu0 %v926
        %1009 = vmatpush.bf16.msra.mxu0 %v920
        %1010 = vmatpush.bf16.msra.mxu0 %v914
        %1011 = vmatpush.bf16.msra.mxu0 %v908
        %1012 = vmatmul.bf16.gmra.mxu0 %v749
        %v1013 = vpop.f32.mrf.mxu0
        %v1014 = vadd.f32 %v752, %v1013
        %v1015 = vpop.f32.mrf.mxu0
        %v1016 = vadd.f32 %v752, %v1015
        %1017 = vdwg.mxu0
        %1018 = vmatpush.bf16.msra.mxu0 %v951
        %1019 = vmatpush.bf16.msra.mxu0 %v945
        %1020 = vmatpush.bf16.msra.mxu0 %v939
        %1021 = vmatpush.bf16.msra.mxu0 %v933
        %1022 = vmatpush.bf16.msra.mxu0 %v927
        %1023 = vmatpush.bf16.msra.mxu0 %v921
        %1024 = vmatpush.bf16.msra.mxu0 %v915
        %1025 = vmatpush.bf16.msra.mxu0 %v909
        %1026 = vmatmul.bf16.gmra.mxu0 %v749
        %v1027 = vpop.f32.mrf.mxu0
        %v1028 = vadd.f32 %v753, %v1027
        %v1029 = vpop.f32.mrf.mxu0
        %v1030 = vadd.f32 %v753, %v1029
        %1031 = vdwg.mxu0
        %1032 = vmatpush.bf16.msra.mxu0 %v952
        %1033 = vmatpush.bf16.msra.mxu0 %v946
        %1034 = vmatpush.bf16.msra.mxu0 %v940
        %1035 = vmatpush.bf16.msra.mxu0 %v934
        %1036 = vmatpush.bf16.msra.mxu0 %v928
        %1037 = vmatpush.bf16.msra.mxu0 %v922
        %1038 = vmatpush.bf16.msra.mxu0 %v916
        %1039 = vmatpush.bf16.msra.mxu0 %v910
        %1040 = vmatmul.bf16.gmra.mxu0 %v749
        %v1041 = vpop.f32.mrf.mxu0
        %v1042 = vadd.f32 %v754, %v1041
        %v1043 = vpop.f32.mrf.mxu0
        %v1044 = vadd.f32 %v754, %v1043
        %1045 = vdwg.mxu0
        %1046 = vmatpush.bf16.msra.mxu0 %v953
        %1047 = vmatpush.bf16.msra.mxu0 %v947
        %1048 = vmatpush.bf16.msra.mxu0 %v941
        %1049 = vmatpush.bf16.msra.mxu0 %v935
        %1050 = vmatpush.bf16.msra.mxu0 %v929
        %1051 = vmatpush.bf16.msra.mxu0 %v923
        %1052 = vmatpush.bf16.msra.mxu0 %v917
        %1053 = vmatpush.bf16.msra.mxu0 %v911
        %1054 = vmatmul.bf16.gmra.mxu0 %v749
        %v1055 = vpop.f32.mrf.mxu0
        %v1056 = vadd.f32 %v755, %v1055
        %v1057 = vpop.f32.mrf.mxu0
        %v1058 = vadd.f32 %v755, %v1057
        %1059 = vdwg.mxu0
        %1060 = vmatpush.bf16.msra.mxu0 %v954
        %1061 = vmatpush.bf16.msra.mxu0 %v948
        %1062 = vmatpush.bf16.msra.mxu0 %v942
        %1063 = vmatpush.bf16.msra.mxu0 %v936
        %1064 = vmatpush.bf16.msra.mxu0 %v930
        %1065 = vmatpush.bf16.msra.mxu0 %v924
        %1066 = vmatpush.bf16.msra.mxu0 %v918
        %1067 = vmatpush.bf16.msra.mxu0 %v912
        %1068 = vmatmul.bf16.gmra.mxu0 %v749
        %v1069 = vpop.f32.mrf.mxu0
        %v1070 = vadd.f32 %v756, %v1069
        %v1071 = vpop.f32.mrf.mxu0
        %v1072 = vadd.f32 %v756, %v1071
        %1073 = vdwg.mxu0
        %1074 = vmatpush.bf16.msra.mxu0 %v955
        %1075 = vmatpush.bf16.msra.mxu0 %v949
        %1076 = vmatpush.bf16.msra.mxu0 %v943
        %1077 = vmatpush.bf16.msra.mxu0 %v937
        %1078 = vmatpush.bf16.msra.mxu0 %v931
        %1079 = vmatpush.bf16.msra.mxu0 %v925
        %1080 = vmatpush.bf16.msra.mxu0 %v919
        %1081 = vmatpush.bf16.msra.mxu0 %v913
        %1082 = vmatmul.bf16.gmra.mxu0 %v749
        %v1083 = vpop.f32.mrf.mxu0
        %v1084 = vadd.f32 %v757, %v1083
        %v1085 = vpop.f32.mrf.mxu0
        %v1086 = vadd.f32 %v757, %v1085
        %1087 = vdwg.mxu0
        %v1088 = vpack.c.bf16 %v1016, %v1014
        %v1089 = vpack.c.bf16 %v1030, %v1028
        %v1090 = vpack.c.bf16 %v1044, %v1042
        %v1091 = vpack.c.bf16 %v1058, %v1056
        %v1092 = vpack.c.bf16 %v1072, %v1070
        %v1093 = vpack.c.bf16 %v1086, %v1084
        %1094 = vmatpush.bf16.xpose.msra.mxu0 0
        %1095 = vmatpush.bf16.xpose.msra.mxu0 0
        %1096 = vmatpush.bf16.xpose.msra.mxu0 0
        %1097 = vmatpush.bf16.xpose.msra.mxu0 0
        %1098 = vmatpush.bf16.xpose.msra.mxu0 0
        %1099 = vmatpush.bf16.xpose.msra.mxu0 0
        %1100 = vmatpush.bf16.xpose.msra.mxu0 %v1091
        %1101 = vmatpush.bf16.xpose.msra.mxu0 %v1090
        %1102 = vmatmul.bf16.gmra.mxu0 %v1088
        %v1103 = vpop.f32.mrf.mxu0
        %v1104 = vadd.f32 %v697, %v1103
        %v1105 = vpop.f32.mrf.mxu0
        %v1106 = vadd.f32 %v698, %v1105
        %1107 = vmatmul.bf16.gmra.mxu0 %v1089
        %v1108 = vpop.f32.mrf.mxu0
        %v1109 = vadd.f32 %v699, %v1108
        %v1110 = vpop.f32.mrf.mxu0
        %v1111 = vadd.f32 %v700, %v1110
        %1112 = vdwg.mxu0
        %vm1113 = vcmask 261120
        %v1114 = vsel %vm1113, %v1104, -inf
        %1115 = vmax.xlane.f32.xlu0 %v1114
        %v1116 = vpop.xlane.xlu0 %1115
        %v1117 = vsel %vm1113, %v1106, -inf
        %1118 = vmax.xlane.f32.xlu0 %v1117
        %v1119 = vpop.xlane.xlu0 %1118
        %v1120 = vsel %vm1113, %v1109, -inf
        %1121 = vmax.xlane.f32.xlu0 %v1120
        %v1122 = vpop.xlane.xlu0 %1121
        %v1123 = vsel %vm1113, %v1111, -inf
        %1124 = vmax.xlane.f32.xlu0 %v1123
        %v1125 = vpop.xlane.xlu0 %1124
        %v1126 = vsub.f32 %v1104, %v1116
        %v1127 = vsub.f32 %v1106, %v1119
        %v1128 = vsub.f32 %v1109, %v1122
        %v1129 = vsub.f32 %v1111, %v1125
        %v1130 = vmul.f32 %v1126, 1.442695
        %v1131 = vpow.pop %v1130
        %v1132 = vmul.f32 %v1127, 1.442695
        %v1133 = vpow.pop %v1132
        %v1134 = vmul.f32 %v1128, 1.442695
        %v1135 = vpow.pop %v1134
        %v1136 = vmul.f32 %v1129, 1.442695
        %v1137 = vpow.pop %v1136
        %v1138 = vsel %vm1113, %v1131, 0.0
        %1139 = vadd.xlane.f32.xlu0 %v1138
        %v1140 = vpop.xlane.xlu0 %1139
        %v1141 = vsel %vm1113, %v1133, 0.0
        %1142 = vadd.xlane.f32.xlu0 %v1141
        %v1143 = vpop.xlane.xlu0 %1142
        %v1144 = vsel %vm1113, %v1135, 0.0
        %1145 = vadd.xlane.f32.xlu0 %v1144
        %v1146 = vpop.xlane.xlu0 %1145
        %v1147 = vsel %vm1113, %v1137, 0.0
        %1148 = vadd.xlane.f32.xlu0 %v1147
        %v1149 = vpop.xlane.xlu0 %1148
        %v1150 = vrcp.pop %v1140
        %v1151 = vrcp.pop %v1143
        %v1152 = vrcp.pop %v1146
        %v1153 = vrcp.pop %v1149
        %v1154 = vmul.f32 %v1131, %v1150
        %v1155 = vmul.f32 %v1133, %v1151
        %v1156 = vmul.f32 %v1135, %v1152
        %v1157 = vmul.f32 %v1137, %v1153
        %v1158 = vpack.c.bf16 %v1155, %v1154
        %v1159 = vpack.c.bf16 %v1157, %v1156
        %v1161 = vsel %vm1113, %v1158, 0
        %v1164 = vsel %vm1113, %v1159, 0
        %1166 = vmatpush.bf16.msra.mxu0 0
        %1167 = vmatpush.bf16.msra.mxu0 0
        %1168 = vmatpush.bf16.msra.mxu0 0
        %1169 = vmatpush.bf16.msra.mxu0 0
        %1170 = vmatpush.bf16.msra.mxu0 0
        %1171 = vmatpush.bf16.msra.mxu0 0
        %1172 = vmatpush.bf16.msra.mxu0 %v1093
        %1173 = vmatpush.bf16.msra.mxu0 %v1092
        %1174 = vmatmul.bf16.gmra.mxu0 %v1161
        %v1175 = vpop.f32.mrf.mxu0
        %v1176 = vadd.f32 0.0, %v1175
        %v1177 = vpop.f32.mrf.mxu0
        %v1178 = vadd.f32 0.0, %v1177
        %1179 = vmatmul.bf16.gmra.mxu0 %v1164
        %v1180 = vpop.f32.mrf.mxu0
        %v1181 = vadd.f32 0.0, %v1180
        %v1182 = vpop.f32.mrf.mxu0
        %v1183 = vadd.f32 0.0, %v1182
        %1184 = vdwg.mxu0
        %v1185 = vld [vmem:[%s6] sm:$0xf]
        %v1186 = vld [vmem:[%s6 + $0x4] sm:$0xf]
        %v1187 = vld [vmem:[%s6 + $0x8] sm:$0xf]
        %v1188 = vld [vmem:[%s6 + $0xc] sm:$0xf]
        %v1189 = vld [vmem:[%s6 + $0x10] sm:$0xf]
        %v1190 = vld [vmem:[%s6 + $0x14] sm:$0xf]
        %v1191 = vld [vmem:[%s6 + $0x18] sm:$0xf]
        %v1192 = vld [vmem:[%s6 + $0x1c] sm:$0xf]
        %v1193 = vld [vmem:[%s6 + $0x20] sm:$0xf]
        %v1194 = vld [vmem:[%s6 + $0x24] sm:$0xf]
        %v1195 = vld [vmem:[%s6 + $0x28] sm:$0xf]
        %v1196 = vld [vmem:[%s6 + $0x2c] sm:$0xf]
        %v1197 = vld [vmem:[%s6 + $0x30] sm:$0xf]
        %v1198 = vld [vmem:[%s6 + $0x34] sm:$0xf]
        %v1199 = vld [vmem:[%s6 + $0x38] sm:$0xf]
        %v1200 = vld [vmem:[%s6 + $0x3c] sm:$0xf]
        %v1201 = vld [vmem:[%s6 + $0x40] sm:$0xf]
        %v1202 = vld [vmem:[%s6 + $0x44] sm:$0xf]
        %v1203 = vld [vmem:[%s6 + $0x48] sm:$0xf]
        %v1204 = vld [vmem:[%s6 + $0x4c] sm:$0xf]
        %v1205 = vld [vmem:[%s6 + $0x50] sm:$0xf]
        %v1206 = vld [vmem:[%s6 + $0x54] sm:$0xf]
        %v1207 = vld [vmem:[%s6 + $0x58] sm:$0xf]
        %v1208 = vld [vmem:[%s6 + $0x5c] sm:$0xf]
        %v1209 = vld [vmem:[%s6 + $0x60] sm:$0xf]
        %v1210 = vld [vmem:[%s6 + $0x64] sm:$0xf]
        %v1211 = vld [vmem:[%s6 + $0x68] sm:$0xf]
        %v1212 = vld [vmem:[%s6 + $0x6c] sm:$0xf]
        %v1213 = vld [vmem:[%s6 + $0x70] sm:$0xf]
        %v1214 = vld [vmem:[%s6 + $0x74] sm:$0xf]
        %v1215 = vld [vmem:[%s6 + $0x78] sm:$0xf]
        %v1216 = vld [vmem:[%s6 + $0x7c] sm:$0xf]
        %v1217 = vpack.c.bf16 %v1178, %v1176
        %v1218 = vpack.c.bf16 %v1183, %v1181
        %v1219 = vld [vmem:[%s7] sm:$0x1]
        %v1221 = vperm.slane %v1219, 0
        %v1255 = vunpack.c.l.b16 %v1185
        %v1256 = vunpack.c.l.b16 %v1186
        %v1257 = vunpack.c.l.b16 %v1187
        %v1258 = vunpack.c.l.b16 %v1188
        %v1259 = vunpack.c.l.b16 %v1189
        %v1260 = vunpack.c.l.b16 %v1190
        %v1261 = vunpack.c.l.b16 %v1191
        %v1262 = vunpack.c.l.b16 %v1192
        %v1263 = vunpack.c.l.b16 %v1193
        %v1264 = vunpack.c.l.b16 %v1194
        %v1265 = vunpack.c.l.b16 %v1195
        %v1266 = vunpack.c.l.b16 %v1196
        %v1267 = vunpack.c.l.b16 %v1197
        %v1268 = vunpack.c.l.b16 %v1198
        %v1269 = vunpack.c.l.b16 %v1199
        %v1270 = vunpack.c.l.b16 %v1200
        %v1271 = vunpack.c.l.b16 %v1201
        %v1272 = vunpack.c.l.b16 %v1202
        %v1273 = vunpack.c.l.b16 %v1203
        %v1274 = vunpack.c.l.b16 %v1204
        %v1275 = vunpack.c.l.b16 %v1205
        %v1276 = vunpack.c.l.b16 %v1206
        %v1277 = vunpack.c.l.b16 %v1207
        %v1278 = vunpack.c.l.b16 %v1208
        %v1279 = vunpack.c.l.b16 %v1209
        %v1280 = vunpack.c.l.b16 %v1210
        %v1281 = vunpack.c.l.b16 %v1211
        %v1282 = vunpack.c.l.b16 %v1212
        %v1283 = vunpack.c.l.b16 %v1213
        %v1284 = vunpack.c.l.b16 %v1214
        %v1285 = vunpack.c.l.b16 %v1215
        %v1286 = vunpack.c.l.b16 %v1216
        %v1287 = vpack.c.b16 %v1256, %v1255
        %v1288 = vpack.c.b16 %v1258, %v1257
        %v1289 = vpack.c.b16 %v1260, %v1259
        %v1290 = vpack.c.b16 %v1262, %v1261
        %v1291 = vpack.c.b16 %v1264, %v1263
        %v1292 = vpack.c.b16 %v1266, %v1265
        %v1293 = vpack.c.b16 %v1268, %v1267
        %v1294 = vpack.c.b16 %v1270, %v1269
        %v1295 = vpack.c.b16 %v1272, %v1271
        %v1296 = vpack.c.b16 %v1274, %v1273
        %v1297 = vpack.c.b16 %v1276, %v1275
        %v1298 = vpack.c.b16 %v1278, %v1277
        %v1299 = vpack.c.b16 %v1280, %v1279
        %v1300 = vpack.c.b16 %v1282, %v1281
        %v1301 = vpack.c.b16 %v1284, %v1283
        %v1302 = vpack.c.b16 %v1286, %v1285
        %1319 = vmatpush.bf16.msra.mxu0 %v1294
        %1320 = vmatpush.bf16.msra.mxu0 %v1293
        %1321 = vmatpush.bf16.msra.mxu0 %v1292
        %1322 = vmatpush.bf16.msra.mxu0 %v1291
        %1323 = vmatpush.bf16.msra.mxu0 %v1290
        %1324 = vmatpush.bf16.msra.mxu0 %v1289
        %1325 = vmatpush.bf16.msra.mxu0 %v1288
        %1326 = vmatpush.bf16.msra.mxu0 %v1287
        %1327 = vmatmul.bf16.gmra.mxu0 %v1217
        %v1328 = vpop.f32.mrf.mxu0
        %v1329 = vadd.f32 %v1221, %v1328
        %v1330 = vpop.f32.mrf.mxu0
        %v1331 = vadd.f32 %v1221, %v1330
        %1332 = vdwg.mxu0
        %1333 = vmatpush.bf16.msra.mxu0 %v1302
        %1334 = vmatpush.bf16.msra.mxu0 %v1301
        %1335 = vmatpush.bf16.msra.mxu0 %v1300
        %1336 = vmatpush.bf16.msra.mxu0 %v1299
        %1337 = vmatpush.bf16.msra.mxu0 %v1298
        %1338 = vmatpush.bf16.msra.mxu0 %v1297
        %1339 = vmatpush.bf16.msra.mxu0 %v1296
        %1340 = vmatpush.bf16.msra.mxu0 %v1295
        %1341 = vmatmul.bf16.gmra.mxu0 %v1218
        %v1342 = vpop.f32.mrf.mxu0
        %v1343 = vadd.f32 %v1329, %v1342
        %v1344 = vpop.f32.mrf.mxu0
        %v1345 = vadd.f32 %v1331, %v1344
        %1346 = vdwg.mxu0
        %v1347 = vadd.f32 %v1343, %v695
        %v1348 = vadd.f32 %v1345, %v696
        %v1349 = vld [vmem:[%s8] sm:$0x1]
        %v1350 = vld [vmem:[%s9] sm:$0x1]
        %1351 = vadd.xlane.f32.xlu0 %v1347
        %v1352 = vpop.xlane.xlu0 %1351
        %1353 = vadd.xlane.f32.xlu0 %v1348
        %v1354 = vpop.xlane.xlu0 %1353
        %v1355 = vmul.f32 %v1352, %v650
        %v1356 = vmul.f32 %v1354, %v650
        %v1357 = vsub.f32 %v1347, %v1355
        %v1358 = vsub.f32 %v1348, %v1356
        %v1359 = vmul.f32 %v1357, %v1357
        %v1360 = vmul.f32 %v1358, %v1358
        %1361 = vadd.xlane.f32.xlu0 %v1359
        %v1362 = vpop.xlane.xlu0 %1361
        %1363 = vadd.xlane.f32.xlu0 %v1360
        %v1364 = vpop.xlane.xlu0 %1363
        %v1365 = vmul.f32 %v1362, %v650
        %v1366 = vmul.f32 %v1364, %v650
        %v1367 = vadd.f32 %v1365, 1e-12
        %v1368 = vadd.f32 %v1366, 1e-12
        %v1369 = vrsqrt.pop %v1367
        %v1370 = vmul.f32 %v1369, %v1367
        %v1371 = vmul.f32 %v1370, %v1369
        %v1372 = vmul.f32 0.5, %v1371
        %v1373 = vsub.f32 1.5, %v1372
        %v1374 = vmul.f32 %v1369, %v1373
        %vm1375 = vweird.f32 %v1367
        %vm1376 = vweird.f32 %v1369
        %vm1377 = vmor %vm1375, %vm1376
        %v1378 = vsel %vm1377, %v1369, %v1374
        %v1379 = vrsqrt.pop %v1368
        %v1380 = vmul.f32 %v1379, %v1368
        %v1381 = vmul.f32 %v1380, %v1379
        %v1382 = vmul.f32 0.5, %v1381
        %v1383 = vsub.f32 1.5, %v1382
        %v1384 = vmul.f32 %v1379, %v1383
        %vm1385 = vweird.f32 %v1368
        %vm1386 = vweird.f32 %v1379
        %vm1387 = vmor %vm1385, %vm1386
        %v1388 = vsel %vm1387, %v1379, %v1384
        %v1389 = vmul.f32 %v1357, %v1378
        %v1390 = vmul.f32 %v1358, %v1388
        %v1392 = vperm.slane %v1349, 0
        %v1394 = vmul.f32 %v1389, %v1392
        %v1395 = vmul.f32 %v1390, %v1392
        %v1397 = vperm.slane %v1350, 0
        %v1399 = vadd.f32 %v1394, %v1397
        %v1400 = vadd.f32 %v1395, %v1397
        %v1401 = vld [vmem:[%s10] sm:$0xff]
        %v1402 = vld [vmem:[%s10 + $0x8] sm:$0xff]
        %v1403 = vld [vmem:[%s10 + $0x10] sm:$0xff]
        %v1404 = vld [vmem:[%s10 + $0x18] sm:$0xff]
        %v1405 = vld [vmem:[%s10 + $0x20] sm:$0xff]
        %v1406 = vld [vmem:[%s10 + $0x28] sm:$0xff]
        %v1407 = vld [vmem:[%s10 + $0x30] sm:$0xff]
        %v1408 = vld [vmem:[%s10 + $0x38] sm:$0xff]
        %v1409 = vld [vmem:[%s10 + $0x40] sm:$0xff]
        %v1410 = vld [vmem:[%s10 + $0x48] sm:$0xff]
        %v1411 = vld [vmem:[%s10 + $0x50] sm:$0xff]
        %v1412 = vld [vmem:[%s10 + $0x58] sm:$0xff]
        %v1413 = vld [vmem:[%s10 + $0x60] sm:$0xff]
        %v1414 = vld [vmem:[%s10 + $0x68] sm:$0xff]
        %v1415 = vld [vmem:[%s10 + $0x70] sm:$0xff]
        %v1416 = vld [vmem:[%s10 + $0x78] sm:$0xff]
        %v1417 = vpack.c.bf16 %v1400, %v1399
        %v1418 = vld [vmem:[%s11] sm:$0x3]
        %v1420 = vperm.slane %v1418, 0
        %v1421 = vperm.slane %v1418, 1
        %v1440 = vunpack.c.l.b16 %v1401
        %v1441 = vunpack.c.h.b16 %v1401
        %v1442 = vunpack.c.l.b16 %v1402
        %v1443 = vunpack.c.h.b16 %v1402
        %v1444 = vunpack.c.l.b16 %v1403
        %v1445 = vunpack.c.h.b16 %v1403
        %v1446 = vunpack.c.l.b16 %v1404
        %v1447 = vunpack.c.h.b16 %v1404
        %v1448 = vunpack.c.l.b16 %v1405
        %v1449 = vunpack.c.h.b16 %v1405
        %v1450 = vunpack.c.l.b16 %v1406
        %v1451 = vunpack.c.h.b16 %v1406
        %v1452 = vunpack.c.l.b16 %v1407
        %v1453 = vunpack.c.h.b16 %v1407
        %v1454 = vunpack.c.l.b16 %v1408
        %v1455 = vunpack.c.h.b16 %v1408
        %v1456 = vunpack.c.l.b16 %v1409
        %v1457 = vunpack.c.h.b16 %v1409
        %v1458 = vunpack.c.l.b16 %v1410
        %v1459 = vunpack.c.h.b16 %v1410
        %v1460 = vunpack.c.l.b16 %v1411
        %v1461 = vunpack.c.h.b16 %v1411
        %v1462 = vunpack.c.l.b16 %v1412
        %v1463 = vunpack.c.h.b16 %v1412
        %v1464 = vunpack.c.l.b16 %v1413
        %v1465 = vunpack.c.h.b16 %v1413
        %v1466 = vunpack.c.l.b16 %v1414
        %v1467 = vunpack.c.h.b16 %v1414
        %v1468 = vunpack.c.l.b16 %v1415
        %v1469 = vunpack.c.h.b16 %v1415
        %v1470 = vunpack.c.l.b16 %v1416
        %v1471 = vunpack.c.h.b16 %v1416
        %v1472 = vpack.c.b16 %v1442, %v1440
        %v1473 = vpack.c.b16 %v1443, %v1441
        %v1474 = vpack.c.b16 %v1446, %v1444
        %v1475 = vpack.c.b16 %v1447, %v1445
        %v1476 = vpack.c.b16 %v1450, %v1448
        %v1477 = vpack.c.b16 %v1451, %v1449
        %v1478 = vpack.c.b16 %v1454, %v1452
        %v1479 = vpack.c.b16 %v1455, %v1453
        %v1480 = vpack.c.b16 %v1458, %v1456
        %v1481 = vpack.c.b16 %v1459, %v1457
        %v1482 = vpack.c.b16 %v1462, %v1460
        %v1483 = vpack.c.b16 %v1463, %v1461
        %v1484 = vpack.c.b16 %v1466, %v1464
        %v1485 = vpack.c.b16 %v1467, %v1465
        %v1486 = vpack.c.b16 %v1470, %v1468
        %v1487 = vpack.c.b16 %v1471, %v1469
        %1504 = vmatpush.bf16.msra.mxu0 %v1486
        %1505 = vmatpush.bf16.msra.mxu0 %v1484
        %1506 = vmatpush.bf16.msra.mxu0 %v1482
        %1507 = vmatpush.bf16.msra.mxu0 %v1480
        %1508 = vmatpush.bf16.msra.mxu0 %v1478
        %1509 = vmatpush.bf16.msra.mxu0 %v1476
        %1510 = vmatpush.bf16.msra.mxu0 %v1474
        %1511 = vmatpush.bf16.msra.mxu0 %v1472
        %1512 = vmatmul.bf16.gmra.mxu0 %v1417
        %v1513 = vpop.f32.mrf.mxu0
        %v1514 = vadd.f32 %v1420, %v1513
        %v1515 = vpop.f32.mrf.mxu0
        %v1516 = vadd.f32 %v1420, %v1515
        %1517 = vdwg.mxu0
        %1518 = vmatpush.bf16.msra.mxu0 %v1487
        %1519 = vmatpush.bf16.msra.mxu0 %v1485
        %1520 = vmatpush.bf16.msra.mxu0 %v1483
        %1521 = vmatpush.bf16.msra.mxu0 %v1481
        %1522 = vmatpush.bf16.msra.mxu0 %v1479
        %1523 = vmatpush.bf16.msra.mxu0 %v1477
        %1524 = vmatpush.bf16.msra.mxu0 %v1475
        %1525 = vmatpush.bf16.msra.mxu0 %v1473
        %1526 = vmatmul.bf16.gmra.mxu0 %v1417
        %v1527 = vpop.f32.mrf.mxu0
        %v1528 = vadd.f32 %v1421, %v1527
        %v1529 = vpop.f32.mrf.mxu0
        %v1530 = vadd.f32 %v1421, %v1529
        %1531 = vdwg.mxu0
        %v1532 = vmul.f32 %v1514, %v1514
        %v1533 = vmul.f32 %v1528, %v1528
        %v1534 = vmul.f32 %v1516, %v1516
        %v1535 = vmul.f32 %v1530, %v1530
        %v1536 = vmul.f32 %v1514, %v1532
        %v1537 = vmul.f32 %v1528, %v1533
        %v1538 = vmul.f32 %v1516, %v1534
        %v1539 = vmul.f32 %v1530, %v1535
        %v1540 = vmul.f32 %v1536, 0.044715
        %v1541 = vmul.f32 %v1537, 0.044715
        %v1542 = vmul.f32 %v1538, 0.044715
        %v1543 = vmul.f32 %v1539, 0.044715
        %v1544 = vadd.f32 %v1514, %v1540
        %v1545 = vadd.f32 %v1528, %v1541
        %v1546 = vadd.f32 %v1516, %v1542
        %v1547 = vadd.f32 %v1530, %v1543
        %v1548 = vmul.f32 %v1544, 0.7978846
        %v1549 = vmul.f32 %v1545, 0.7978846
        %v1550 = vmul.f32 %v1546, 0.7978846
        %v1551 = vmul.f32 %v1547, 0.7978846
        %v1552 = vtanh.pop %v1548
        %v1553 = vtanh.pop %v1549
        %v1554 = vtanh.pop %v1550
        %v1555 = vtanh.pop %v1551
        %v1556 = vadd.f32 %v1552, 1.0
        %v1557 = vadd.f32 %v1553, 1.0
        %v1558 = vadd.f32 %v1554, 1.0
        %v1559 = vadd.f32 %v1555, 1.0
        %v1560 = vmul.f32 %v1556, 0.5
        %v1561 = vmul.f32 %v1557, 0.5
        %v1562 = vmul.f32 %v1558, 0.5
        %v1563 = vmul.f32 %v1559, 0.5
        %v1564 = vmul.f32 %v1514, %v1560
        %v1565 = vmul.f32 %v1528, %v1561
        %v1566 = vmul.f32 %v1516, %v1562
        %v1567 = vmul.f32 %v1530, %v1563
        %v1568 = vld [vmem:[#allocation2] sm:$0xf]
        %v1569 = vld [vmem:[#allocation2 + $0x4] sm:$0xf]
        %v1570 = vld [vmem:[#allocation2 + $0x8] sm:$0xf]
        %v1571 = vld [vmem:[#allocation2 + $0xc] sm:$0xf]
        %v1572 = vld [vmem:[#allocation2 + $0x10] sm:$0xf]
        %v1573 = vld [vmem:[#allocation2 + $0x14] sm:$0xf]
        %v1574 = vld [vmem:[#allocation2 + $0x18] sm:$0xf]
        %v1575 = vld [vmem:[#allocation2 + $0x1c] sm:$0xf]
        %v1576 = vld [vmem:[#allocation2 + $0x20] sm:$0xf]
        %v1577 = vld [vmem:[#allocation2 + $0x24] sm:$0xf]
        %v1578 = vld [vmem:[#allocation2 + $0x28] sm:$0xf]
        %v1579 = vld [vmem:[#allocation2 + $0x2c] sm:$0xf]
        %v1580 = vld [vmem:[#allocation2 + $0x30] sm:$0xf]
        %v1581 = vld [vmem:[#allocation2 + $0x34] sm:$0xf]
        %v1582 = vld [vmem:[#allocation2 + $0x38] sm:$0xf]
        %v1583 = vld [vmem:[#allocation2 + $0x3c] sm:$0xf]
        %v1584 = vld [vmem:[#allocation2 + $0x40] sm:$0xf]
        %v1585 = vld [vmem:[#allocation2 + $0x44] sm:$0xf]
        %v1586 = vld [vmem:[#allocation2 + $0x48] sm:$0xf]
        %v1587 = vld [vmem:[#allocation2 + $0x4c] sm:$0xf]
        %v1588 = vld [vmem:[#allocation2 + $0x50] sm:$0xf]
        %v1589 = vld [vmem:[#allocation2 + $0x54] sm:$0xf]
        %v1590 = vld [vmem:[#allocation2 + $0x58] sm:$0xf]
        %v1591 = vld [vmem:[#allocation2 + $0x5c] sm:$0xf]
        %v1592 = vld [vmem:[#allocation2 + $0x60] sm:$0xf]
        %v1593 = vld [vmem:[#allocation2 + $0x64] sm:$0xf]
        %v1594 = vld [vmem:[#allocation2 + $0x68] sm:$0xf]
        %v1595 = vld [vmem:[#allocation2 + $0x6c] sm:$0xf]
        %v1596 = vld [vmem:[#allocation2 + $0x70] sm:$0xf]
        %v1597 = vld [vmem:[#allocation2 + $0x74] sm:$0xf]
        %v1598 = vld [vmem:[#allocation2 + $0x78] sm:$0xf]
        %v1599 = vld [vmem:[#allocation2 + $0x7c] sm:$0xf]
        %v1600 = vpack.c.bf16 %v1566, %v1564
        %v1601 = vpack.c.bf16 %v1567, %v1565
        %v1602 = vld [vmem:[%s13] sm:$0x1]
        %v1604 = vperm.slane %v1602, 0
        %v1638 = vunpack.c.l.b16 %v1568
        %v1639 = vunpack.c.l.b16 %v1569
        %v1640 = vunpack.c.l.b16 %v1570
        %v1641 = vunpack.c.l.b16 %v1571
        %v1642 = vunpack.c.l.b16 %v1572
        %v1643 = vunpack.c.l.b16 %v1573
        %v1644 = vunpack.c.l.b16 %v1574
        %v1645 = vunpack.c.l.b16 %v1575
        %v1646 = vunpack.c.l.b16 %v1576
        %v1647 = vunpack.c.l.b16 %v1577
        %v1648 = vunpack.c.l.b16 %v1578
        %v1649 = vunpack.c.l.b16 %v1579
        %v1650 = vunpack.c.l.b16 %v1580
        %v1651 = vunpack.c.l.b16 %v1581
        %v1652 = vunpack.c.l.b16 %v1582
        %v1653 = vunpack.c.l.b16 %v1583
        %v1654 = vunpack.c.l.b16 %v1584
        %v1655 = vunpack.c.l.b16 %v1585
        %v1656 = vunpack.c.l.b16 %v1586
        %v1657 = vunpack.c.l.b16 %v1587
        %v1658 = vunpack.c.l.b16 %v1588
        %v1659 = vunpack.c.l.b16 %v1589
        %v1660 = vunpack.c.l.b16 %v1590
        %v1661 = vunpack.c.l.b16 %v1591
        %v1662 = vunpack.c.l.b16 %v1592
        %v1663 = vunpack.c.l.b16 %v1593
        %v1664 = vunpack.c.l.b16 %v1594
        %v1665 = vunpack.c.l.b16 %v1595
        %v1666 = vunpack.c.l.b16 %v1596
        %v1667 = vunpack.c.l.b16 %v1597
        %v1668 = vunpack.c.l.b16 %v1598
        %v1669 = vunpack.c.l.b16 %v1599
        %v1670 = vpack.c.b16 %v1639, %v1638
        %v1671 = vpack.c.b16 %v1641, %v1640
        %v1672 = vpack.c.b16 %v1643, %v1642
        %v1673 = vpack.c.b16 %v1645, %v1644
        %v1674 = vpack.c.b16 %v1647, %v1646
        %v1675 = vpack.c.b16 %v1649, %v1648
        %v1676 = vpack.c.b16 %v1651, %v1650
        %v1677 = vpack.c.b16 %v1653, %v1652
        %v1678 = vpack.c.b16 %v1655, %v1654
        %v1679 = vpack.c.b16 %v1657, %v1656
        %v1680 = vpack.c.b16 %v1659, %v1658
        %v1681 = vpack.c.b16 %v1661, %v1660
        %v1682 = vpack.c.b16 %v1663, %v1662
        %v1683 = vpack.c.b16 %v1665, %v1664
        %v1684 = vpack.c.b16 %v1667, %v1666
        %v1685 = vpack.c.b16 %v1669, %v1668
        %1702 = vmatpush.bf16.msra.mxu0 %v1677
        %1703 = vmatpush.bf16.msra.mxu0 %v1676
        %1704 = vmatpush.bf16.msra.mxu0 %v1675
        %1705 = vmatpush.bf16.msra.mxu0 %v1674
        %1706 = vmatpush.bf16.msra.mxu0 %v1673
        %1707 = vmatpush.bf16.msra.mxu0 %v1672
        %1708 = vmatpush.bf16.msra.mxu0 %v1671
        %1709 = vmatpush.bf16.msra.mxu0 %v1670
        %1710 = vmatmul.bf16.gmra.mxu0 %v1600
        %v1711 = vpop.f32.mrf.mxu0
        %v1712 = vadd.f32 %v1604, %v1711
        %v1713 = vpop.f32.mrf.mxu0
        %v1714 = vadd.f32 %v1604, %v1713
        %1715 = vdwg.mxu0
        %1716 = vmatpush.bf16.msra.mxu0 %v1685
        %1717 = vmatpush.bf16.msra.mxu0 %v1684
        %1718 = vmatpush.bf16.msra.mxu0 %v1683
        %1719 = vmatpush.bf16.msra.mxu0 %v1682
        %1720 = vmatpush.bf16.msra.mxu0 %v1681
        %1721 = vmatpush.bf16.msra.mxu0 %v1680
        %1722 = vmatpush.bf16.msra.mxu0 %v1679
        %1723 = vmatpush.bf16.msra.mxu0 %v1678
        %1724 = vmatmul.bf16.gmra.mxu0 %v1601
        %v1725 = vpop.f32.mrf.mxu0
        %v1726 = vadd.f32 %v1712, %v1725
        %v1727 = vpop.f32.mrf.mxu0
        %v1728 = vadd.f32 %v1714, %v1727
        %1729 = vdwg.mxu0
        %v1730 = vadd.f32 %v1726, %v1399
        %v1731 = vadd.f32 %v1728, %v1400
        %v1732 = vld [vmem:[%s14] sm:$0x1]
        %v1733 = vld [vmem:[%s15] sm:$0x1]
        %1734 = vadd.xlane.f32.xlu0 %v1730
        %v1735 = vpop.xlane.xlu0 %1734
        %1736 = vadd.xlane.f32.xlu0 %v1731
        %v1737 = vpop.xlane.xlu0 %1736
        %v1738 = vmul.f32 %v1735, %v650
        %v1739 = vmul.f32 %v1737, %v650
        %v1740 = vsub.f32 %v1730, %v1738
        %v1741 = vsub.f32 %v1731, %v1739
        %v1742 = vmul.f32 %v1740, %v1740
        %v1743 = vmul.f32 %v1741, %v1741
        %1744 = vadd.xlane.f32.xlu0 %v1742
        %v1745 = vpop.xlane.xlu0 %1744
        %1746 = vadd.xlane.f32.xlu0 %v1743
        %v1747 = vpop.xlane.xlu0 %1746
        %v1748 = vmul.f32 %v1745, %v650
        %v1749 = vmul.f32 %v1747, %v650
        %v1750 = vadd.f32 %v1748, 1e-12
        %v1751 = vadd.f32 %v1749, 1e-12
        %v1752 = vrsqrt.pop %v1750
        %v1753 = vmul.f32 %v1752, %v1750
        %v1754 = vmul.f32 %v1753, %v1752
        %v1755 = vmul.f32 0.5, %v1754
        %v1756 = vsub.f32 1.5, %v1755
        %v1757 = vmul.f32 %v1752, %v1756
        %vm1758 = vweird.f32 %v1750
        %vm1759 = vweird.f32 %v1752
        %vm1760 = vmor %vm1758, %vm1759
        %v1761 = vsel %vm1760, %v1752, %v1757
        %v1762 = vrsqrt.pop %v1751
        %v1763 = vmul.f32 %v1762, %v1751
        %v1764 = vmul.f32 %v1763, %v1762
        %v1765 = vmul.f32 0.5, %v1764
        %v1766 = vsub.f32 1.5, %v1765
        %v1767 = vmul.f32 %v1762, %v1766
        %vm1768 = vweird.f32 %v1751
        %vm1769 = vweird.f32 %v1762
        %vm1770 = vmor %vm1768, %vm1769
        %v1771 = vsel %vm1770, %v1762, %v1767
        %v1772 = vmul.f32 %v1740, %v1761
        %v1773 = vmul.f32 %v1741, %v1771
        %v1775 = vperm.slane %v1732, 0
        %v1777 = vmul.f32 %v1772, %v1775
        %v1778 = vmul.f32 %v1773, %v1775
        %v1780 = vperm.slane %v1733, 0
        %v1782 = vadd.f32 %v1777, %v1780
        %v1783 = vadd.f32 %v1778, %v1780
        %s1784 = scalar_lea.vmem %s4, 384
        %v1785 = vld [vmem:[%s1784] sm:$0xff]
        %v1786 = vld [vmem:[%s1784 + $0x8] sm:$0xff]
        %v1787 = vld [vmem:[%s1784 + $0x10] sm:$0xff]
        %v1788 = vld [vmem:[%s1784 + $0x18] sm:$0xff]
        %v1789 = vld [vmem:[%s1784 + $0x20] sm:$0xff]
        %v1790 = vld [vmem:[%s1784 + $0x28] sm:$0xff]
        %v1791 = vld [vmem:[%s1784 + $0x30] sm:$0xff]
        %v1792 = vld [vmem:[%s1784 + $0x38] sm:$0xff]
        %v1793 = vld [vmem:[%s1784 + $0x40] sm:$0xff]
        %v1794 = vld [vmem:[%s1784 + $0x48] sm:$0xff]
        %v1795 = vld [vmem:[%s1784 + $0x50] sm:$0xff]
        %v1796 = vld [vmem:[%s1784 + $0x58] sm:$0xff]
        %v1797 = vld [vmem:[%s1784 + $0x60] sm:$0xff]
        %v1798 = vld [vmem:[%s1784 + $0x68] sm:$0xff]
        %v1799 = vld [vmem:[%s1784 + $0x70] sm:$0xff]
        %v1800 = vld [vmem:[%s1784 + $0x78] sm:$0xff]
        %v1801 = vld [vmem:[%s1784 + $0x80] sm:$0xff]
        %v1802 = vld [vmem:[%s1784 + $0x88] sm:$0xff]
        %v1803 = vld [vmem:[%s1784 + $0x90] sm:$0xff]
        %v1804 = vld [vmem:[%s1784 + $0x98] sm:$0xff]
        %v1805 = vld [vmem:[%s1784 + $0xa0] sm:$0xff]
        %v1806 = vld [vmem:[%s1784 + $0xa8] sm:$0xff]
        %v1807 = vld [vmem:[%s1784 + $0xb0] sm:$0xff]
        %v1808 = vld [vmem:[%s1784 + $0xb8] sm:$0xff]
        %v1809 = vld [vmem:[%s1784 + $0xc0] sm:$0xff]
        %v1810 = vld [vmem:[%s1784 + $0xc8] sm:$0xff]
        %v1811 = vld [vmem:[%s1784 + $0xd0] sm:$0xff]
        %v1812 = vld [vmem:[%s1784 + $0xd8] sm:$0xff]
        %v1813 = vld [vmem:[%s1784 + $0xe0] sm:$0xff]
        %v1814 = vld [vmem:[%s1784 + $0xe8] sm:$0xff]
        %v1815 = vld [vmem:[%s1784 + $0xf0] sm:$0xff]
        %v1816 = vld [vmem:[%s1784 + $0xf8] sm:$0xff]
        %v1817 = vld [vmem:[%s1784 + $0x100] sm:$0xff]
        %v1818 = vld [vmem:[%s1784 + $0x108] sm:$0xff]
        %v1819 = vld [vmem:[%s1784 + $0x110] sm:$0xff]
        %v1820 = vld [vmem:[%s1784 + $0x118] sm:$0xff]
        %v1821 = vld [vmem:[%s1784 + $0x120] sm:$0xff]
        %v1822 = vld [vmem:[%s1784 + $0x128] sm:$0xff]
        %v1823 = vld [vmem:[%s1784 + $0x130] sm:$0xff]
        %v1824 = vld [vmem:[%s1784 + $0x138] sm:$0xff]
        %v1825 = vld [vmem:[%s1784 + $0x140] sm:$0xff]
        %v1826 = vld [vmem:[%s1784 + $0x148] sm:$0xff]
        %v1827 = vld [vmem:[%s1784 + $0x150] sm:$0xff]
        %v1828 = vld [vmem:[%s1784 + $0x158] sm:$0xff]
        %v1829 = vld [vmem:[%s1784 + $0x160] sm:$0xff]
        %v1830 = vld [vmem:[%s1784 + $0x168] sm:$0xff]
        %v1831 = vld [vmem:[%s1784 + $0x170] sm:$0xff]
        %v1832 = vld [vmem:[%s1784 + $0x178] sm:$0xff]
        %v1833 = vpack.c.bf16 %v1783, %v1782
        %s1834 = scalar_lea.vmem %s5, 6
        %v1835 = vld [vmem:[%s1834] sm:$0x3f]
        %v1837 = vperm.slane %v1835, 0
        %v1838 = vperm.slane %v1835, 1
        %v1839 = vperm.slane %v1835, 2
        %v1840 = vperm.slane %v1835, 3
        %v1841 = vperm.slane %v1835, 4
        %v1842 = vperm.slane %v1835, 5
        %v1897 = vunpack.c.l.b16 %v1785
        %v1898 = vunpack.c.h.b16 %v1785
        %v1899 = vunpack.c.l.b16 %v1786
        %v1900 = vunpack.c.h.b16 %v1786
        %v1901 = vunpack.c.l.b16 %v1787
        %v1902 = vunpack.c.h.b16 %v1787
        %v1903 = vunpack.c.l.b16 %v1788
        %v1904 = vunpack.c.h.b16 %v1788
        %v1905 = vunpack.c.l.b16 %v1789
        %v1906 = vunpack.c.h.b16 %v1789
        %v1907 = vunpack.c.l.b16 %v1790
        %v1908 = vunpack.c.h.b16 %v1790
        %v1909 = vunpack.c.l.b16 %v1791
        %v1910 = vunpack.c.h.b16 %v1791
        %v1911 = vunpack.c.l.b16 %v1792
        %v1912 = vunpack.c.h.b16 %v1792
        %v1913 = vunpack.c.l.b16 %v1793
        %v1914 = vunpack.c.h.b16 %v1793
        %v1915 = vunpack.c.l.b16 %v1794
        %v1916 = vunpack.c.h.b16 %v1794
        %v1917 = vunpack.c.l.b16 %v1795
        %v1918 = vunpack.c.h.b16 %v1795
        %v1919 = vunpack.c.l.b16 %v1796
        %v1920 = vunpack.c.h.b16 %v1796
        %v1921 = vunpack.c.l.b16 %v1797
        %v1922 = vunpack.c.h.b16 %v1797
        %v1923 = vunpack.c.l.b16 %v1798
        %v1924 = vunpack.c.h.b16 %v1798
        %v1925 = vunpack.c.l.b16 %v1799
        %v1926 = vunpack.c.h.b16 %v1799
        %v1927 = vunpack.c.l.b16 %v1800
        %v1928 = vunpack.c.h.b16 %v1800
        %v1929 = vunpack.c.l.b16 %v1801
        %v1930 = vunpack.c.h.b16 %v1801
        %v1931 = vunpack.c.l.b16 %v1802
        %v1932 = vunpack.c.h.b16 %v1802
        %v1933 = vunpack.c.l.b16 %v1803
        %v1934 = vunpack.c.h.b16 %v1803
        %v1935 = vunpack.c.l.b16 %v1804
        %v1936 = vunpack.c.h.b16 %v1804
        %v1937 = vunpack.c.l.b16 %v1805
        %v1938 = vunpack.c.h.b16 %v1805
        %v1939 = vunpack.c.l.b16 %v1806
        %v1940 = vunpack.c.h.b16 %v1806
        %v1941 = vunpack.c.l.b16 %v1807
        %v1942 = vunpack.c.h.b16 %v1807
        %v1943 = vunpack.c.l.b16 %v1808
        %v1944 = vunpack.c.h.b16 %v1808
        %v1945 = vunpack.c.l.b16 %v1809
        %v1946 = vunpack.c.h.b16 %v1809
        %v1947 = vunpack.c.l.b16 %v1810
        %v1948 = vunpack.c.h.b16 %v1810
        %v1949 = vunpack.c.l.b16 %v1811
        %v1950 = vunpack.c.h.b16 %v1811
        %v1951 = vunpack.c.l.b16 %v1812
        %v1952 = vunpack.c.h.b16 %v1812
        %v1953 = vunpack.c.l.b16 %v1813
        %v1954 = vunpack.c.h.b16 %v1813
        %v1955 = vunpack.c.l.b16 %v1814
        %v1956 = vunpack.c.h.b16 %v1814
        %v1957 = vunpack.c.l.b16 %v1815
        %v1958 = vunpack.c.h.b16 %v1815
        %v1959 = vunpack.c.l.b16 %v1816
        %v1960 = vunpack.c.h.b16 %v1816
        %v1961 = vunpack.c.l.b16 %v1817
        %v1962 = vunpack.c.h.b16 %v1817
        %v1963 = vunpack.c.l.b16 %v1818
        %v1964 = vunpack.c.h.b16 %v1818
        %v1965 = vunpack.c.l.b16 %v1819
        %v1966 = vunpack.c.h.b16 %v1819
        %v1967 = vunpack.c.l.b16 %v1820
        %v1968 = vunpack.c.h.b16 %v1820
        %v1969 = vunpack.c.l.b16 %v1821
        %v1970 = vunpack.c.h.b16 %v1821
        %v1971 = vunpack.c.l.b16 %v1822
        %v1972 = vunpack.c.h.b16 %v1822
        %v1973 = vunpack.c.l.b16 %v1823
        %v1974 = vunpack.c.h.b16 %v1823
        %v1975 = vunpack.c.l.b16 %v1824
        %v1976 = vunpack.c.h.b16 %v1824
        %v1977 = vunpack.c.l.b16 %v1825
        %v1978 = vunpack.c.h.b16 %v1825
        %v1979 = vunpack.c.l.b16 %v1826
        %v1980 = vunpack.c.h.b16 %v1826
        %v1981 = vunpack.c.l.b16 %v1827
        %v1982 = vunpack.c.h.b16 %v1827
        %v1983 = vunpack.c.l.b16 %v1828
        %v1984 = vunpack.c.h.b16 %v1828
        %v1985 = vunpack.c.l.b16 %v1829
        %v1986 = vunpack.c.h.b16 %v1829
        %v1987 = vunpack.c.l.b16 %v1830
        %v1988 = vunpack.c.h.b16 %v1830
        %v1989 = vunpack.c.l.b16 %v1831
        %v1990 = vunpack.c.h.b16 %v1831
        %v1991 = vunpack.c.l.b16 %v1832
        %v1992 = vunpack.c.h.b16 %v1832
        %v1993 = vpack.c.b16 %v1903, %v1897
        %v1994 = vpack.c.b16 %v1904, %v1898
        %v1995 = vpack.c.b16 %v1905, %v1899
        %v1996 = vpack.c.b16 %v1906, %v1900
        %v1997 = vpack.c.b16 %v1907, %v1901
        %v1998 = vpack.c.b16 %v1908, %v1902
        %v1999 = vpack.c.b16 %v1915, %v1909
        %v2000 = vpack.c.b16 %v1916, %v1910
        %v2001 = vpack.c.b16 %v1917, %v1911
        %v2002 = vpack.c.b16 %v1918, %v1912
        %v2003 = vpack.c.b16 %v1919, %v1913
        %v2004 = vpack.c.b16 %v1920, %v1914
        %v2005 = vpack.c.b16 %v1927, %v1921
        %v2006 = vpack.c.b16 %v1928, %v1922
        %v2007 = vpack.c.b16 %v1929, %v1923
        %v2008 = vpack.c.b16 %v1930, %v1924
        %v2009 = vpack.c.b16 %v1931, %v1925
        %v2010 = vpack.c.b16 %v1932, %v1926
        %v2011 = vpack.c.b16 %v1939, %v1933
        %v2012 = vpack.c.b16 %v1940, %v1934
        %v2013 = vpack.c.b16 %v1941, %v1935
        %v2014 = vpack.c.b16 %v1942, %v1936
        %v2015 = vpack.c.b16 %v1943, %v1937
        %v2016 = vpack.c.b16 %v1944, %v1938
        %v2017 = vpack.c.b16 %v1951, %v1945
        %v2018 = vpack.c.b16 %v1952, %v1946
        %v2019 = vpack.c.b16 %v1953, %v1947
        %v2020 = vpack.c.b16 %v1954, %v1948
        %v2021 = vpack.c.b16 %v1955, %v1949
        %v2022 = vpack.c.b16 %v1956, %v1950
        %v2023 = vpack.c.b16 %v1963, %v1957
        %v2024 = vpack.c.b16 %v1964, %v1958
        %v2025 = vpack.c.b16 %v1965, %v1959
        %v2026 = vpack.c.b16 %v1966, %v1960
        %v2027 = vpack.c.b16 %v1967, %v1961
        %v2028 = vpack.c.b16 %v1968, %v1962
        %v2029 = vpack.c.b16 %v1975, %v1969
        %v2030 = vpack.c.b16 %v1976, %v1970
        %v2031 = vpack.c.b16 %v1977, %v1971
        %v2032 = vpack.c.b16 %v1978, %v1972
        %v2033 = vpack.c.b16 %v1979, %v1973
        %v2034 = vpack.c.b16 %v1980, %v1974
        %v2035 = vpack.c.b16 %v1987, %v1981
        %v2036 = vpack.c.b16 %v1988, %v1982
        %v2037 = vpack.c.b16 %v1989, %v1983
        %v2038 = vpack.c.b16 %v1990, %v1984
        %v2039 = vpack.c.b16 %v1991, %v1985
        %v2040 = vpack.c.b16 %v1992, %v1986
        %2089 = vmatpush.bf16.msra.mxu0 %v2035
        %2090 = vmatpush.bf16.msra.mxu0 %v2029
        %2091 = vmatpush.bf16.msra.mxu0 %v2023
        %2092 = vmatpush.bf16.msra.mxu0 %v2017
        %2093 = vmatpush.bf16.msra.mxu0 %v2011
        %2094 = vmatpush.bf16.msra.mxu0 %v2005
        %2095 = vmatpush.bf16.msra.mxu0 %v1999
        %2096 = vmatpush.bf16.msra.mxu0 %v1993
        %2097 = vmatmul.bf16.gmra.mxu0 %v1833
        %v2098 = vpop.f32.mrf.mxu0
        %v2099 = vadd.f32 %v1837, %v2098
        %v2100 = vpop.f32.mrf.mxu0
        %v2101 = vadd.f32 %v1837, %v2100
        %2102 = vdwg.mxu0
        %2103 = vmatpush.bf16.msra.mxu0 %v2036
        %2104 = vmatpush.bf16.msra.mxu0 %v2030
        %2105 = vmatpush.bf16.msra.mxu0 %v2024
        %2106 = vmatpush.bf16.msra.mxu0 %v2018
        %2107 = vmatpush.bf16.msra.mxu0 %v2012
        %2108 = vmatpush.bf16.msra.mxu0 %v2006
        %2109 = vmatpush.bf16.msra.mxu0 %v2000
        %2110 = vmatpush.bf16.msra.mxu0 %v1994
        %2111 = vmatmul.bf16.gmra.mxu0 %v1833
        %v2112 = vpop.f32.mrf.mxu0
        %v2113 = vadd.f32 %v1838, %v2112
        %v2114 = vpop.f32.mrf.mxu0
        %v2115 = vadd.f32 %v1838, %v2114
        %2116 = vdwg.mxu0
        %2117 = vmatpush.bf16.msra.mxu0 %v2037
        %2118 = vmatpush.bf16.msra.mxu0 %v2031
        %2119 = vmatpush.bf16.msra.mxu0 %v2025
        %2120 = vmatpush.bf16.msra.mxu0 %v2019
        %2121 = vmatpush.bf16.msra.mxu0 %v2013
        %2122 = vmatpush.bf16.msra.mxu0 %v2007
        %2123 = vmatpush.bf16.msra.mxu0 %v2001
        %2124 = vmatpush.bf16.msra.mxu0 %v1995
        %2125 = vmatmul.bf16.gmra.mxu0 %v1833
        %v2126 = vpop.f32.mrf.mxu0
        %v2127 = vadd.f32 %v1839, %v2126
        %v2128 = vpop.f32.mrf.mxu0
        %v2129 = vadd.f32 %v1839, %v2128
        %2130 = vdwg.mxu0
        %2131 = vmatpush.bf16.msra.mxu0 %v2038
        %2132 = vmatpush.bf16.msra.mxu0 %v2032
        %2133 = vmatpush.bf16.msra.mxu0 %v2026
        %2134 = vmatpush.bf16.msra.mxu0 %v2020
        %2135 = vmatpush.bf16.msra.mxu0 %v2014
        %2136 = vmatpush.bf16.msra.mxu0 %v2008
        %2137 = vmatpush.bf16.msra.mxu0 %v2002
        %2138 = vmatpush.bf16.msra.mxu0 %v1996
        %2139 = vmatmul.bf16.gmra.mxu0 %v1833
        %v2140 = vpop.f32.mrf.mxu0
        %v2141 = vadd.f32 %v1840, %v2140
        %v2142 = vpop.f32.mrf.mxu0
        %v2143 = vadd.f32 %v1840, %v2142
        %2144 = vdwg.mxu0
        %2145 = vmatpush.bf16.msra.mxu0 %v2039
        %2146 = vmatpush.bf16.msra.mxu0 %v2033
        %2147 = vmatpush.bf16.msra.mxu0 %v2027
        %2148 = vmatpush.bf16.msra.mxu0 %v2021
        %2149 = vmatpush.bf16.msra.mxu0 %v2015
        %2150 = vmatpush.bf16.msra.mxu0 %v2009
        %2151 = vmatpush.bf16.msra.mxu0 %v2003
        %2152 = vmatpush.bf16.msra.mxu0 %v1997
        %2153 = vmatmul.bf16.gmra.mxu0 %v1833
        %v2154 = vpop.f32.mrf.mxu0
        %v2155 = vadd.f32 %v1841, %v2154
        %v2156 = vpop.f32.mrf.mxu0
        %v2157 = vadd.f32 %v1841, %v2156
        %2158 = vdwg.mxu0
        %2159 = vmatpush.bf16.msra.mxu0 %v2040
        %2160 = vmatpush.bf16.msra.mxu0 %v2034
        %2161 = vmatpush.bf16.msra.mxu0 %v2028
        %2162 = vmatpush.bf16.msra.mxu0 %v2022
        %2163 = vmatpush.bf16.msra.mxu0 %v2016
        %2164 = vmatpush.bf16.msra.mxu0 %v2010
        %2165 = vmatpush.bf16.msra.mxu0 %v2004
        %2166 = vmatpush.bf16.msra.mxu0 %v1998
        %2167 = vmatmul.bf16.gmra.mxu0 %v1833
        %v2168 = vpop.f32.mrf.mxu0
        %v2169 = vadd.f32 %v1842, %v2168
        %v2170 = vpop.f32.mrf.mxu0
        %v2171 = vadd.f32 %v1842, %v2170
        %2172 = vdwg.mxu0
        %v2173 = vpack.c.bf16 %v2101, %v2099
        %v2174 = vpack.c.bf16 %v2115, %v2113
        %v2175 = vpack.c.bf16 %v2129, %v2127
        %v2176 = vpack.c.bf16 %v2143, %v2141
        %v2177 = vpack.c.bf16 %v2157, %v2155
        %v2178 = vpack.c.bf16 %v2171, %v2169
        %2179 = vmatpush.bf16.xpose.msra.mxu0 0
        %2180 = vmatpush.bf16.xpose.msra.mxu0 0
        %2181 = vmatpush.bf16.xpose.msra.mxu0 0
        %2182 = vmatpush.bf16.xpose.msra.mxu0 0
        %2183 = vmatpush.bf16.xpose.msra.mxu0 0
        %2184 = vmatpush.bf16.xpose.msra.mxu0 0
        %2185 = vmatpush.bf16.xpose.msra.mxu0 %v2176
        %2186 = vmatpush.bf16.xpose.msra.mxu0 %v2175
        %2187 = vmatmul.bf16.gmra.mxu0 %v2173
        %v2188 = vpop.f32.mrf.mxu0
        %v2189 = vadd.f32 %v697, %v2188
        %v2190 = vpop.f32.mrf.mxu0
        %v2191 = vadd.f32 %v698, %v2190
        %2192 = vmatmul.bf16.gmra.mxu0 %v2174
        %v2193 = vpop.f32.mrf.mxu0
        %v2194 = vadd.f32 %v699, %v2193
        %v2195 = vpop.f32.mrf.mxu0
        %v2196 = vadd.f32 %v700, %v2195
        %2197 = vdwg.mxu0
        %v2198 = vsel %vm1113, %v2189, -inf
        %2199 = vmax.xlane.f32.xlu0 %v2198
        %v2200 = vpop.xlane.xlu0 %2199
        %v2201 = vsel %vm1113, %v2191, -inf
        %2202 = vmax.xlane.f32.xlu0 %v2201
        %v2203 = vpop.xlane.xlu0 %2202
        %v2204 = vsel %vm1113, %v2194, -inf
        %2205 = vmax.xlane.f32.xlu0 %v2204
        %v2206 = vpop.xlane.xlu0 %2205
        %v2207 = vsel %vm1113, %v2196, -inf
        %2208 = vmax.xlane.f32.xlu0 %v2207
        %v2209 = vpop.xlane.xlu0 %2208
        %v2210 = vsub.f32 %v2189, %v2200
        %v2211 = vsub.f32 %v2191, %v2203
        %v2212 = vsub.f32 %v2194, %v2206
        %v2213 = vsub.f32 %v2196, %v2209
        %v2214 = vmul.f32 %v2210, 1.442695
        %v2215 = vpow.pop %v2214
        %v2216 = vmul.f32 %v2211, 1.442695
        %v2217 = vpow.pop %v2216
        %v2218 = vmul.f32 %v2212, 1.442695
        %v2219 = vpow.pop %v2218
        %v2220 = vmul.f32 %v2213, 1.442695
        %v2221 = vpow.pop %v2220
        %v2222 = vsel %vm1113, %v2215, 0.0
        %2223 = vadd.xlane.f32.xlu0 %v2222
        %v2224 = vpop.xlane.xlu0 %2223
        %v2225 = vsel %vm1113, %v2217, 0.0
        %2226 = vadd.xlane.f32.xlu0 %v2225
        %v2227 = vpop.xlane.xlu0 %2226
        %v2228 = vsel %vm1113, %v2219, 0.0
        %2229 = vadd.xlane.f32.xlu0 %v2228
        %v2230 = vpop.xlane.xlu0 %2229
        %v2231 = vsel %vm1113, %v2221, 0.0
        %2232 = vadd.xlane.f32.xlu0 %v2231
        %v2233 = vpop.xlane.xlu0 %2232
        %v2234 = vrcp.pop %v2224
        %v2235 = vrcp.pop %v2227
        %v2236 = vrcp.pop %v2230
        %v2237 = vrcp.pop %v2233
        %v2238 = vmul.f32 %v2215, %v2234
        %v2239 = vmul.f32 %v2217, %v2235
        %v2240 = vmul.f32 %v2219, %v2236
        %v2241 = vmul.f32 %v2221, %v2237
        %v2242 = vpack.c.bf16 %v2239, %v2238
        %v2243 = vpack.c.bf16 %v2241, %v2240
        %v2245 = vsel %vm1113, %v2242, 0
        %v2248 = vsel %vm1113, %v2243, 0
        %2250 = vmatpush.bf16.msra.mxu0 0
        %2251 = vmatpush.bf16.msra.mxu0 0
        %2252 = vmatpush.bf16.msra.mxu0 0
        %2253 = vmatpush.bf16.msra.mxu0 0
        %2254 = vmatpush.bf16.msra.mxu0 0
        %2255 = vmatpush.bf16.msra.mxu0 0
        %2256 = vmatpush.bf16.msra.mxu0 %v2178
        %2257 = vmatpush.bf16.msra.mxu0 %v2177
        %2258 = vmatmul.bf16.gmra.mxu0 %v2245
        %v2259 = vpop.f32.mrf.mxu0
        %v2260 = vadd.f32 0.0, %v2259
        %v2261 = vpop.f32.mrf.mxu0
        %v2262 = vadd.f32 0.0, %v2261
        %2263 = vmatmul.bf16.gmra.mxu0 %v2248
        %v2264 = vpop.f32.mrf.mxu0
        %v2265 = vadd.f32 0.0, %v2264
        %v2266 = vpop.f32.mrf.mxu0
        %v2267 = vadd.f32 0.0, %v2266
        %2268 = vdwg.mxu0
        %s2269 = scalar_lea.vmem %s6, 128
        %v2270 = vld [vmem:[%s2269] sm:$0xf]
        %v2271 = vld [vmem:[%s2269 + $0x4] sm:$0xf]
        %v2272 = vld [vmem:[%s2269 + $0x8] sm:$0xf]
        %v2273 = vld [vmem:[%s2269 + $0xc] sm:$0xf]
        %v2274 = vld [vmem:[%s2269 + $0x10] sm:$0xf]
        %v2275 = vld [vmem:[%s2269 + $0x14] sm:$0xf]
        %v2276 = vld [vmem:[%s2269 + $0x18] sm:$0xf]
        %v2277 = vld [vmem:[%s2269 + $0x1c] sm:$0xf]
        %v2278 = vld [vmem:[%s2269 + $0x20] sm:$0xf]
        %v2279 = vld [vmem:[%s2269 + $0x24] sm:$0xf]
        %v2280 = vld [vmem:[%s2269 + $0x28] sm:$0xf]
        %v2281 = vld [vmem:[%s2269 + $0x2c] sm:$0xf]
        %v2282 = vld [vmem:[%s2269 + $0x30] sm:$0xf]
        %v2283 = vld [vmem:[%s2269 + $0x34] sm:$0xf]
        %v2284 = vld [vmem:[%s2269 + $0x38] sm:$0xf]
        %v2285 = vld [vmem:[%s2269 + $0x3c] sm:$0xf]
        %v2286 = vld [vmem:[%s2269 + $0x40] sm:$0xf]
        %v2287 = vld [vmem:[%s2269 + $0x44] sm:$0xf]
        %v2288 = vld [vmem:[%s2269 + $0x48] sm:$0xf]
        %v2289 = vld [vmem:[%s2269 + $0x4c] sm:$0xf]
        %v2290 = vld [vmem:[%s2269 + $0x50] sm:$0xf]
        %v2291 = vld [vmem:[%s2269 + $0x54] sm:$0xf]
        %v2292 = vld [vmem:[%s2269 + $0x58] sm:$0xf]
        %v2293 = vld [vmem:[%s2269 + $0x5c] sm:$0xf]
        %v2294 = vld [vmem:[%s2269 + $0x60] sm:$0xf]
        %v2295 = vld [vmem:[%s2269 + $0x64] sm:$0xf]
        %v2296 = vld [vmem:[%s2269 + $0x68] sm:$0xf]
        %v2297 = vld [vmem:[%s2269 + $0x6c] sm:$0xf]
        %v2298 = vld [vmem:[%s2269 + $0x70] sm:$0xf]
        %v2299 = vld [vmem:[%s2269 + $0x74] sm:$0xf]
        %v2300 = vld [vmem:[%s2269 + $0x78] sm:$0xf]
        %v2301 = vld [vmem:[%s2269 + $0x7c] sm:$0xf]
        %v2302 = vpack.c.bf16 %v2262, %v2260
        %v2303 = vpack.c.bf16 %v2267, %v2265
        %s2304 = scalar_lea.vmem %s7, 1
        %v2305 = vld [vmem:[%s2304] sm:$0x1]
        %v2307 = vperm.slane %v2305, 0
        %v2341 = vunpack.c.l.b16 %v2270
        %v2342 = vunpack.c.l.b16 %v2271
        %v2343 = vunpack.c.l.b16 %v2272
        %v2344 = vunpack.c.l.b16 %v2273
        %v2345 = vunpack.c.l.b16 %v2274
        %v2346 = vunpack.c.l.b16 %v2275
        %v2347 = vunpack.c.l.b16 %v2276
        %v2348 = vunpack.c.l.b16 %v2277
        %v2349 = vunpack.c.l.b16 %v2278
        %v2350 = vunpack.c.l.b16 %v2279
        %v2351 = vunpack.c.l.b16 %v2280
        %v2352 = vunpack.c.l.b16 %v2281
        %v2353 = vunpack.c.l.b16 %v2282
        %v2354 = vunpack.c.l.b16 %v2283
        %v2355 = vunpack.c.l.b16 %v2284
        %v2356 = vunpack.c.l.b16 %v2285
        %v2357 = vunpack.c.l.b16 %v2286
        %v2358 = vunpack.c.l.b16 %v2287
        %v2359 = vunpack.c.l.b16 %v2288
        %v2360 = vunpack.c.l.b16 %v2289
        %v2361 = vunpack.c.l.b16 %v2290
        %v2362 = vunpack.c.l.b16 %v2291
        %v2363 = vunpack.c.l.b16 %v2292
        %v2364 = vunpack.c.l.b16 %v2293
        %v2365 = vunpack.c.l.b16 %v2294
        %v2366 = vunpack.c.l.b16 %v2295
        %v2367 = vunpack.c.l.b16 %v2296
        %v2368 = vunpack.c.l.b16 %v2297
        %v2369 = vunpack.c.l.b16 %v2298
        %v2370 = vunpack.c.l.b16 %v2299
        %v2371 = vunpack.c.l.b16 %v2300
        %v2372 = vunpack.c.l.b16 %v2301
        %v2373 = vpack.c.b16 %v2342, %v2341
        %v2374 = vpack.c.b16 %v2344, %v2343
        %v2375 = vpack.c.b16 %v2346, %v2345
        %v2376 = vpack.c.b16 %v2348, %v2347
        %v2377 = vpack.c.b16 %v2350, %v2349
        %v2378 = vpack.c.b16 %v2352, %v2351
        %v2379 = vpack.c.b16 %v2354, %v2353
        %v2380 = vpack.c.b16 %v2356, %v2355
        %v2381 = vpack.c.b16 %v2358, %v2357
        %v2382 = vpack.c.b16 %v2360, %v2359
        %v2383 = vpack.c.b16 %v2362, %v2361
        %v2384 = vpack.c.b16 %v2364, %v2363
        %v2385 = vpack.c.b16 %v2366, %v2365
        %v2386 = vpack.c.b16 %v2368, %v2367
        %v2387 = vpack.c.b16 %v2370, %v2369
        %v2388 = vpack.c.b16 %v2372, %v2371
        %2405 = vmatpush.bf16.msra.mxu0 %v2380
        %2406 = vmatpush.bf16.msra.mxu0 %v2379
        %2407 = vmatpush.bf16.msra.mxu0 %v2378
        %2408 = vmatpush.bf16.msra.mxu0 %v2377
        %2409 = vmatpush.bf16.msra.mxu0 %v2376
        %2410 = vmatpush.bf16.msra.mxu0 %v2375
        %2411 = vmatpush.bf16.msra.mxu0 %v2374
        %2412 = vmatpush.bf16.msra.mxu0 %v2373
        %2413 = vmatmul.bf16.gmra.mxu0 %v2302
        %v2414 = vpop.f32.mrf.mxu0
        %v2415 = vadd.f32 %v2307, %v2414
        %v2416 = vpop.f32.mrf.mxu0
        %v2417 = vadd.f32 %v2307, %v2416
        %2418 = vdwg.mxu0
        %2419 = vmatpush.bf16.msra.mxu0 %v2388
        %2420 = vmatpush.bf16.msra.mxu0 %v2387
        %2421 = vmatpush.bf16.msra.mxu0 %v2386
        %2422 = vmatpush.bf16.msra.mxu0 %v2385
        %2423 = vmatpush.bf16.msra.mxu0 %v2384
        %2424 = vmatpush.bf16.msra.mxu0 %v2383
        %2425 = vmatpush.bf16.msra.mxu0 %v2382
        %2426 = vmatpush.bf16.msra.mxu0 %v2381
        %2427 = vmatmul.bf16.gmra.mxu0 %v2303
        %v2428 = vpop.f32.mrf.mxu0
        %v2429 = vadd.f32 %v2415, %v2428
        %v2430 = vpop.f32.mrf.mxu0
        %v2431 = vadd.f32 %v2417, %v2430
        %2432 = vdwg.mxu0
        %v2433 = vadd.f32 %v2429, %v1782
        %v2434 = vadd.f32 %v2431, %v1783
        %s2435 = scalar_lea.vmem %s8, 1
        %v2436 = vld [vmem:[%s2435] sm:$0x1]
        %s2437 = scalar_lea.vmem %s9, 1
        %v2438 = vld [vmem:[%s2437] sm:$0x1]
        %2439 = vadd.xlane.f32.xlu0 %v2433
        %v2440 = vpop.xlane.xlu0 %2439
        %2441 = vadd.xlane.f32.xlu0 %v2434
        %v2442 = vpop.xlane.xlu0 %2441
        %v2443 = vmul.f32 %v2440, %v650
        %v2444 = vmul.f32 %v2442, %v650
        %v2445 = vsub.f32 %v2433, %v2443
        %v2446 = vsub.f32 %v2434, %v2444
        %v2447 = vmul.f32 %v2445, %v2445
        %v2448 = vmul.f32 %v2446, %v2446
        %2449 = vadd.xlane.f32.xlu0 %v2447
        %v2450 = vpop.xlane.xlu0 %2449
        %2451 = vadd.xlane.f32.xlu0 %v2448
        %v2452 = vpop.xlane.xlu0 %2451
        %v2453 = vmul.f32 %v2450, %v650
        %v2454 = vmul.f32 %v2452, %v650
        %v2455 = vadd.f32 %v2453, 1e-12
        %v2456 = vadd.f32 %v2454, 1e-12
        %v2457 = vrsqrt.pop %v2455
        %v2458 = vmul.f32 %v2457, %v2455
        %v2459 = vmul.f32 %v2458, %v2457
        %v2460 = vmul.f32 0.5, %v2459
        %v2461 = vsub.f32 1.5, %v2460
        %v2462 = vmul.f32 %v2457, %v2461
        %vm2463 = vweird.f32 %v2455
        %vm2464 = vweird.f32 %v2457
        %vm2465 = vmor %vm2463, %vm2464
        %v2466 = vsel %vm2465, %v2457, %v2462
        %v2467 = vrsqrt.pop %v2456
        %v2468 = vmul.f32 %v2467, %v2456
        %v2469 = vmul.f32 %v2468, %v2467
        %v2470 = vmul.f32 0.5, %v2469
        %v2471 = vsub.f32 1.5, %v2470
        %v2472 = vmul.f32 %v2467, %v2471
        %vm2473 = vweird.f32 %v2456
        %vm2474 = vweird.f32 %v2467
        %vm2475 = vmor %vm2473, %vm2474
        %v2476 = vsel %vm2475, %v2467, %v2472
        %v2477 = vmul.f32 %v2445, %v2466
        %v2478 = vmul.f32 %v2446, %v2476
        %v2480 = vperm.slane %v2436, 0
        %v2482 = vmul.f32 %v2477, %v2480
        %v2483 = vmul.f32 %v2478, %v2480
        %v2485 = vperm.slane %v2438, 0
        %v2487 = vadd.f32 %v2482, %v2485
        %v2488 = vadd.f32 %v2483, %v2485
        %s2489 = scalar_lea.vmem %s10, 128
        %v2490 = vld [vmem:[%s2489] sm:$0xff]
        %v2491 = vld [vmem:[%s2489 + $0x8] sm:$0xff]
        %v2492 = vld [vmem:[%s2489 + $0x10] sm:$0xff]
        %v2493 = vld [vmem:[%s2489 + $0x18] sm:$0xff]
        %v2494 = vld [vmem:[%s2489 + $0x20] sm:$0xff]
        %v2495 = vld [vmem:[%s2489 + $0x28] sm:$0xff]
        %v2496 = vld [vmem:[%s2489 + $0x30] sm:$0xff]
        %v2497 = vld [vmem:[%s2489 + $0x38] sm:$0xff]
        %v2498 = vld [vmem:[%s2489 + $0x40] sm:$0xff]
        %v2499 = vld [vmem:[%s2489 + $0x48] sm:$0xff]
        %v2500 = vld [vmem:[%s2489 + $0x50] sm:$0xff]
        %v2501 = vld [vmem:[%s2489 + $0x58] sm:$0xff]
        %v2502 = vld [vmem:[%s2489 + $0x60] sm:$0xff]
        %v2503 = vld [vmem:[%s2489 + $0x68] sm:$0xff]
        %v2504 = vld [vmem:[%s2489 + $0x70] sm:$0xff]
        %v2505 = vld [vmem:[%s2489 + $0x78] sm:$0xff]
        %v2506 = vpack.c.bf16 %v2488, %v2487
        %s2507 = scalar_lea.vmem %s11, 2
        %v2508 = vld [vmem:[%s2507] sm:$0x3]
        %v2510 = vperm.slane %v2508, 0
        %v2511 = vperm.slane %v2508, 1
        %v2530 = vunpack.c.l.b16 %v2490
        %v2531 = vunpack.c.h.b16 %v2490
        %v2532 = vunpack.c.l.b16 %v2491
        %v2533 = vunpack.c.h.b16 %v2491
        %v2534 = vunpack.c.l.b16 %v2492
        %v2535 = vunpack.c.h.b16 %v2492
        %v2536 = vunpack.c.l.b16 %v2493
        %v2537 = vunpack.c.h.b16 %v2493
        %v2538 = vunpack.c.l.b16 %v2494
        %v2539 = vunpack.c.h.b16 %v2494
        %v2540 = vunpack.c.l.b16 %v2495
        %v2541 = vunpack.c.h.b16 %v2495
        %v2542 = vunpack.c.l.b16 %v2496
        %v2543 = vunpack.c.h.b16 %v2496
        %v2544 = vunpack.c.l.b16 %v2497
        %v2545 = vunpack.c.h.b16 %v2497
        %v2546 = vunpack.c.l.b16 %v2498
        %v2547 = vunpack.c.h.b16 %v2498
        %v2548 = vunpack.c.l.b16 %v2499
        %v2549 = vunpack.c.h.b16 %v2499
        %v2550 = vunpack.c.l.b16 %v2500
        %v2551 = vunpack.c.h.b16 %v2500
        %v2552 = vunpack.c.l.b16 %v2501
        %v2553 = vunpack.c.h.b16 %v2501
        %v2554 = vunpack.c.l.b16 %v2502
        %v2555 = vunpack.c.h.b16 %v2502
        %v2556 = vunpack.c.l.b16 %v2503
        %v2557 = vunpack.c.h.b16 %v2503
        %v2558 = vunpack.c.l.b16 %v2504
        %v2559 = vunpack.c.h.b16 %v2504
        %v2560 = vunpack.c.l.b16 %v2505
        %v2561 = vunpack.c.h.b16 %v2505
        %v2562 = vpack.c.b16 %v2532, %v2530
        %v2563 = vpack.c.b16 %v2533, %v2531
        %v2564 = vpack.c.b16 %v2536, %v2534
        %v2565 = vpack.c.b16 %v2537, %v2535
        %v2566 = vpack.c.b16 %v2540, %v2538
        %v2567 = vpack.c.b16 %v2541, %v2539
        %v2568 = vpack.c.b16 %v2544, %v2542
        %v2569 = vpack.c.b16 %v2545, %v2543
        %v2570 = vpack.c.b16 %v2548, %v2546
        %v2571 = vpack.c.b16 %v2549, %v2547
        %v2572 = vpack.c.b16 %v2552, %v2550
        %v2573 = vpack.c.b16 %v2553, %v2551
        %v2574 = vpack.c.b16 %v2556, %v2554
        %v2575 = vpack.c.b16 %v2557, %v2555
        %v2576 = vpack.c.b16 %v2560, %v2558
        %v2577 = vpack.c.b16 %v2561, %v2559
        %2594 = vmatpush.bf16.msra.mxu0 %v2576
        %2595 = vmatpush.bf16.msra.mxu0 %v2574
        %2596 = vmatpush.bf16.msra.mxu0 %v2572
        %2597 = vmatpush.bf16.msra.mxu0 %v2570
        %2598 = vmatpush.bf16.msra.mxu0 %v2568
        %2599 = vmatpush.bf16.msra.mxu0 %v2566
        %2600 = vmatpush.bf16.msra.mxu0 %v2564
        %2601 = vmatpush.bf16.msra.mxu0 %v2562
        %2602 = vmatmul.bf16.gmra.mxu0 %v2506
        %v2603 = vpop.f32.mrf.mxu0
        %v2604 = vadd.f32 %v2510, %v2603
        %v2605 = vpop.f32.mrf.mxu0
        %v2606 = vadd.f32 %v2510, %v2605
        %2607 = vdwg.mxu0
        %2608 = vmatpush.bf16.msra.mxu0 %v2577
        %2609 = vmatpush.bf16.msra.mxu0 %v2575
        %2610 = vmatpush.bf16.msra.mxu0 %v2573
        %2611 = vmatpush.bf16.msra.mxu0 %v2571
        %2612 = vmatpush.bf16.msra.mxu0 %v2569
        %2613 = vmatpush.bf16.msra.mxu0 %v2567
        %2614 = vmatpush.bf16.msra.mxu0 %v2565
        %2615 = vmatpush.bf16.msra.mxu0 %v2563
        %2616 = vmatmul.bf16.gmra.mxu0 %v2506
        %v2617 = vpop.f32.mrf.mxu0
        %v2618 = vadd.f32 %v2511, %v2617
        %v2619 = vpop.f32.mrf.mxu0
        %v2620 = vadd.f32 %v2511, %v2619
        %2621 = vdwg.mxu0
        %v2622 = vmul.f32 %v2604, %v2604
        %v2623 = vmul.f32 %v2618, %v2618
        %v2624 = vmul.f32 %v2606, %v2606
        %v2625 = vmul.f32 %v2620, %v2620
        %v2626 = vmul.f32 %v2604, %v2622
        %v2627 = vmul.f32 %v2618, %v2623
        %v2628 = vmul.f32 %v2606, %v2624
        %v2629 = vmul.f32 %v2620, %v2625
        %v2630 = vmul.f32 %v2626, 0.044715
        %v2631 = vmul.f32 %v2627, 0.044715
        %v2632 = vmul.f32 %v2628, 0.044715
        %v2633 = vmul.f32 %v2629, 0.044715
        %v2634 = vadd.f32 %v2604, %v2630
        %v2635 = vadd.f32 %v2618, %v2631
        %v2636 = vadd.f32 %v2606, %v2632
        %v2637 = vadd.f32 %v2620, %v2633
        %v2638 = vmul.f32 %v2634, 0.7978846
        %v2639 = vmul.f32 %v2635, 0.7978846
        %v2640 = vmul.f32 %v2636, 0.7978846
        %v2641 = vmul.f32 %v2637, 0.7978846
        %v2642 = vtanh.pop %v2638
        %v2643 = vtanh.pop %v2639
        %v2644 = vtanh.pop %v2640
        %v2645 = vtanh.pop %v2641
        %v2646 = vadd.f32 %v2642, 1.0
        %v2647 = vadd.f32 %v2643, 1.0
        %v2648 = vadd.f32 %v2644, 1.0
        %v2649 = vadd.f32 %v2645, 1.0
        %v2650 = vmul.f32 %v2646, 0.5
        %v2651 = vmul.f32 %v2647, 0.5
        %v2652 = vmul.f32 %v2648, 0.5
        %v2653 = vmul.f32 %v2649, 0.5
        %v2654 = vmul.f32 %v2604, %v2650
        %v2655 = vmul.f32 %v2618, %v2651
        %v2656 = vmul.f32 %v2606, %v2652
        %v2657 = vmul.f32 %v2620, %v2653
        %s2658 = scalar_lea.vmem [#allocation2], 128
        %v2659 = vld [vmem:[%s2658] sm:$0xf]
        %v2660 = vld [vmem:[%s2658 + $0x4] sm:$0xf]
        %v2661 = vld [vmem:[%s2658 + $0x8] sm:$0xf]
        %v2662 = vld [vmem:[%s2658 + $0xc] sm:$0xf]
        %v2663 = vld [vmem:[%s2658 + $0x10] sm:$0xf]
        %v2664 = vld [vmem:[%s2658 + $0x14] sm:$0xf]
        %v2665 = vld [vmem:[%s2658 + $0x18] sm:$0xf]
        %v2666 = vld [vmem:[%s2658 + $0x1c] sm:$0xf]
        %v2667 = vld [vmem:[%s2658 + $0x20] sm:$0xf]
        %v2668 = vld [vmem:[%s2658 + $0x24] sm:$0xf]
        %v2669 = vld [vmem:[%s2658 + $0x28] sm:$0xf]
        %v2670 = vld [vmem:[%s2658 + $0x2c] sm:$0xf]
        %v2671 = vld [vmem:[%s2658 + $0x30] sm:$0xf]
        %v2672 = vld [vmem:[%s2658 + $0x34] sm:$0xf]
        %v2673 = vld [vmem:[%s2658 + $0x38] sm:$0xf]
        %v2674 = vld [vmem:[%s2658 + $0x3c] sm:$0xf]
        %v2675 = vld [vmem:[%s2658 + $0x40] sm:$0xf]
        %v2676 = vld [vmem:[%s2658 + $0x44] sm:$0xf]
        %v2677 = vld [vmem:[%s2658 + $0x48] sm:$0xf]
        %v2678 = vld [vmem:[%s2658 + $0x4c] sm:$0xf]
        %v2679 = vld [vmem:[%s2658 + $0x50] sm:$0xf]
        %v2680 = vld [vmem:[%s2658 + $0x54] sm:$0xf]
        %v2681 = vld [vmem:[%s2658 + $0x58] sm:$0xf]
        %v2682 = vld [vmem:[%s2658 + $0x5c] sm:$0xf]
        %v2683 = vld [vmem:[%s2658 + $0x60] sm:$0xf]
        %v2684 = vld [vmem:[%s2658 + $0x64] sm:$0xf]
        %v2685 = vld [vmem:[%s2658 + $0x68] sm:$0xf]
        %v2686 = vld [vmem:[%s2658 + $0x6c] sm:$0xf]
        %v2687 = vld [vmem:[%s2658 + $0x70] sm:$0xf]
        %v2688 = vld [vmem:[%s2658 + $0x74] sm:$0xf]
        %v2689 = vld [vmem:[%s2658 + $0x78] sm:$0xf]
        %v2690 = vld [vmem:[%s2658 + $0x7c] sm:$0xf]
        %v2691 = vpack.c.bf16 %v2656, %v2654
        %v2692 = vpack.c.bf16 %v2657, %v2655
        %s2693 = scalar_lea.vmem %s13, 1
        %v2694 = vld [vmem:[%s2693] sm:$0x1]
        %v2696 = vperm.slane %v2694, 0
        %v2730 = vunpack.c.l.b16 %v2659
        %v2731 = vunpack.c.l.b16 %v2660
        %v2732 = vunpack.c.l.b16 %v2661
        %v2733 = vunpack.c.l.b16 %v2662
        %v2734 = vunpack.c.l.b16 %v2663
        %v2735 = vunpack.c.l.b16 %v2664
        %v2736 = vunpack.c.l.b16 %v2665
        %v2737 = vunpack.c.l.b16 %v2666
        %v2738 = vunpack.c.l.b16 %v2667
        %v2739 = vunpack.c.l.b16 %v2668
        %v2740 = vunpack.c.l.b16 %v2669
        %v2741 = vunpack.c.l.b16 %v2670
        %v2742 = vunpack.c.l.b16 %v2671
        %v2743 = vunpack.c.l.b16 %v2672
        %v2744 = vunpack.c.l.b16 %v2673
        %v2745 = vunpack.c.l.b16 %v2674
        %v2746 = vunpack.c.l.b16 %v2675
        %v2747 = vunpack.c.l.b16 %v2676
        %v2748 = vunpack.c.l.b16 %v2677
        %v2749 = vunpack.c.l.b16 %v2678
        %v2750 = vunpack.c.l.b16 %v2679
        %v2751 = vunpack.c.l.b16 %v2680
        %v2752 = vunpack.c.l.b16 %v2681
        %v2753 = vunpack.c.l.b16 %v2682
        %v2754 = vunpack.c.l.b16 %v2683
        %v2755 = vunpack.c.l.b16 %v2684
        %v2756 = vunpack.c.l.b16 %v2685
        %v2757 = vunpack.c.l.b16 %v2686
        %v2758 = vunpack.c.l.b16 %v2687
        %v2759 = vunpack.c.l.b16 %v2688
        %v2760 = vunpack.c.l.b16 %v2689
        %v2761 = vunpack.c.l.b16 %v2690
        %v2762 = vpack.c.b16 %v2731, %v2730
        %v2763 = vpack.c.b16 %v2733, %v2732
        %v2764 = vpack.c.b16 %v2735, %v2734
        %v2765 = vpack.c.b16 %v2737, %v2736
        %v2766 = vpack.c.b16 %v2739, %v2738
        %v2767 = vpack.c.b16 %v2741, %v2740
        %v2768 = vpack.c.b16 %v2743, %v2742
        %v2769 = vpack.c.b16 %v2745, %v2744
        %v2770 = vpack.c.b16 %v2747, %v2746
        %v2771 = vpack.c.b16 %v2749, %v2748
        %v2772 = vpack.c.b16 %v2751, %v2750
        %v2773 = vpack.c.b16 %v2753, %v2752
        %v2774 = vpack.c.b16 %v2755, %v2754
        %v2775 = vpack.c.b16 %v2757, %v2756
        %v2776 = vpack.c.b16 %v2759, %v2758
        %v2777 = vpack.c.b16 %v2761, %v2760
        %2794 = vmatpush.bf16.msra.mxu0 %v2769
        %2795 = vmatpush.bf16.msra.mxu0 %v2768
        %2796 = vmatpush.bf16.msra.mxu0 %v2767
        %2797 = vmatpush.bf16.msra.mxu0 %v2766
        %2798 = vmatpush.bf16.msra.mxu0 %v2765
        %2799 = vmatpush.bf16.msra.mxu0 %v2764
        %2800 = vmatpush.bf16.msra.mxu0 %v2763
        %2801 = vmatpush.bf16.msra.mxu0 %v2762
        %2802 = vmatmul.bf16.gmra.mxu0 %v2691
        %v2803 = vpop.f32.mrf.mxu0
        %v2804 = vadd.f32 %v2696, %v2803
        %v2805 = vpop.f32.mrf.mxu0
        %v2806 = vadd.f32 %v2696, %v2805
        %2807 = vdwg.mxu0
        %2808 = vmatpush.bf16.msra.mxu0 %v2777
        %2809 = vmatpush.bf16.msra.mxu0 %v2776
        %2810 = vmatpush.bf16.msra.mxu0 %v2775
        %2811 = vmatpush.bf16.msra.mxu0 %v2774
        %2812 = vmatpush.bf16.msra.mxu0 %v2773
        %2813 = vmatpush.bf16.msra.mxu0 %v2772
        %2814 = vmatpush.bf16.msra.mxu0 %v2771
        %2815 = vmatpush.bf16.msra.mxu0 %v2770
        %2816 = vmatmul.bf16.gmra.mxu0 %v2692
        %v2817 = vpop.f32.mrf.mxu0
        %v2818 = vadd.f32 %v2804, %v2817
        %v2819 = vpop.f32.mrf.mxu0
        %v2820 = vadd.f32 %v2806, %v2819
        %2821 = vdwg.mxu0
        %v2822 = vadd.f32 %v2818, %v2487
        %v2823 = vadd.f32 %v2820, %v2488
        %s2824 = scalar_lea.vmem %s14, 1
        %v2825 = vld [vmem:[%s2824] sm:$0x1]
        %s2826 = scalar_lea.vmem %s15, 1
        %v2827 = vld [vmem:[%s2826] sm:$0x1]
        %2828 = vadd.xlane.f32.xlu0 %v2822
        %v2829 = vpop.xlane.xlu0 %2828
        %2830 = vadd.xlane.f32.xlu0 %v2823
        %v2831 = vpop.xlane.xlu0 %2830
        %v2832 = vmul.f32 %v2829, %v650
        %v2833 = vmul.f32 %v2831, %v650
        %v2834 = vsub.f32 %v2822, %v2832
        %v2835 = vsub.f32 %v2823, %v2833
        %v2836 = vmul.f32 %v2834, %v2834
        %v2837 = vmul.f32 %v2835, %v2835
        %2838 = vadd.xlane.f32.xlu0 %v2836
        %v2839 = vpop.xlane.xlu0 %2838
        %2840 = vadd.xlane.f32.xlu0 %v2837
        %v2841 = vpop.xlane.xlu0 %2840
        %v2842 = vmul.f32 %v2839, %v650
        %v2843 = vmul.f32 %v2841, %v650
        %v2844 = vadd.f32 %v2842, 1e-12
        %v2845 = vadd.f32 %v2843, 1e-12
        %v2846 = vrsqrt.pop %v2844
        %v2847 = vmul.f32 %v2846, %v2844
        %v2848 = vmul.f32 %v2847, %v2846
        %v2849 = vmul.f32 0.5, %v2848
        %v2850 = vsub.f32 1.5, %v2849
        %v2851 = vmul.f32 %v2846, %v2850
        %vm2852 = vweird.f32 %v2844
        %vm2853 = vweird.f32 %v2846
        %vm2854 = vmor %vm2852, %vm2853
        %v2855 = vsel %vm2854, %v2846, %v2851
        %v2856 = vrsqrt.pop %v2845
        %v2857 = vmul.f32 %v2856, %v2845
        %v2858 = vmul.f32 %v2857, %v2856
        %v2859 = vmul.f32 0.5, %v2858
        %v2860 = vsub.f32 1.5, %v2859
        %v2861 = vmul.f32 %v2856, %v2860
        %vm2862 = vweird.f32 %v2845
        %vm2863 = vweird.f32 %v2856
        %vm2864 = vmor %vm2862, %vm2863
        %v2865 = vsel %vm2864, %v2856, %v2861
        %v2866 = vmul.f32 %v2834, %v2855
        %v2867 = vmul.f32 %v2835, %v2865
        %v2869 = vperm.slane %v2825, 0
        %v2871 = vmul.f32 %v2866, %v2869
        %v2872 = vmul.f32 %v2867, %v2869
        %v2874 = vperm.slane %v2827, 0
        %v2876 = vadd.f32 %v2871, %v2874
        %v2877 = vadd.f32 %v2872, %v2874
        %v2878 = vld [vmem:[#allocation4] sm:$0xf]
        %v2879 = vld [vmem:[#allocation4 + $0x4] sm:$0xf]
        %v2880 = vld [vmem:[#allocation4 + $0x8] sm:$0xf]
        %v2881 = vld [vmem:[#allocation4 + $0xc] sm:$0xf]
        %v2882 = vld [vmem:[#allocation4 + $0x10] sm:$0xf]
        %v2883 = vld [vmem:[#allocation4 + $0x14] sm:$0xf]
        %v2884 = vld [vmem:[#allocation4 + $0x18] sm:$0xf]
        %v2885 = vld [vmem:[#allocation4 + $0x1c] sm:$0xf]
        %v2886 = vld [vmem:[#allocation4 + $0x20] sm:$0xf]
        %v2887 = vld [vmem:[#allocation4 + $0x24] sm:$0xf]
        %v2888 = vld [vmem:[#allocation4 + $0x28] sm:$0xf]
        %v2889 = vld [vmem:[#allocation4 + $0x2c] sm:$0xf]
        %v2890 = vld [vmem:[#allocation4 + $0x30] sm:$0xf]
        %v2891 = vld [vmem:[#allocation4 + $0x34] sm:$0xf]
        %v2892 = vld [vmem:[#allocation4 + $0x38] sm:$0xf]
        %v2893 = vld [vmem:[#allocation4 + $0x3c] sm:$0xf]
        %v2894 = vpack.c.bf16 %v2877, %v2876
        %v2895 = vld [vmem:[%s17] sm:$0x1]
        %v2897 = vperm.slane %v2895, 0
        %v2915 = vunpack.c.l.b16 %v2878
        %v2916 = vunpack.c.l.b16 %v2879
        %v2917 = vunpack.c.l.b16 %v2880
        %v2918 = vunpack.c.l.b16 %v2881
        %v2919 = vunpack.c.l.b16 %v2882
        %v2920 = vunpack.c.l.b16 %v2883
        %v2921 = vunpack.c.l.b16 %v2884
        %v2922 = vunpack.c.l.b16 %v2885
        %v2923 = vunpack.c.l.b16 %v2886
        %v2924 = vunpack.c.l.b16 %v2887
        %v2925 = vunpack.c.l.b16 %v2888
        %v2926 = vunpack.c.l.b16 %v2889
        %v2927 = vunpack.c.l.b16 %v2890
        %v2928 = vunpack.c.l.b16 %v2891
        %v2929 = vunpack.c.l.b16 %v2892
        %v2930 = vunpack.c.l.b16 %v2893
        %v2931 = vpack.c.b16 %v2916, %v2915
        %v2932 = vpack.c.b16 %v2918, %v2917
        %v2933 = vpack.c.b16 %v2920, %v2919
        %v2934 = vpack.c.b16 %v2922, %v2921
        %v2935 = vpack.c.b16 %v2924, %v2923
        %v2936 = vpack.c.b16 %v2926, %v2925
        %v2937 = vpack.c.b16 %v2928, %v2927
        %v2938 = vpack.c.b16 %v2930, %v2929
        %2947 = vmatpush.bf16.msra.mxu0 %v2938
        %2948 = vmatpush.bf16.msra.mxu0 %v2937
        %2949 = vmatpush.bf16.msra.mxu0 %v2936
        %2950 = vmatpush.bf16.msra.mxu0 %v2935
        %2951 = vmatpush.bf16.msra.mxu0 %v2934
        %2952 = vmatpush.bf16.msra.mxu0 %v2933
        %2953 = vmatpush.bf16.msra.mxu0 %v2932
        %2954 = vmatpush.bf16.msra.mxu0 %v2931
        %2955 = vmatmul.bf16.gmra.mxu0 %v2894
        %v2956 = vpop.f32.mrf.mxu0
        %v2957 = vadd.f32 %v2897, %v2956
        %v2958 = vpop.f32.mrf.mxu0
        %v2959 = vadd.f32 %v2897, %v2958
        %2960 = vdwg.mxu0
        %2961 = vst [vmem:[%s633] sm:$0xff] %v2957
        %2962 = vst [vmem:[%s633 + $0x8] sm:$0xff] %v2959
        %s2963 = smul.u32 2, %s31
        %p2964 = scmp.lt.s32.totalorder %s2963, 3
        %s2965 = scalar_select %p2964, %s2963, 3
        %s2966 = smul.addr %s2965, 8
        %s2967 = scalar_lea.vmem %s18, %s2966
        // Predicated region
        $region101: #{bertqua_forward.1} parent=91 // pred_check
          %p2968 = pneg %p437
        $region102: #{bertqua_forward.1} parent=91 // pred_check_branch
          %2970 = sbr.rel (%p2968) target = $region104
        $region103: #{bertqua_forward.1} parent=91 // pred_region
          %s2971 = smul.u32 2, %s31
        $region104: #{bertqua_forward.1} parent=91 // pred_fallthru
          _
      $region92: #{bertqua_forward.1} parent=5 // pred_fallthru
        _
      %p2972 = scmp.le.s32.totalorder 2, %s26
      // Predicated region
      $region105: #{bertqua_forward.1} parent=5 // pred_check
        %p2973 = pneg %p2972
      $region106: #{bertqua_forward.1} parent=5 // pred_check_branch
        %2975 = sbr.rel (%p2973) target = $region108
      $region107: #{bertqua_forward.1} parent=5 // pred_region
        %s2976 = ssub.s32 %s26, 2
        // Predicated region
        $region109: #{bertqua_forward.1} parent=107 // pred_check
          %p2977 = pneg %p443
        $region110: #{bertqua_forward.1} parent=107 // pred_check_branch
          %2979 = sbr.rel (%p2977) target = $region112
        $region111: #{bertqua_forward.1} parent=107 // pred_region
          %s2980 = smul.u32 2, %s32
          %p2981 = scmp.lt.s32.totalorder %s2980, 3
          %s2982 = scalar_select %p2981, %s2980, 3
          %s2983 = smul.addr %s2982, 8
          %s2984 = scalar_lea.vmem %s18, %s2983
        $region112: #{bertqua_forward.1} parent=107 // pred_fallthru
          _
      $region108: #{bertqua_forward.1} parent=5 // pred_fallthru
        _
    $region6: #{bertqua_forward.1} parent=1 // loop_footer
      %s30 = sadd.s32 1, %s26
    $region7: #{bertqua_forward.1} parent=1 // loop_footer_branch
      %25 = sbr.rel target = $region3
    $region8: #{bertqua_forward.1} parent=1 // loop_exit
      _
    %2985 = vsyncpa [#allocation3], 1
    %s2986 = scalar_lea.sflag [#allocation3], 1
    %2987 = vsyncpa %s2986, 1
    %2988 = vsyncpa [#allocation5], 1

</llo_original>
